<compile_context>
chip_gen: v7x
topology: tpu7x:2x2x1
jax: 0.10.0
libtpu: 0.0.40
codegen_flags: <defaults>
</compile_context>

<pallas_src>
import functools
from typing import NamedTuple

import numpy as np

import jax
import jax.numpy as jnp
from jax.experimental import pallas as pl
from jax.experimental.pallas import tpu as pltpu


class BENOutput(NamedTuple):
    q_value: jax.Array           # [B, 1]
    aleatoric_params: jax.Array  # [B, 2]
    epistemic_params: jax.Array  # [B, 2 * param_dim]


def _vspec():
    return pl.BlockSpec(memory_space=pltpu.MemorySpace.VMEM)


def _padded_dims(batch, n_samples):
    return (max(8, ((batch + 7) // 8) * 8), ((n_samples + 7) // 8) * 8)


def _sample_base(noise_key, b_pad, n_pad, half):
    """Standard-normal base samples, shared by the kernel wrapper and reference."""
    k_al, k_ep = jax.random.split(noise_key)
    z_al = jax.random.normal(k_al, (b_pad, n_pad), jnp.float32)
    z_ep = jax.random.normal(k_ep, (2, b_pad * n_pad, half), jnp.float32)
    return z_al, z_ep


# ----------------------------------------------------------------------------
# Fused kernel: GRU encoder -> Q head -> aleatoric flow -> epistemic flow
# ----------------------------------------------------------------------------
def _ben_fused_kernel(
    x_ref,       # [T*Bp, D_in]        f32  [state | onehot(action) | reward], time-major
    ca_ref,      # [Bp, A]             f32  current-action one-hot
    z_al_ref,    # [Bp, n_pad]         f32  aleatoric base samples (padded, masked)
    z_ep_ref,    # [2, Bp*n_pad, half] f32  epistemic base samples, pre-split halves
    sel_ref,     # [Bp, Bp*n_pad]      f32  per-batch sample selector (padded rows masked)
    gru_w_ref,   # [D_in + H_pad, 3*H_pad]  rows: W_ih (b_ih folded into one-hot rows) | W_hh
    gru_b_ref,   # [1, 3*H_pad]             gate-padded b_hh
    q_w1_ref,    # [H_pad + A, Hd]          rows: W1 (h part) | W1 (one-hot part, q_b1 folded)
    q_w2_ref,    # [Hd + 1, 1]              rows: W2 | b2
    al_w1_ref,   # [H_pad + 2, L*Hd]        rows: W1h (batched over L) | W1q | b1
    al_w2_ref,   # [L*Hd + 1 + L, 2L]       rows: block-diag W2 (logs|shift cols) | b2 | U
    ep_w1_ref,   # [L, half + 1, Hd]        last row per layer = bias
    ep_w2_ref,   # [2L, Hd + 1, half]       [0:L] = log_s weights, [L:2L] = shift weights
    out_ref,     # [Bp, out_width]          lane-dense 128-multiple output slab
    *, n_samples,
):
    f32 = jnp.float32
    TB, D_in = x_ref.shape
    Bp, A = ca_ref.shape
    T = TB // Bp
    Hp = gru_w_ref.shape[0] - D_in          # per-gate lane stride (multiple of 128)
    Hd = q_w1_ref.shape[1]
    L = ep_w1_ref.shape[0]
    half = ep_w2_ref.shape[2]
    P = 2 * half
    LHd = al_w1_ref.shape[1]
    n_pad = z_al_ref.shape[1]

    relu = lambda v: jnp.maximum(v, 0.0)
    inv_n = 1.0 / n_samples
    # torch.std default is unbiased (ddof=1); n_samples >= 2 expected (module default 10).
    inv_nm1 = 1.0 / max(n_samples - 1, 1)

    # ---------------- Phase 1: GRU history encoder --------------------------
    gw = gru_w_ref[...]
    w_ih = gw[:D_in]                         # [D_in, 3*Hp]
    w_hh = gw[D_in:]                         # [Hp, 3*Hp]  (rows >= H are zero)
    b_hh = jnp.broadcast_to(gru_b_ref[...], (Bp, 3 * Hp))   # hoisted out of the loop

    # Input projection hoisted off the serial path (b_ih already folded in).
    gi_all = jnp.dot(x_ref[...], w_ih, preferred_element_type=f32)   # [TB, 3*Hp]

    # TODO(synk): consider pltpu.matmul_push_rhs to keep W_hh staged across the T
    # serial steps once a bundle dump confirms the compiler re-pushes it per step.
    h = jnp.zeros((Bp, Hp), f32)
    for t in range(T):  # static unroll; only h @ W_hh is serial
        gi = gi_all[t * Bp:(t + 1) * Bp]     # sublane-tile aligned (Bp multiple of 8)
        gh = jnp.dot(h, w_hh, preferred_element_type=f32) + b_hh
        r = jax.nn.sigmoid(gi[:, :Hp] + gh[:, :Hp])                  # lane-tile aligned
        z = jax.nn.sigmoid(gi[:, Hp:2 * Hp] + gh[:, Hp:2 * Hp])
        n = jnp.tanh(gi[:, 2 * Hp:] + r * gh[:, 2 * Hp:])
        h = (1.0 - z) * n + z * h            # padded lanes stay exactly zero

    # ---------------- Phase 2: Q head ---------------------------------------
    qw1 = q_w1_ref[...]
    hq = relu(jnp.dot(h, qw1[:Hp], preferred_element_type=f32)
              + jnp.dot(ca_ref[...], qw1[Hp:], preferred_element_type=f32))
    qw2 = q_w2_ref[...]
    q = jnp.dot(hq, qw2[:Hd], preferred_element_type=f32) + qw2[Hd:Hd + 1]   # [Bp, 1]

    # ---------------- Phase 3: aleatoric conditional flow -------------------
    # All L conditioner layers share the same (h, q) input -> one batched MXU
    # pass per layer level; the affine composition is done in closed form:
    #   scale = exp(sum_l tanh(logs_l)),  shift = sum_l sh_l * exp(sum_{m>l} tanh(logs_m))
    al1 = al_w1_ref[...]
    hc_all = relu(jnp.dot(h, al1[:Hp], preferred_element_type=f32)
                  + q * al1[Hp:Hp + 1] + al1[Hp + 1:Hp + 2])          # [Bp, L*Hd]
    al2 = al_w2_ref[...]
    p_all = jnp.dot(hc_all, al2[:LHd], preferred_element_type=f32) + al2[LHd:LHd + 1]  # [Bp, 2L]
    t_all = jnp.tanh(p_all[:, :L])
    sh_all = p_all[:, L:2 * L]
    scale = jnp.exp(jnp.sum(t_all, axis=-1, keepdims=True))           # [Bp, 1]
    u_tri = al2[LHd + 1:LHd + 1 + L, :L]                              # suffix-sum matrix
    suffix = jnp.dot(t_all, u_tri, preferred_element_type=f32)        # [Bp, L]
    shift = jnp.sum(sh_all * jnp.exp(suffix), axis=-1, keepdims=True)  # [Bp, 1]

    z_al = z_al_ref[...]
    lane_mask = (jax.lax.broadcasted_iota(jnp.int32, (Bp, n_pad), 1) < n_samples).astype(f32)
    mean_z = jnp.sum(z_al * lane_mask, axis=-1, keepdims=True) * inv_n
    dz = (z_al - mean_z) * lane_mask
    std_z = jnp.sqrt(jnp.sum(dz * dz, axis=-1, keepdims=True) * inv_nm1)
    al_mean = scale * mean_z + shift
    al_std = scale * std_z

    # ---------------- Phase 4: epistemic RealNVP flow -----------------------
    za = z_ep_ref[0]                                                   # [M, half]
    zb = z_ep_ref[1]
    for l in range(L):
        cond = za if (l % 2 == 0) else zb
        w1 = ep_w1_ref[l]                                              # [half+1, Hd]
        hc = relu(jnp.dot(cond, w1[:half], preferred_element_type=f32) + w1[half:half + 1])
        w2l = ep_w2_ref[l]                                             # log_s [Hd+1, half]
        w2s = ep_w2_ref[L + l]                                         # shift [Hd+1, half]
        e = jnp.exp(jnp.tanh(
            jnp.dot(hc, w2l[:Hd], preferred_element_type=f32) + w2l[Hd:Hd + 1]))
        sh = jnp.dot(hc, w2s[:Hd], preferred_element_type=f32) + w2s[Hd:Hd + 1]
        if l % 2 == 0:
            zb = zb * e + sh
        else:
            za = za * e + sh

    # Per-batch sample statistics via ONE fused selector matmul.
    phi = jnp.concatenate([za, zb], axis=-1)                           # [M, P]
    rhs = jnp.concatenate([phi, phi * phi], axis=-1)                   # [M, 2P]
    stats = jnp.dot(sel_ref[...], rhs, preferred_element_type=f32)     # [Bp, 2P]
    sum_x = stats[:, :P]
    sum_x2 = stats[:, P:2 * P]
    ep_mean = sum_x * inv_n
    # TODO(synk): one-pass variance can cancel in f32 if flow outputs drift far
    # from zero mean; the clamp keeps it non-negative (two-pass if that matters).
    ep_var = jnp.maximum(sum_x2 - n_samples * ep_mean * ep_mean, 0.0) * inv_nm1
    ep_std = jnp.sqrt(ep_var)

    # ---------------- Phase 5: lane-dense 128-wide output slab --------------
    out_ref[...] = jnp.zeros_like(out_ref)
    out_ref[:, 0:P] = ep_mean
    out_ref[:, P:2 * P] = ep_std
    out_ref[:, 2 * P:2 * P + 3] = jnp.concatenate([q, al_mean, al_std], axis=-1)


# ----------------------------------------------------------------------------
# Parameter init (deterministic, synthetic weights in the "unpacked" layout)
# ----------------------------------------------------------------------------
def init_params(key, *, num_actions, state_dim, hidden_dim, gru_hidden_dim,
                num_coupling_layers, param_dim):
    def dense(k, fan_in, shape, scale=1.0):
        return (scale / jnp.sqrt(jnp.float32(fan_in))) * jax.random.normal(k, shape, jnp.float32)

    d_in = state_dim + num_actions + 1
    L = num_coupling_layers
    cond_dim = gru_hidden_dim + 1
    half = param_dim // 2
    ks = jax.random.split(key, 16)
    return {
        # GRU weights in (r, z, n) gate order, stored pre-transposed [in, 3H].
        "gru_w_ih": dense(ks[0], d_in, (d_in, 3 * gru_hidden_dim)),
        "gru_w_hh": dense(ks[1], gru_hidden_dim, (gru_hidden_dim, 3 * gru_hidden_dim)),
        "gru_b_ih": 0.1 * jax.random.normal(ks[2], (1, 3 * gru_hidden_dim), jnp.float32),
        "gru_b_hh": 0.1 * jax.random.normal(ks[3], (1, 3 * gru_hidden_dim), jnp.float32),
        "q_w1": dense(ks[4], gru_hidden_dim + num_actions,
                      (gru_hidden_dim + num_actions, hidden_dim)),
        "q_b1": 0.1 * jax.random.normal(ks[5], (1, hidden_dim), jnp.float32),
        "q_w2": dense(ks[6], hidden_dim, (hidden_dim, 1)),
        "q_b2": 0.1 * jax.random.normal(ks[7], (1, 1), jnp.float32),
        "al_w1": dense(ks[8], cond_dim, (L, cond_dim, hidden_dim), 0.5),
        "al_b1": 0.05 * jax.random.normal(ks[9], (L, 1, hidden_dim), jnp.float32),
        "al_w2": dense(ks[10], hidden_dim, (L, hidden_dim, 2), 0.5),
        "al_b2": 0.05 * jax.random.normal(ks[11], (L, 1, 2), jnp.float32),
        "ep_w1": dense(ks[12], half, (L, half, hidden_dim), 0.5),
        "ep_b1": 0.05 * jax.random.normal(ks[13], (L, 1, hidden_dim), jnp.float32),
        "ep_w2": dense(ks[14], hidden_dim, (L, hidden_dim, param_dim), 0.5),
        "ep_b2": 0.05 * jax.random.normal(ks[15], (L, 1, param_dim), jnp.float32),
    }


# ----------------------------------------------------------------------------
# Forward wrapper: layout plumbing only; all compute in one fused Pallas kernel
# ----------------------------------------------------------------------------
def ben_forward(params, history_states, history_actions, history_rewards,
                current_action, noise_key, *, num_actions, param_dim, n_samples):
    f32 = jnp.float32
    B, T, S = history_states.shape
    A = num_actions
    H = params["gru_w_hh"].shape[0]
    Hd = params["q_b1"].shape[-1]
    P = param_dim
    half = P // 2
    L = params["al_w1"].shape[0]
    D_in = S + A + 1

    B_pad, n_pad = _padded_dims(B, n_samples)
    M = B_pad * n_pad
    H_pad = ((H + 127) // 128) * 128       # per-gate / encoder lane stride
    TB = T * B_pad
    pad_rows = B_pad - B

    # --- history inputs: [state | onehot(action) | reward], batch-padded, time-major ---
    oh_hist = jax.nn.one_hot(history_actions, A, dtype=f32)
    x = jnp.concatenate([history_states.astype(f32), oh_hist,
                         history_rewards[..., None].astype(f32)], axis=-1)     # [B, T, D_in]
    if pad_rows:
        pad_block = jnp.zeros((pad_rows, T, D_in), f32).at[:, :, S].set(1.0)   # action-0 one-hot
        x = jnp.concatenate([x, pad_block], axis=0)
    x_hist = jnp.transpose(x, (1, 0, 2)).reshape(TB, D_in)

    ca = current_action.astype(jnp.int32)
    if pad_rows:
        ca = jnp.concatenate([ca, jnp.zeros((pad_rows,), jnp.int32)], axis=0)
    cur_oh = jax.nn.one_hot(ca, A, dtype=f32)                                  # [B_pad, A]

    # --- base-distribution samples (padded) + per-batch sample selector ---
    z_al, z_ep = _sample_base(noise_key, B_pad, n_pad, half)
    r_idx = jnp.arange(M)
    sel = (((r_idx[None, :] // n_pad) == jnp.arange(B_pad)[:, None])
           & ((r_idx[None, :] % n_pad) < n_samples)).astype(f32)               # [B_pad, M]
    # TODO(synk): sel is O(B^2 * n_pad); for large B switch to a batch grid axis
    # (block-diagonal selector per block, dimension_semantics=("parallel",)) so
    # VMEM stays bounded on v7x/v5e and the second v7x TensorCore gets used.

    # --- GRU weights: per-gate 128-lane padding, b_ih folded into one-hot rows ---
    def gate_pad(m):                                   # [..., 3H] -> [..., 3*H_pad]
        r = m.reshape(m.shape[:-1] + (3, H))
        r = jnp.pad(r, [(0, 0)] * (r.ndim - 1) + [(0, H_pad - H)])
        return r.reshape(m.shape[:-1] + (3 * H_pad,))

    w_ih_f = params["gru_w_ih"].at[S:S + A].add(
        jnp.broadcast_to(params["gru_b_ih"], (A, 3 * H)))
    gru_w = jnp.concatenate(
        [gate_pad(w_ih_f),
         jnp.pad(gate_pad(params["gru_w_hh"]), ((0, H_pad - H), (0, 0)))], axis=0)
    gru_bhh = gate_pad(params["gru_b_hh"])

    # --- Q head: h-rows padded, q_b1 folded into one-hot rows, q_b2 packed as a row ---
    q_w1 = jnp.concatenate(
        [jnp.pad(params["q_w1"][:H], ((0, H_pad - H), (0, 0))),
         params["q_w1"][H:] + params["q_b1"]], axis=0)                         # [H_pad+A, Hd]
    q_w2 = jnp.concatenate([params["q_w2"], params["q_b2"]], axis=0)           # [Hd+1, 1]

    # --- aleatoric flow: layer-1 batched over L, layer-2 block-diagonal, U matrix packed ---
    al_w1h = jnp.transpose(params["al_w1"][:, :H], (1, 0, 2)).reshape(H, L * Hd)
    al_w1q = jnp.transpose(params["al_w1"][:, H:], (1, 0, 2)).reshape(1, L * Hd)
    al_b1 = jnp.transpose(params["al_b1"], (1, 0, 2)).reshape(1, L * Hd)
    al_w1 = jnp.concatenate(
        [jnp.pad(al_w1h, ((0, H_pad - H), (0, 0))), al_w1q, al_b1], axis=0)    # [H_pad+2, L*Hd]

    eye = jnp.eye(L, dtype=f32)
    blk_logs = (params["al_w2"][:, :, 0][:, :, None] * eye[:, None, :]).reshape(L * Hd, L)
    blk_shift = (params["al_w2"][:, :, 1][:, :, None] * eye[:, None, :]).reshape(L * Hd, L)
    b2 = params["al_b2"][:, 0, :]                                              # [L, 2]
    al_b2_row = jnp.concatenate([b2[:, 0], b2[:, 1]])[None, :]                 # [1, 2L]
    u_tri = (jnp.arange(L)[:, None] > jnp.arange(L)[None, :]).astype(f32)      # suffix-sum matrix
    al_w2 = jnp.concatenate(
        [jnp.concatenate([blk_logs, blk_shift], axis=1),
         al_b2_row,
         jnp.pad(u_tri, ((0, 0), (0, L)))], axis=0)                            # [L*Hd+1+L, 2L]

    # --- epistemic flow: log_s / shift weights pre-split, biases packed as rows ---
    ep_w1 = jnp.concatenate([params["ep_w1"], params["ep_b1"]], axis=1)        # [L, half+1, Hd]
    ep_w2 = jnp.concatenate(
        [jnp.concatenate([params["ep_w2"][:, :, :half],
                          params["ep_b2"][:, :, :half]], axis=1),
         jnp.concatenate([params["ep_w2"][:, :, half:],
                          params["ep_b2"][:, :, half:]], axis=1)], axis=0)     # [2L, Hd+1, half]

    out_width = ((2 * P + 3 + 127) // 128) * 128
    # TODO(synk): if B or n_samples grow, set pltpu.CompilerParams(vmem_limit_bytes=...)
    # and shard over a parallel grid axis; at B=2, n=10 a single invocation wins.
    out_slab = pl.pallas_call(
        functools.partial(_ben_fused_kernel, n_samples=n_samples),
        out_shape=jax.ShapeDtypeStruct((B_pad, out_width), f32),
        in_specs=[_vspec()] * 13,
        out_specs=_vspec(),
    )(x_hist, cur_oh, z_al, z_ep, sel,
      gru_w, gru_bhh, q_w1, q_w2, al_w1, al_w2, ep_w1, ep_w2)

    return BENOutput(
        q_value=out_slab[:B, 2 * P:2 * P + 1],
        aleatoric_params=out_slab[:B, 2 * P + 1:2 * P + 3],
        epistemic_params=out_slab[:B, :2 * P],
    )


# ----------------------------------------------------------------------------
# Plain-JAX reference of the same reconstructed forward (for cross-checking)
# ----------------------------------------------------------------------------
def _reference_forward(params, history_states, history_actions, history_rewards,
                       current_action, z_al, z_ep, *, num_actions, param_dim, n_samples):
    f32 = jnp.float32
    dot = functools.partial(jnp.dot, precision=jax.lax.Precision.HIGHEST)
    B, T, S = history_states.shape
    A = num_actions
    H = params["gru_w_hh"].shape[0]
    P = param_dim
    half = P // 2
    L = params["al_w1"].shape[0]
    n_pad = z_al.shape[1]

    oh = jax.nn.one_hot(history_actions, A, dtype=f32)
    x = jnp.concatenate([history_states.astype(f32), oh,
                         history_rewards[..., None].astype(f32)], axis=-1)

    h = jnp.zeros((B, H), f32)
    for t in range(T):
        gi = dot(x[:, t], params["gru_w_ih"]) + params["gru_b_ih"]
        gh = dot(h, params["gru_w_hh"]) + params["gru_b_hh"]
        r = jax.nn.sigmoid(gi[:, :H] + gh[:, :H])
        z = jax.nn.sigmoid(gi[:, H:2 * H] + gh[:, H:2 * H])
        n = jnp.tanh(gi[:, 2 * H:] + r * gh[:, 2 * H:])
        h = (1.0 - z) * n + z * h

    cur_oh = jax.nn.one_hot(current_action, A, dtype=f32)
    hq = jnp.maximum(dot(jnp.concatenate([h, cur_oh], -1), params["q_w1"])
                     + params["q_b1"], 0.0)
    q = dot(hq, params["q_w2"]) + params["q_b2"]

    scale = jnp.ones((B, 1), f32)
    shift = jnp.zeros((B, 1), f32)
    cond = jnp.concatenate([h, q], axis=-1)
    for l in range(L):
        hc = jnp.maximum(dot(cond, params["al_w1"][l]) + params["al_b1"][l], 0.0)
        p = dot(hc, params["al_w2"][l]) + params["al_b2"][l]
        e = jnp.exp(jnp.tanh(p[:, 0:1]))
        shift = shift * e + p[:, 1:2]
        scale = scale * e
    b_samples = scale * z_al[:B, :n_samples] + shift
    al_mean = jnp.mean(b_samples, axis=1, keepdims=True)
    al_std = jnp.std(b_samples, axis=1, ddof=1, keepdims=True)

    za, zb = z_ep[0], z_ep[1]
    for l in range(L):
        c = za if l % 2 == 0 else zb
        hc = jnp.maximum(dot(c, params["ep_w1"][l]) + params["ep_b1"][l], 0.0)
        st = dot(hc, params["ep_w2"][l]) + params["ep_b2"][l]
        e = jnp.exp(jnp.tanh(st[:, :half]))
        sh = st[:, half:]
        if l % 2 == 0:
            zb = zb * e + sh
        else:
            za = za * e + sh
    phi = jnp.concatenate([za, zb], axis=-1).reshape(-1, n_pad, P)[:B, :n_samples]
    ep_mean = jnp.mean(phi, axis=1)
    ep_std = jnp.std(phi, axis=1, ddof=1)
    return BENOutput(q_value=q,
                     aleatoric_params=jnp.concatenate([al_mean, al_std], -1),
                     epistemic_params=jnp.concatenate([ep_mean, ep_std], -1))


# TODO(synk): training-side methods (initialize_prior, update_posterior, ELBO /
# MSBBE losses, Adam) are host-side optimization loops, not part of the forward
# pass, and are not translated to Pallas.

if __name__ == "__main__":
    B, T, S, A = 2, 8, 4, 3
    hidden_dim, gru_hidden_dim, param_dim = 32, 32, 32
    num_coupling_layers, n_samples = 4, 10

    key = jax.random.PRNGKey(0)
    k_s, k_a, k_r, k_ca, k_p, k_noise = jax.random.split(key, 6)

    history_states = jax.random.normal(k_s, (B, T, S), jnp.float32)
    history_actions = jax.random.randint(k_a, (B, T), 0, A, dtype=jnp.int32)
    history_rewards = jax.random.normal(k_r, (B, T), jnp.float32)
    current_action = jax.random.randint(k_ca, (B,), 0, A, dtype=jnp.int32)

    params = init_params(
        k_p, num_actions=A, state_dim=S, hidden_dim=hidden_dim,
        gru_hidden_dim=gru_hidden_dim, num_coupling_layers=num_coupling_layers,
        param_dim=param_dim)

    fwd = jax.jit(functools.partial(
        ben_forward, num_actions=A, param_dim=param_dim, n_samples=n_samples))
    out = fwd(params, history_states, history_actions, history_rewards,
              current_action, k_noise)
    jax.block_until_ready(out)

    assert out.q_value.shape == (B, 1)
    assert out.aleatoric_params.shape == (B, 2)
    assert out.epistemic_params.shape == (B, 2 * param_dim)
    assert all(bool(jnp.all(jnp.isfinite(t))) for t in out)

    # Cross-check the packed/fused kernel against plain JAX on the same noise.
    B_pad, n_pad = _padded_dims(B, n_samples)
    z_al_ref, z_ep_ref = _sample_base(k_noise, B_pad, n_pad, param_dim // 2)
    ref = _reference_forward(params, history_states, history_actions, history_rewards,
                             current_action, z_al_ref, z_ep_ref,
                             num_actions=A, param_dim=param_dim, n_samples=n_samples)
    np.testing.assert_allclose(np.asarray(out.q_value), np.asarray(ref.q_value),
                               rtol=2e-2, atol=2e-2)
    np.testing.assert_allclose(np.asarray(out.aleatoric_params),
                               np.asarray(ref.aleatoric_params), rtol=2e-2, atol=2e-2)
    np.testing.assert_allclose(np.asarray(out.epistemic_params),
                               np.asarray(ref.epistemic_params), rtol=2e-2, atol=2e-2)

    print("KERNEL_OK")
</pallas_src>

<mosaic_0001>
module attributes {stable_mosaic.version = 11 : i64} {
  func.func @_ben_fused_kernel(%arg0: memref<64x8xf32, #tpu.memory_space<vmem>>, %arg1: memref<8x3xf32, #tpu.memory_space<vmem>>, %arg2: memref<8x16xf32, #tpu.memory_space<vmem>>, %arg3: memref<2x128x16xf32, #tpu.memory_space<vmem>>, %arg4: memref<8x128xf32, #tpu.memory_space<vmem>>, %arg5: memref<136x384xf32, #tpu.memory_space<vmem>>, %arg6: memref<1x384xf32, #tpu.memory_space<vmem>>, %arg7: memref<131x32xf32, #tpu.memory_space<vmem>>, %arg8: memref<33x1xf32, #tpu.memory_space<vmem>>, %arg9: memref<130x128xf32, #tpu.memory_space<vmem>>, %arg10: memref<133x8xf32, #tpu.memory_space<vmem>>, %arg11: memref<4x17x32xf32, #tpu.memory_space<vmem>>, %arg12: memref<8x33x16xf32, #tpu.memory_space<vmem>>, %arg13: memref<8x128xf32, #tpu.memory_space<vmem>>) attributes {dimension_semantics = [], scalar_prefetch = 0 : i64, scratch_operands = 0 : i64, tpu.core_type = #tpu.core_type<tc>} {
    %c0 = arith.constant 0 : index
    %c0_0 = arith.constant 0 : index
    %0 = vector.load %arg5[%c0, %c0_0] : memref<136x384xf32, #tpu.memory_space<vmem>>, vector<136x384xf32>
    %1 = vector.extract_strided_slice %0 {offsets = [0, 0], sizes = [8, 384], strides = [1, 1]} : vector<136x384xf32> to vector<8x384xf32>
    %2 = vector.extract_strided_slice %0 {offsets = [8, 0], sizes = [128, 384], strides = [1, 1]} : vector<136x384xf32> to vector<128x384xf32>
    %c0_1 = arith.constant 0 : index
    %c0_2 = arith.constant 0 : index
    %3 = vector.load %arg6[%c0_1, %c0_2] : memref<1x384xf32, #tpu.memory_space<vmem>>, vector<1x384xf32>
    %4 = vector.shape_cast %3 : vector<1x384xf32> to vector<1x384xf32>
    %5 = vector.broadcast %4 : vector<1x384xf32> to vector<8x384xf32>
    %c0_3 = arith.constant 0 : index
    %c0_4 = arith.constant 0 : index
    %6 = vector.load %arg0[%c0_3, %c0_4] : memref<64x8xf32, #tpu.memory_space<vmem>>, vector<64x8xf32>
    %cst = arith.constant dense<0.000000e+00> : vector<64x384xf32>
    %7 = tpu.matmul %6, %1, %cst {dimension_numbers = #tpu.dot_dimension_numbers<[1], [0], [0], [1], [0, 0, 1, 1], [], []>} : vector<64x8xf32>, vector<8x384xf32>, vector<64x384xf32> -> vector<64x384xf32>
    %cst_5 = arith.constant 0.000000e+00 : f32
    %8 = vector.broadcast %cst_5 : f32 to vector<8x128xf32>
    %9 = vector.extract_strided_slice %7 {offsets = [0, 0], sizes = [8, 384], strides = [1, 1]} : vector<64x384xf32> to vector<8x384xf32>
    %cst_6 = arith.constant dense<0.000000e+00> : vector<8x384xf32>
    %10 = tpu.matmul %8, %2, %cst_6 {dimension_numbers = #tpu.dot_dimension_numbers<[1], [0], [0], [1], [0, 0, 1, 1], [], []>} : vector<8x128xf32>, vector<128x384xf32>, vector<8x384xf32> -> vector<8x384xf32>
    %11 = arith.addf %10, %5 : vector<8x384xf32>
    %12 = vector.extract_strided_slice %9 {offsets = [0, 0], sizes = [8, 128], strides = [1, 1]} : vector<8x384xf32> to vector<8x128xf32>
    %13 = vector.extract_strided_slice %11 {offsets = [0, 0], sizes = [8, 128], strides = [1, 1]} : vector<8x384xf32> to vector<8x128xf32>
    %14 = arith.addf %12, %13 : vector<8x128xf32>
    %15 = arith.negf %14 : vector<8x128xf32>
    %16 = math.exp %15 : vector<8x128xf32>
    %cst_7 = arith.constant 1.000000e+00 : f32
    %17 = vector.broadcast %cst_7 : f32 to vector<8x128xf32>
    %18 = arith.addf %17, %16 : vector<8x128xf32>
    %19 = arith.divf %17, %18 : vector<8x128xf32>
    %20 = vector.extract_strided_slice %9 {offsets = [0, 128], sizes = [8, 128], strides = [1, 1]} : vector<8x384xf32> to vector<8x128xf32>
    %21 = vector.extract_strided_slice %11 {offsets = [0, 128], sizes = [8, 128], strides = [1, 1]} : vector<8x384xf32> to vector<8x128xf32>
    %22 = arith.addf %20, %21 : vector<8x128xf32>
    %23 = arith.negf %22 : vector<8x128xf32>
    %24 = math.exp %23 : vector<8x128xf32>
    %cst_8 = arith.constant 1.000000e+00 : f32
    %25 = vector.broadcast %cst_8 : f32 to vector<8x128xf32>
    %26 = arith.addf %25, %24 : vector<8x128xf32>
    %27 = arith.divf %25, %26 : vector<8x128xf32>
    %28 = vector.extract_strided_slice %9 {offsets = [0, 256], sizes = [8, 128], strides = [1, 1]} : vector<8x384xf32> to vector<8x128xf32>
    %29 = vector.extract_strided_slice %11 {offsets = [0, 256], sizes = [8, 128], strides = [1, 1]} : vector<8x384xf32> to vector<8x128xf32>
    %30 = arith.mulf %19, %29 : vector<8x128xf32>
    %31 = arith.addf %28, %30 : vector<8x128xf32>
    %32 = math.tanh %31 : vector<8x128xf32>
    %cst_9 = arith.constant 1.000000e+00 : f32
    %33 = vector.broadcast %cst_9 : f32 to vector<8x128xf32>
    %34 = arith.subf %33, %27 : vector<8x128xf32>
    %35 = arith.mulf %34, %32 : vector<8x128xf32>
    %36 = arith.mulf %27, %8 : vector<8x128xf32>
    %37 = arith.addf %35, %36 : vector<8x128xf32>
    %38 = vector.extract_strided_slice %7 {offsets = [8, 0], sizes = [8, 384], strides = [1, 1]} : vector<64x384xf32> to vector<8x384xf32>
    %cst_10 = arith.constant dense<0.000000e+00> : vector<8x384xf32>
    %39 = tpu.matmul %37, %2, %cst_10 {dimension_numbers = #tpu.dot_dimension_numbers<[1], [0], [0], [1], [0, 0, 1, 1], [], []>} : vector<8x128xf32>, vector<128x384xf32>, vector<8x384xf32> -> vector<8x384xf32>
    %40 = arith.addf %39, %5 : vector<8x384xf32>
    %41 = vector.extract_strided_slice %38 {offsets = [0, 0], sizes = [8, 128], strides = [1, 1]} : vector<8x384xf32> to vector<8x128xf32>
    %42 = vector.extract_strided_slice %40 {offsets = [0, 0], sizes = [8, 128], strides = [1, 1]} : vector<8x384xf32> to vector<8x128xf32>
    %43 = arith.addf %41, %42 : vector<8x128xf32>
    %44 = arith.negf %43 : vector<8x128xf32>
    %45 = math.exp %44 : vector<8x128xf32>
    %cst_11 = arith.constant 1.000000e+00 : f32
    %46 = vector.broadcast %cst_11 : f32 to vector<8x128xf32>
    %47 = arith.addf %46, %45 : vector<8x128xf32>
    %48 = arith.divf %46, %47 : vector<8x128xf32>
    %49 = vector.extract_strided_slice %38 {offsets = [0, 128], sizes = [8, 128], strides = [1, 1]} : vector<8x384xf32> to vector<8x128xf32>
    %50 = vector.extract_strided_slice %40 {offsets = [0, 128], sizes = [8, 128], strides = [1, 1]} : vector<8x384xf32> to vector<8x128xf32>
    %51 = arith.addf %49, %50 : vector<8x128xf32>
    %52 = arith.negf %51 : vector<8x128xf32>
    %53 = math.exp %52 : vector<8x128xf32>
    %cst_12 = arith.constant 1.000000e+00 : f32
    %54 = vector.broadcast %cst_12 : f32 to vector<8x128xf32>
    %55 = arith.addf %54, %53 : vector<8x128xf32>
    %56 = arith.divf %54, %55 : vector<8x128xf32>
    %57 = vector.extract_strided_slice %38 {offsets = [0, 256], sizes = [8, 128], strides = [1, 1]} : vector<8x384xf32> to vector<8x128xf32>
    %58 = vector.extract_strided_slice %40 {offsets = [0, 256], sizes = [8, 128], strides = [1, 1]} : vector<8x384xf32> to vector<8x128xf32>
    %59 = arith.mulf %48, %58 : vector<8x128xf32>
    %60 = arith.addf %57, %59 : vector<8x128xf32>
    %61 = math.tanh %60 : vector<8x128xf32>
    %cst_13 = arith.constant 1.000000e+00 : f32
    %62 = vector.broadcast %cst_13 : f32 to vector<8x128xf32>
    %63 = arith.subf %62, %56 : vector<8x128xf32>
    %64 = arith.mulf %63, %61 : vector<8x128xf32>
    %65 = arith.mulf %56, %37 : vector<8x128xf32>
    %66 = arith.addf %64, %65 : vector<8x128xf32>
    %67 = vector.extract_strided_slice %7 {offsets = [16, 0], sizes = [8, 384], strides = [1, 1]} : vector<64x384xf32> to vector<8x384xf32>
    %cst_14 = arith.constant dense<0.000000e+00> : vector<8x384xf32>
    %68 = tpu.matmul %66, %2, %cst_14 {dimension_numbers = #tpu.dot_dimension_numbers<[1], [0], [0], [1], [0, 0, 1, 1], [], []>} : vector<8x128xf32>, vector<128x384xf32>, vector<8x384xf32> -> vector<8x384xf32>
    %69 = arith.addf %68, %5 : vector<8x384xf32>
    %70 = vector.extract_strided_slice %67 {offsets = [0, 0], sizes = [8, 128], strides = [1, 1]} : vector<8x384xf32> to vector<8x128xf32>
    %71 = vector.extract_strided_slice %69 {offsets = [0, 0], sizes = [8, 128], strides = [1, 1]} : vector<8x384xf32> to vector<8x128xf32>
    %72 = arith.addf %70, %71 : vector<8x128xf32>
    %73 = arith.negf %72 : vector<8x128xf32>
    %74 = math.exp %73 : vector<8x128xf32>
    %cst_15 = arith.constant 1.000000e+00 : f32
    %75 = vector.broadcast %cst_15 : f32 to vector<8x128xf32>
    %76 = arith.addf %75, %74 : vector<8x128xf32>
    %77 = arith.divf %75, %76 : vector<8x128xf32>
    %78 = vector.extract_strided_slice %67 {offsets = [0, 128], sizes = [8, 128], strides = [1, 1]} : vector<8x384xf32> to vector<8x128xf32>
    %79 = vector.extract_strided_slice %69 {offsets = [0, 128], sizes = [8, 128], strides = [1, 1]} : vector<8x384xf32> to vector<8x128xf32>
    %80 = arith.addf %78, %79 : vector<8x128xf32>
    %81 = arith.negf %80 : vector<8x128xf32>
    %82 = math.exp %81 : vector<8x128xf32>
    %cst_16 = arith.constant 1.000000e+00 : f32
    %83 = vector.broadcast %cst_16 : f32 to vector<8x128xf32>
    %84 = arith.addf %83, %82 : vector<8x128xf32>
    %85 = arith.divf %83, %84 : vector<8x128xf32>
    %86 = vector.extract_strided_slice %67 {offsets = [0, 256], sizes = [8, 128], strides = [1, 1]} : vector<8x384xf32> to vector<8x128xf32>
    %87 = vector.extract_strided_slice %69 {offsets = [0, 256], sizes = [8, 128], strides = [1, 1]} : vector<8x384xf32> to vector<8x128xf32>
    %88 = arith.mulf %77, %87 : vector<8x128xf32>
    %89 = arith.addf %86, %88 : vector<8x128xf32>
    %90 = math.tanh %89 : vector<8x128xf32>
    %cst_17 = arith.constant 1.000000e+00 : f32
    %91 = vector.broadcast %cst_17 : f32 to vector<8x128xf32>
    %92 = arith.subf %91, %85 : vector<8x128xf32>
    %93 = arith.mulf %92, %90 : vector<8x128xf32>
    %94 = arith.mulf %85, %66 : vector<8x128xf32>
    %95 = arith.addf %93, %94 : vector<8x128xf32>
    %96 = vector.extract_strided_slice %7 {offsets = [24, 0], sizes = [8, 384], strides = [1, 1]} : vector<64x384xf32> to vector<8x384xf32>
    %cst_18 = arith.constant dense<0.000000e+00> : vector<8x384xf32>
    %97 = tpu.matmul %95, %2, %cst_18 {dimension_numbers = #tpu.dot_dimension_numbers<[1], [0], [0], [1], [0, 0, 1, 1], [], []>} : vector<8x128xf32>, vector<128x384xf32>, vector<8x384xf32> -> vector<8x384xf32>
    %98 = arith.addf %97, %5 : vector<8x384xf32>
    %99 = vector.extract_strided_slice %96 {offsets = [0, 0], sizes = [8, 128], strides = [1, 1]} : vector<8x384xf32> to vector<8x128xf32>
    %100 = vector.extract_strided_slice %98 {offsets = [0, 0], sizes = [8, 128], strides = [1, 1]} : vector<8x384xf32> to vector<8x128xf32>
    %101 = arith.addf %99, %100 : vector<8x128xf32>
    %102 = arith.negf %101 : vector<8x128xf32>
    %103 = math.exp %102 : vector<8x128xf32>
    %cst_19 = arith.constant 1.000000e+00 : f32
    %104 = vector.broadcast %cst_19 : f32 to vector<8x128xf32>
    %105 = arith.addf %104, %103 : vector<8x128xf32>
    %106 = arith.divf %104, %105 : vector<8x128xf32>
    %107 = vector.extract_strided_slice %96 {offsets = [0, 128], sizes = [8, 128], strides = [1, 1]} : vector<8x384xf32> to vector<8x128xf32>
    %108 = vector.extract_strided_slice %98 {offsets = [0, 128], sizes = [8, 128], strides = [1, 1]} : vector<8x384xf32> to vector<8x128xf32>
    %109 = arith.addf %107, %108 : vector<8x128xf32>
    %110 = arith.negf %109 : vector<8x128xf32>
    %111 = math.exp %110 : vector<8x128xf32>
    %cst_20 = arith.constant 1.000000e+00 : f32
    %112 = vector.broadcast %cst_20 : f32 to vector<8x128xf32>
    %113 = arith.addf %112, %111 : vector<8x128xf32>
    %114 = arith.divf %112, %113 : vector<8x128xf32>
    %115 = vector.extract_strided_slice %96 {offsets = [0, 256], sizes = [8, 128], strides = [1, 1]} : vector<8x384xf32> to vector<8x128xf32>
    %116 = vector.extract_strided_slice %98 {offsets = [0, 256], sizes = [8, 128], strides = [1, 1]} : vector<8x384xf32> to vector<8x128xf32>
    %117 = arith.mulf %106, %116 : vector<8x128xf32>
    %118 = arith.addf %115, %117 : vector<8x128xf32>
    %119 = math.tanh %118 : vector<8x128xf32>
    %cst_21 = arith.constant 1.000000e+00 : f32
    %120 = vector.broadcast %cst_21 : f32 to vector<8x128xf32>
    %121 = arith.subf %120, %114 : vector<8x128xf32>
    %122 = arith.mulf %121, %119 : vector<8x128xf32>
    %123 = arith.mulf %114, %95 : vector<8x128xf32>
    %124 = arith.addf %122, %123 : vector<8x128xf32>
    %125 = vector.extract_strided_slice %7 {offsets = [32, 0], sizes = [8, 384], strides = [1, 1]} : vector<64x384xf32> to vector<8x384xf32>
    %cst_22 = arith.constant dense<0.000000e+00> : vector<8x384xf32>
    %126 = tpu.matmul %124, %2, %cst_22 {dimension_numbers = #tpu.dot_dimension_numbers<[1], [0], [0], [1], [0, 0, 1, 1], [], []>} : vector<8x128xf32>, vector<128x384xf32>, vector<8x384xf32> -> vector<8x384xf32>
    %127 = arith.addf %126, %5 : vector<8x384xf32>
    %128 = vector.extract_strided_slice %125 {offsets = [0, 0], sizes = [8, 128], strides = [1, 1]} : vector<8x384xf32> to vector<8x128xf32>
    %129 = vector.extract_strided_slice %127 {offsets = [0, 0], sizes = [8, 128], strides = [1, 1]} : vector<8x384xf32> to vector<8x128xf32>
    %130 = arith.addf %128, %129 : vector<8x128xf32>
    %131 = arith.negf %130 : vector<8x128xf32>
    %132 = math.exp %131 : vector<8x128xf32>
    %cst_23 = arith.constant 1.000000e+00 : f32
    %133 = vector.broadcast %cst_23 : f32 to vector<8x128xf32>
    %134 = arith.addf %133, %132 : vector<8x128xf32>
    %135 = arith.divf %133, %134 : vector<8x128xf32>
    %136 = vector.extract_strided_slice %125 {offsets = [0, 128], sizes = [8, 128], strides = [1, 1]} : vector<8x384xf32> to vector<8x128xf32>
    %137 = vector.extract_strided_slice %127 {offsets = [0, 128], sizes = [8, 128], strides = [1, 1]} : vector<8x384xf32> to vector<8x128xf32>
    %138 = arith.addf %136, %137 : vector<8x128xf32>
    %139 = arith.negf %138 : vector<8x128xf32>
    %140 = math.exp %139 : vector<8x128xf32>
    %cst_24 = arith.constant 1.000000e+00 : f32
    %141 = vector.broadcast %cst_24 : f32 to vector<8x128xf32>
    %142 = arith.addf %141, %140 : vector<8x128xf32>
    %143 = arith.divf %141, %142 : vector<8x128xf32>
    %144 = vector.extract_strided_slice %125 {offsets = [0, 256], sizes = [8, 128], strides = [1, 1]} : vector<8x384xf32> to vector<8x128xf32>
    %145 = vector.extract_strided_slice %127 {offsets = [0, 256], sizes = [8, 128], strides = [1, 1]} : vector<8x384xf32> to vector<8x128xf32>
    %146 = arith.mulf %135, %145 : vector<8x128xf32>
    %147 = arith.addf %144, %146 : vector<8x128xf32>
    %148 = math.tanh %147 : vector<8x128xf32>
    %cst_25 = arith.constant 1.000000e+00 : f32
    %149 = vector.broadcast %cst_25 : f32 to vector<8x128xf32>
    %150 = arith.subf %149, %143 : vector<8x128xf32>
    %151 = arith.mulf %150, %148 : vector<8x128xf32>
    %152 = arith.mulf %143, %124 : vector<8x128xf32>
    %153 = arith.addf %151, %152 : vector<8x128xf32>
    %154 = vector.extract_strided_slice %7 {offsets = [40, 0], sizes = [8, 384], strides = [1, 1]} : vector<64x384xf32> to vector<8x384xf32>
    %cst_26 = arith.constant dense<0.000000e+00> : vector<8x384xf32>
    %155 = tpu.matmul %153, %2, %cst_26 {dimension_numbers = #tpu.dot_dimension_numbers<[1], [0], [0], [1], [0, 0, 1, 1], [], []>} : vector<8x128xf32>, vector<128x384xf32>, vector<8x384xf32> -> vector<8x384xf32>
    %156 = arith.addf %155, %5 : vector<8x384xf32>
    %157 = vector.extract_strided_slice %154 {offsets = [0, 0], sizes = [8, 128], strides = [1, 1]} : vector<8x384xf32> to vector<8x128xf32>
    %158 = vector.extract_strided_slice %156 {offsets = [0, 0], sizes = [8, 128], strides = [1, 1]} : vector<8x384xf32> to vector<8x128xf32>
    %159 = arith.addf %157, %158 : vector<8x128xf32>
    %160 = arith.negf %159 : vector<8x128xf32>
    %161 = math.exp %160 : vector<8x128xf32>
    %cst_27 = arith.constant 1.000000e+00 : f32
    %162 = vector.broadcast %cst_27 : f32 to vector<8x128xf32>
    %163 = arith.addf %162, %161 : vector<8x128xf32>
    %164 = arith.divf %162, %163 : vector<8x128xf32>
    %165 = vector.extract_strided_slice %154 {offsets = [0, 128], sizes = [8, 128], strides = [1, 1]} : vector<8x384xf32> to vector<8x128xf32>
    %166 = vector.extract_strided_slice %156 {offsets = [0, 128], sizes = [8, 128], strides = [1, 1]} : vector<8x384xf32> to vector<8x128xf32>
    %167 = arith.addf %165, %166 : vector<8x128xf32>
    %168 = arith.negf %167 : vector<8x128xf32>
    %169 = math.exp %168 : vector<8x128xf32>
    %cst_28 = arith.constant 1.000000e+00 : f32
    %170 = vector.broadcast %cst_28 : f32 to vector<8x128xf32>
    %171 = arith.addf %170, %169 : vector<8x128xf32>
    %172 = arith.divf %170, %171 : vector<8x128xf32>
    %173 = vector.extract_strided_slice %154 {offsets = [0, 256], sizes = [8, 128], strides = [1, 1]} : vector<8x384xf32> to vector<8x128xf32>
    %174 = vector.extract_strided_slice %156 {offsets = [0, 256], sizes = [8, 128], strides = [1, 1]} : vector<8x384xf32> to vector<8x128xf32>
    %175 = arith.mulf %164, %174 : vector<8x128xf32>
    %176 = arith.addf %173, %175 : vector<8x128xf32>
    %177 = math.tanh %176 : vector<8x128xf32>
    %cst_29 = arith.constant 1.000000e+00 : f32
    %178 = vector.broadcast %cst_29 : f32 to vector<8x128xf32>
    %179 = arith.subf %178, %172 : vector<8x128xf32>
    %180 = arith.mulf %179, %177 : vector<8x128xf32>
    %181 = arith.mulf %172, %153 : vector<8x128xf32>
    %182 = arith.addf %180, %181 : vector<8x128xf32>
    %183 = vector.extract_strided_slice %7 {offsets = [48, 0], sizes = [8, 384], strides = [1, 1]} : vector<64x384xf32> to vector<8x384xf32>
    %cst_30 = arith.constant dense<0.000000e+00> : vector<8x384xf32>
    %184 = tpu.matmul %182, %2, %cst_30 {dimension_numbers = #tpu.dot_dimension_numbers<[1], [0], [0], [1], [0, 0, 1, 1], [], []>} : vector<8x128xf32>, vector<128x384xf32>, vector<8x384xf32> -> vector<8x384xf32>
    %185 = arith.addf %184, %5 : vector<8x384xf32>
    %186 = vector.extract_strided_slice %183 {offsets = [0, 0], sizes = [8, 128], strides = [1, 1]} : vector<8x384xf32> to vector<8x128xf32>
    %187 = vector.extract_strided_slice %185 {offsets = [0, 0], sizes = [8, 128], strides = [1, 1]} : vector<8x384xf32> to vector<8x128xf32>
    %188 = arith.addf %186, %187 : vector<8x128xf32>
    %189 = arith.negf %188 : vector<8x128xf32>
    %190 = math.exp %189 : vector<8x128xf32>
    %cst_31 = arith.constant 1.000000e+00 : f32
    %191 = vector.broadcast %cst_31 : f32 to vector<8x128xf32>
    %192 = arith.addf %191, %190 : vector<8x128xf32>
    %193 = arith.divf %191, %192 : vector<8x128xf32>
    %194 = vector.extract_strided_slice %183 {offsets = [0, 128], sizes = [8, 128], strides = [1, 1]} : vector<8x384xf32> to vector<8x128xf32>
    %195 = vector.extract_strided_slice %185 {offsets = [0, 128], sizes = [8, 128], strides = [1, 1]} : vector<8x384xf32> to vector<8x128xf32>
    %196 = arith.addf %194, %195 : vector<8x128xf32>
    %197 = arith.negf %196 : vector<8x128xf32>
    %198 = math.exp %197 : vector<8x128xf32>
    %cst_32 = arith.constant 1.000000e+00 : f32
    %199 = vector.broadcast %cst_32 : f32 to vector<8x128xf32>
    %200 = arith.addf %199, %198 : vector<8x128xf32>
    %201 = arith.divf %199, %200 : vector<8x128xf32>
    %202 = vector.extract_strided_slice %183 {offsets = [0, 256], sizes = [8, 128], strides = [1, 1]} : vector<8x384xf32> to vector<8x128xf32>
    %203 = vector.extract_strided_slice %185 {offsets = [0, 256], sizes = [8, 128], strides = [1, 1]} : vector<8x384xf32> to vector<8x128xf32>
    %204 = arith.mulf %193, %203 : vector<8x128xf32>
    %205 = arith.addf %202, %204 : vector<8x128xf32>
    %206 = math.tanh %205 : vector<8x128xf32>
    %cst_33 = arith.constant 1.000000e+00 : f32
    %207 = vector.broadcast %cst_33 : f32 to vector<8x128xf32>
    %208 = arith.subf %207, %201 : vector<8x128xf32>
    %209 = arith.mulf %208, %206 : vector<8x128xf32>
    %210 = arith.mulf %201, %182 : vector<8x128xf32>
    %211 = arith.addf %209, %210 : vector<8x128xf32>
    %212 = vector.extract_strided_slice %7 {offsets = [56, 0], sizes = [8, 384], strides = [1, 1]} : vector<64x384xf32> to vector<8x384xf32>
    %cst_34 = arith.constant dense<0.000000e+00> : vector<8x384xf32>
    %213 = tpu.matmul %211, %2, %cst_34 {dimension_numbers = #tpu.dot_dimension_numbers<[1], [0], [0], [1], [0, 0, 1, 1], [], []>} : vector<8x128xf32>, vector<128x384xf32>, vector<8x384xf32> -> vector<8x384xf32>
    %214 = arith.addf %213, %5 : vector<8x384xf32>
    %215 = vector.extract_strided_slice %212 {offsets = [0, 0], sizes = [8, 128], strides = [1, 1]} : vector<8x384xf32> to vector<8x128xf32>
    %216 = vector.extract_strided_slice %214 {offsets = [0, 0], sizes = [8, 128], strides = [1, 1]} : vector<8x384xf32> to vector<8x128xf32>
    %217 = arith.addf %215, %216 : vector<8x128xf32>
    %218 = arith.negf %217 : vector<8x128xf32>
    %219 = math.exp %218 : vector<8x128xf32>
    %cst_35 = arith.constant 1.000000e+00 : f32
    %220 = vector.broadcast %cst_35 : f32 to vector<8x128xf32>
    %221 = arith.addf %220, %219 : vector<8x128xf32>
    %222 = arith.divf %220, %221 : vector<8x128xf32>
    %223 = vector.extract_strided_slice %212 {offsets = [0, 128], sizes = [8, 128], strides = [1, 1]} : vector<8x384xf32> to vector<8x128xf32>
    %224 = vector.extract_strided_slice %214 {offsets = [0, 128], sizes = [8, 128], strides = [1, 1]} : vector<8x384xf32> to vector<8x128xf32>
    %225 = arith.addf %223, %224 : vector<8x128xf32>
    %226 = arith.negf %225 : vector<8x128xf32>
    %227 = math.exp %226 : vector<8x128xf32>
    %cst_36 = arith.constant 1.000000e+00 : f32
    %228 = vector.broadcast %cst_36 : f32 to vector<8x128xf32>
    %229 = arith.addf %228, %227 : vector<8x128xf32>
    %230 = arith.divf %228, %229 : vector<8x128xf32>
    %231 = vector.extract_strided_slice %212 {offsets = [0, 256], sizes = [8, 128], strides = [1, 1]} : vector<8x384xf32> to vector<8x128xf32>
    %232 = vector.extract_strided_slice %214 {offsets = [0, 256], sizes = [8, 128], strides = [1, 1]} : vector<8x384xf32> to vector<8x128xf32>
    %233 = arith.mulf %222, %232 : vector<8x128xf32>
    %234 = arith.addf %231, %233 : vector<8x128xf32>
    %235 = math.tanh %234 : vector<8x128xf32>
    %cst_37 = arith.constant 1.000000e+00 : f32
    %236 = vector.broadcast %cst_37 : f32 to vector<8x128xf32>
    %237 = arith.subf %236, %230 : vector<8x128xf32>
    %238 = arith.mulf %237, %235 : vector<8x128xf32>
    %239 = arith.mulf %230, %211 : vector<8x128xf32>
    %240 = arith.addf %238, %239 : vector<8x128xf32>
    %c0_38 = arith.constant 0 : index
    %c0_39 = arith.constant 0 : index
    %241 = vector.load %arg7[%c0_38, %c0_39] : memref<131x32xf32, #tpu.memory_space<vmem>>, vector<131x32xf32>
    %242 = vector.extract_strided_slice %241 {offsets = [0, 0], sizes = [128, 32], strides = [1, 1]} : vector<131x32xf32> to vector<128x32xf32>
    %cst_40 = arith.constant dense<0.000000e+00> : vector<8x32xf32>
    %243 = tpu.matmul %240, %242, %cst_40 {dimension_numbers = #tpu.dot_dimension_numbers<[1], [0], [0], [1], [0, 0, 1, 1], [], []>} : vector<8x128xf32>, vector<128x32xf32>, vector<8x32xf32> -> vector<8x32xf32>
    %c0_41 = arith.constant 0 : index
    %c0_42 = arith.constant 0 : index
    %244 = vector.load %arg1[%c0_41, %c0_42] : memref<8x3xf32, #tpu.memory_space<vmem>>, vector<8x3xf32>
    %245 = vector.extract_strided_slice %241 {offsets = [128, 0], sizes = [3, 32], strides = [1, 1]} : vector<131x32xf32> to vector<3x32xf32>
    %cst_43 = arith.constant dense<0.000000e+00> : vector<8x32xf32>
    %246 = tpu.matmul %244, %245, %cst_43 {dimension_numbers = #tpu.dot_dimension_numbers<[1], [0], [0], [1], [0, 0, 1, 1], [], []>} : vector<8x3xf32>, vector<3x32xf32>, vector<8x32xf32> -> vector<8x32xf32>
    %247 = arith.addf %243, %246 : vector<8x32xf32>
    %cst_44 = arith.constant 0.000000e+00 : f32
    %248 = vector.broadcast %cst_44 : f32 to vector<8x32xf32>
    %249 = arith.maximumf %247, %248 : vector<8x32xf32>
    %c0_45 = arith.constant 0 : index
    %c0_46 = arith.constant 0 : index
    %250 = vector.load %arg8[%c0_45, %c0_46] : memref<33x1xf32, #tpu.memory_space<vmem>>, vector<33x1xf32>
    %251 = vector.extract_strided_slice %250 {offsets = [0, 0], sizes = [32, 1], strides = [1, 1]} : vector<33x1xf32> to vector<32x1xf32>
    %cst_47 = arith.constant dense<0.000000e+00> : vector<8x1xf32>
    %252 = tpu.matmul %249, %251, %cst_47 {dimension_numbers = #tpu.dot_dimension_numbers<[1], [0], [0], [1], [0, 0, 1, 1], [], []>} : vector<8x32xf32>, vector<32x1xf32>, vector<8x1xf32> -> vector<8x1xf32>
    %253 = vector.extract_strided_slice %250 {offsets = [32, 0], sizes = [1, 1], strides = [1, 1]} : vector<33x1xf32> to vector<1x1xf32>
    %254 = vector.broadcast %253 : vector<1x1xf32> to vector<8x1xf32>
    %255 = arith.addf %252, %254 : vector<8x1xf32>
    %c0_48 = arith.constant 0 : index
    %c0_49 = arith.constant 0 : index
    %256 = vector.load %arg9[%c0_48, %c0_49] : memref<130x128xf32, #tpu.memory_space<vmem>>, vector<130x128xf32>
    %257 = vector.extract_strided_slice %256 {offsets = [0, 0], sizes = [128, 128], strides = [1, 1]} : vector<130x128xf32> to vector<128x128xf32>
    %cst_50 = arith.constant dense<0.000000e+00> : vector<8x128xf32>
    %258 = tpu.matmul %240, %257, %cst_50 {dimension_numbers = #tpu.dot_dimension_numbers<[1], [0], [0], [1], [0, 0, 1, 1], [], []>} : vector<8x128xf32>, vector<128x128xf32>, vector<8x128xf32> -> vector<8x128xf32>
    %259 = vector.extract_strided_slice %256 {offsets = [128, 0], sizes = [1, 128], strides = [1, 1]} : vector<130x128xf32> to vector<1x128xf32>
    %260 = vector.broadcast %255 : vector<8x1xf32> to vector<8x128xf32>
    %261 = vector.broadcast %259 : vector<1x128xf32> to vector<8x128xf32>
    %262 = arith.mulf %260, %261 : vector<8x128xf32>
    %263 = arith.addf %258, %262 : vector<8x128xf32>
    %264 = vector.extract_strided_slice %256 {offsets = [129, 0], sizes = [1, 128], strides = [1, 1]} : vector<130x128xf32> to vector<1x128xf32>
    %265 = vector.broadcast %264 : vector<1x128xf32> to vector<8x128xf32>
    %266 = arith.addf %263, %265 : vector<8x128xf32>
    %cst_51 = arith.constant 0.000000e+00 : f32
    %267 = vector.broadcast %cst_51 : f32 to vector<8x128xf32>
    %268 = arith.maximumf %266, %267 : vector<8x128xf32>
    %c0_52 = arith.constant 0 : index
    %c0_53 = arith.constant 0 : index
    %269 = vector.load %arg10[%c0_52, %c0_53] : memref<133x8xf32, #tpu.memory_space<vmem>>, vector<133x8xf32>
    %270 = vector.extract_strided_slice %269 {offsets = [0, 0], sizes = [128, 8], strides = [1, 1]} : vector<133x8xf32> to vector<128x8xf32>
    %cst_54 = arith.constant dense<0.000000e+00> : vector<8x8xf32>
    %271 = tpu.matmul %268, %270, %cst_54 {dimension_numbers = #tpu.dot_dimension_numbers<[1], [0], [0], [1], [0, 0, 1, 1], [], []>} : vector<8x128xf32>, vector<128x8xf32>, vector<8x8xf32> -> vector<8x8xf32>
    %272 = vector.extract_strided_slice %269 {offsets = [128, 0], sizes = [1, 8], strides = [1, 1]} : vector<133x8xf32> to vector<1x8xf32>
    %273 = vector.broadcast %272 : vector<1x8xf32> to vector<8x8xf32>
    %274 = arith.addf %271, %273 : vector<8x8xf32>
    %275 = vector.extract_strided_slice %274 {offsets = [0, 0], sizes = [8, 4], strides = [1, 1]} : vector<8x8xf32> to vector<8x4xf32>
    %276 = math.tanh %275 : vector<8x4xf32>
    %277 = vector.extract_strided_slice %274 {offsets = [0, 4], sizes = [8, 4], strides = [1, 1]} : vector<8x8xf32> to vector<8x4xf32>
    %cst_55 = arith.constant dense<0.000000e+00> : vector<8xf32>
    %278 = vector.multi_reduction <add>, %276, %cst_55 [1] : vector<8x4xf32> to vector<8xf32>
    %279 = vector.shape_cast %278 : vector<8xf32> to vector<8x1xf32>
    %280 = math.exp %279 : vector<8x1xf32>
    %281 = vector.extract_strided_slice %269 {offsets = [129, 0], sizes = [4, 4], strides = [1, 1]} : vector<133x8xf32> to vector<4x4xf32>
    %cst_56 = arith.constant dense<0.000000e+00> : vector<8x4xf32>
    %282 = tpu.matmul %276, %281, %cst_56 {dimension_numbers = #tpu.dot_dimension_numbers<[1], [0], [0], [1], [0, 0, 1, 1], [], []>} : vector<8x4xf32>, vector<4x4xf32>, vector<8x4xf32> -> vector<8x4xf32>
    %283 = math.exp %282 : vector<8x4xf32>
    %284 = arith.mulf %277, %283 : vector<8x4xf32>
    %cst_57 = arith.constant dense<0.000000e+00> : vector<8xf32>
    %285 = vector.multi_reduction <add>, %284, %cst_57 [1] : vector<8x4xf32> to vector<8xf32>
    %286 = vector.shape_cast %285 : vector<8xf32> to vector<8x1xf32>
    %c0_58 = arith.constant 0 : index
    %c0_59 = arith.constant 0 : index
    %287 = vector.load %arg2[%c0_58, %c0_59] : memref<8x16xf32, #tpu.memory_space<vmem>>, vector<8x16xf32>
    %288 = tpu.iota {dimensions = array<i32: 1>} : vector<8x16xi32>
    %c10_i32 = arith.constant 10 : i32
    %289 = vector.broadcast %c10_i32 : i32 to vector<8x16xi32>
    %290 = arith.cmpi slt, %288, %289 : vector<8x16xi32>
    %291 = arith.extui %290 : vector<8x16xi1> to vector<8x16xi32>
    %292 = arith.sitofp %291 : vector<8x16xi32> to vector<8x16xf32>
    %293 = arith.mulf %287, %292 : vector<8x16xf32>
    %cst_60 = arith.constant dense<0.000000e+00> : vector<8xf32>
    %294 = vector.multi_reduction <add>, %293, %cst_60 [1] : vector<8x16xf32> to vector<8xf32>
    %295 = vector.shape_cast %294 : vector<8xf32> to vector<8x1xf32>
    %cst_61 = arith.constant 1.000000e-01 : f32
    %296 = vector.broadcast %cst_61 : f32 to vector<8x1xf32>
    %297 = arith.mulf %295, %296 : vector<8x1xf32>
    %298 = vector.broadcast %297 : vector<8x1xf32> to vector<8x16xf32>
    %299 = arith.subf %287, %298 : vector<8x16xf32>
    %300 = arith.mulf %299, %292 : vector<8x16xf32>
    %301 = arith.mulf %300, %300 : vector<8x16xf32>
    %cst_62 = arith.constant dense<0.000000e+00> : vector<8xf32>
    %302 = vector.multi_reduction <add>, %301, %cst_62 [1] : vector<8x16xf32> to vector<8xf32>
    %303 = vector.shape_cast %302 : vector<8xf32> to vector<8x1xf32>
    %cst_63 = arith.constant 0.111111112 : f32
    %304 = vector.broadcast %cst_63 : f32 to vector<8x1xf32>
    %305 = arith.mulf %303, %304 : vector<8x1xf32>
    %306 = math.sqrt %305 : vector<8x1xf32>
    %307 = arith.mulf %280, %297 : vector<8x1xf32>
    %308 = arith.addf %307, %286 : vector<8x1xf32>
    %309 = arith.mulf %280, %306 : vector<8x1xf32>
    %c0_64 = arith.constant 0 : index
    %c0_65 = arith.constant 0 : index
    %c0_66 = arith.constant 0 : index
    %310 = vector.load %arg3[%c0_64, %c0_65, %c0_66] : memref<2x128x16xf32, #tpu.memory_space<vmem>>, vector<1x128x16xf32>
    %311 = vector.shape_cast %310 : vector<1x128x16xf32> to vector<128x16xf32>
    %c1 = arith.constant 1 : index
    %c0_67 = arith.constant 0 : index
    %c0_68 = arith.constant 0 : index
    %312 = vector.load %arg3[%c1, %c0_67, %c0_68] : memref<2x128x16xf32, #tpu.memory_space<vmem>>, vector<1x128x16xf32>
    %313 = vector.shape_cast %312 : vector<1x128x16xf32> to vector<128x16xf32>
    %c0_69 = arith.constant 0 : index
    %c0_70 = arith.constant 0 : index
    %c0_71 = arith.constant 0 : index
    %314 = vector.load %arg11[%c0_69, %c0_70, %c0_71] : memref<4x17x32xf32, #tpu.memory_space<vmem>>, vector<1x17x32xf32>
    %315 = vector.shape_cast %314 : vector<1x17x32xf32> to vector<17x32xf32>
    %316 = vector.extract_strided_slice %315 {offsets = [0, 0], sizes = [16, 32], strides = [1, 1]} : vector<17x32xf32> to vector<16x32xf32>
    %cst_72 = arith.constant dense<0.000000e+00> : vector<128x32xf32>
    %317 = tpu.matmul %311, %316, %cst_72 {dimension_numbers = #tpu.dot_dimension_numbers<[1], [0], [0], [1], [0, 0, 1, 1], [], []>} : vector<128x16xf32>, vector<16x32xf32>, vector<128x32xf32> -> vector<128x32xf32>
    %318 = vector.extract_strided_slice %315 {offsets = [16, 0], sizes = [1, 32], strides = [1, 1]} : vector<17x32xf32> to vector<1x32xf32>
    %319 = vector.broadcast %318 : vector<1x32xf32> to vector<128x32xf32>
    %320 = arith.addf %317, %319 : vector<128x32xf32>
    %cst_73 = arith.constant 0.000000e+00 : f32
    %321 = vector.broadcast %cst_73 : f32 to vector<128x32xf32>
    %322 = arith.maximumf %320, %321 : vector<128x32xf32>
    %c0_74 = arith.constant 0 : index
    %c0_75 = arith.constant 0 : index
    %c0_76 = arith.constant 0 : index
    %323 = vector.load %arg12[%c0_74, %c0_75, %c0_76] : memref<8x33x16xf32, #tpu.memory_space<vmem>>, vector<1x33x16xf32>
    %324 = vector.shape_cast %323 : vector<1x33x16xf32> to vector<33x16xf32>
    %c4 = arith.constant 4 : index
    %c0_77 = arith.constant 0 : index
    %c0_78 = arith.constant 0 : index
    %325 = vector.load %arg12[%c4, %c0_77, %c0_78] : memref<8x33x16xf32, #tpu.memory_space<vmem>>, vector<1x33x16xf32>
    %326 = vector.shape_cast %325 : vector<1x33x16xf32> to vector<33x16xf32>
    %327 = vector.extract_strided_slice %324 {offsets = [0, 0], sizes = [32, 16], strides = [1, 1]} : vector<33x16xf32> to vector<32x16xf32>
    %cst_79 = arith.constant dense<0.000000e+00> : vector<128x16xf32>
    %328 = tpu.matmul %322, %327, %cst_79 {dimension_numbers = #tpu.dot_dimension_numbers<[1], [0], [0], [1], [0, 0, 1, 1], [], []>} : vector<128x32xf32>, vector<32x16xf32>, vector<128x16xf32> -> vector<128x16xf32>
    %329 = vector.extract_strided_slice %324 {offsets = [32, 0], sizes = [1, 16], strides = [1, 1]} : vector<33x16xf32> to vector<1x16xf32>
    %330 = vector.broadcast %329 : vector<1x16xf32> to vector<128x16xf32>
    %331 = arith.addf %328, %330 : vector<128x16xf32>
    %332 = math.tanh %331 : vector<128x16xf32>
    %333 = math.exp %332 : vector<128x16xf32>
    %334 = vector.extract_strided_slice %326 {offsets = [0, 0], sizes = [32, 16], strides = [1, 1]} : vector<33x16xf32> to vector<32x16xf32>
    %cst_80 = arith.constant dense<0.000000e+00> : vector<128x16xf32>
    %335 = tpu.matmul %322, %334, %cst_80 {dimension_numbers = #tpu.dot_dimension_numbers<[1], [0], [0], [1], [0, 0, 1, 1], [], []>} : vector<128x32xf32>, vector<32x16xf32>, vector<128x16xf32> -> vector<128x16xf32>
    %336 = vector.extract_strided_slice %326 {offsets = [32, 0], sizes = [1, 16], strides = [1, 1]} : vector<33x16xf32> to vector<1x16xf32>
    %337 = vector.broadcast %336 : vector<1x16xf32> to vector<128x16xf32>
    %338 = arith.addf %335, %337 : vector<128x16xf32>
    %339 = arith.mulf %313, %333 : vector<128x16xf32>
    %340 = arith.addf %339, %338 : vector<128x16xf32>
    %c1_81 = arith.constant 1 : index
    %c0_82 = arith.constant 0 : index
    %c0_83 = arith.constant 0 : index
    %341 = vector.load %arg11[%c1_81, %c0_82, %c0_83] : memref<4x17x32xf32, #tpu.memory_space<vmem>>, vector<1x17x32xf32>
    %342 = vector.shape_cast %341 : vector<1x17x32xf32> to vector<17x32xf32>
    %343 = vector.extract_strided_slice %342 {offsets = [0, 0], sizes = [16, 32], strides = [1, 1]} : vector<17x32xf32> to vector<16x32xf32>
    %cst_84 = arith.constant dense<0.000000e+00> : vector<128x32xf32>
    %344 = tpu.matmul %340, %343, %cst_84 {dimension_numbers = #tpu.dot_dimension_numbers<[1], [0], [0], [1], [0, 0, 1, 1], [], []>} : vector<128x16xf32>, vector<16x32xf32>, vector<128x32xf32> -> vector<128x32xf32>
    %345 = vector.extract_strided_slice %342 {offsets = [16, 0], sizes = [1, 32], strides = [1, 1]} : vector<17x32xf32> to vector<1x32xf32>
    %346 = vector.broadcast %345 : vector<1x32xf32> to vector<128x32xf32>
    %347 = arith.addf %344, %346 : vector<128x32xf32>
    %cst_85 = arith.constant 0.000000e+00 : f32
    %348 = vector.broadcast %cst_85 : f32 to vector<128x32xf32>
    %349 = arith.maximumf %347, %348 : vector<128x32xf32>
    %c1_86 = arith.constant 1 : index
    %c0_87 = arith.constant 0 : index
    %c0_88 = arith.constant 0 : index
    %350 = vector.load %arg12[%c1_86, %c0_87, %c0_88] : memref<8x33x16xf32, #tpu.memory_space<vmem>>, vector<1x33x16xf32>
    %351 = vector.shape_cast %350 : vector<1x33x16xf32> to vector<33x16xf32>
    %c5 = arith.constant 5 : index
    %c0_89 = arith.constant 0 : index
    %c0_90 = arith.constant 0 : index
    %352 = vector.load %arg12[%c5, %c0_89, %c0_90] : memref<8x33x16xf32, #tpu.memory_space<vmem>>, vector<1x33x16xf32>
    %353 = vector.shape_cast %352 : vector<1x33x16xf32> to vector<33x16xf32>
    %354 = vector.extract_strided_slice %351 {offsets = [0, 0], sizes = [32, 16], strides = [1, 1]} : vector<33x16xf32> to vector<32x16xf32>
    %cst_91 = arith.constant dense<0.000000e+00> : vector<128x16xf32>
    %355 = tpu.matmul %349, %354, %cst_91 {dimension_numbers = #tpu.dot_dimension_numbers<[1], [0], [0], [1], [0, 0, 1, 1], [], []>} : vector<128x32xf32>, vector<32x16xf32>, vector<128x16xf32> -> vector<128x16xf32>
    %356 = vector.extract_strided_slice %351 {offsets = [32, 0], sizes = [1, 16], strides = [1, 1]} : vector<33x16xf32> to vector<1x16xf32>
    %357 = vector.broadcast %356 : vector<1x16xf32> to vector<128x16xf32>
    %358 = arith.addf %355, %357 : vector<128x16xf32>
    %359 = math.tanh %358 : vector<128x16xf32>
    %360 = math.exp %359 : vector<128x16xf32>
    %361 = vector.extract_strided_slice %353 {offsets = [0, 0], sizes = [32, 16], strides = [1, 1]} : vector<33x16xf32> to vector<32x16xf32>
    %cst_92 = arith.constant dense<0.000000e+00> : vector<128x16xf32>
    %362 = tpu.matmul %349, %361, %cst_92 {dimension_numbers = #tpu.dot_dimension_numbers<[1], [0], [0], [1], [0, 0, 1, 1], [], []>} : vector<128x32xf32>, vector<32x16xf32>, vector<128x16xf32> -> vector<128x16xf32>
    %363 = vector.extract_strided_slice %353 {offsets = [32, 0], sizes = [1, 16], strides = [1, 1]} : vector<33x16xf32> to vector<1x16xf32>
    %364 = vector.broadcast %363 : vector<1x16xf32> to vector<128x16xf32>
    %365 = arith.addf %362, %364 : vector<128x16xf32>
    %366 = arith.mulf %311, %360 : vector<128x16xf32>
    %367 = arith.addf %366, %365 : vector<128x16xf32>
    %c2 = arith.constant 2 : index
    %c0_93 = arith.constant 0 : index
    %c0_94 = arith.constant 0 : index
    %368 = vector.load %arg11[%c2, %c0_93, %c0_94] : memref<4x17x32xf32, #tpu.memory_space<vmem>>, vector<1x17x32xf32>
    %369 = vector.shape_cast %368 : vector<1x17x32xf32> to vector<17x32xf32>
    %370 = vector.extract_strided_slice %369 {offsets = [0, 0], sizes = [16, 32], strides = [1, 1]} : vector<17x32xf32> to vector<16x32xf32>
    %cst_95 = arith.constant dense<0.000000e+00> : vector<128x32xf32>
    %371 = tpu.matmul %367, %370, %cst_95 {dimension_numbers = #tpu.dot_dimension_numbers<[1], [0], [0], [1], [0, 0, 1, 1], [], []>} : vector<128x16xf32>, vector<16x32xf32>, vector<128x32xf32> -> vector<128x32xf32>
    %372 = vector.extract_strided_slice %369 {offsets = [16, 0], sizes = [1, 32], strides = [1, 1]} : vector<17x32xf32> to vector<1x32xf32>
    %373 = vector.broadcast %372 : vector<1x32xf32> to vector<128x32xf32>
    %374 = arith.addf %371, %373 : vector<128x32xf32>
    %cst_96 = arith.constant 0.000000e+00 : f32
    %375 = vector.broadcast %cst_96 : f32 to vector<128x32xf32>
    %376 = arith.maximumf %374, %375 : vector<128x32xf32>
    %c2_97 = arith.constant 2 : index
    %c0_98 = arith.constant 0 : index
    %c0_99 = arith.constant 0 : index
    %377 = vector.load %arg12[%c2_97, %c0_98, %c0_99] : memref<8x33x16xf32, #tpu.memory_space<vmem>>, vector<1x33x16xf32>
    %378 = vector.shape_cast %377 : vector<1x33x16xf32> to vector<33x16xf32>
    %c6 = arith.constant 6 : index
    %c0_100 = arith.constant 0 : index
    %c0_101 = arith.constant 0 : index
    %379 = vector.load %arg12[%c6, %c0_100, %c0_101] : memref<8x33x16xf32, #tpu.memory_space<vmem>>, vector<1x33x16xf32>
    %380 = vector.shape_cast %379 : vector<1x33x16xf32> to vector<33x16xf32>
    %381 = vector.extract_strided_slice %378 {offsets = [0, 0], sizes = [32, 16], strides = [1, 1]} : vector<33x16xf32> to vector<32x16xf32>
    %cst_102 = arith.constant dense<0.000000e+00> : vector<128x16xf32>
    %382 = tpu.matmul %376, %381, %cst_102 {dimension_numbers = #tpu.dot_dimension_numbers<[1], [0], [0], [1], [0, 0, 1, 1], [], []>} : vector<128x32xf32>, vector<32x16xf32>, vector<128x16xf32> -> vector<128x16xf32>
    %383 = vector.extract_strided_slice %378 {offsets = [32, 0], sizes = [1, 16], strides = [1, 1]} : vector<33x16xf32> to vector<1x16xf32>
    %384 = vector.broadcast %383 : vector<1x16xf32> to vector<128x16xf32>
    %385 = arith.addf %382, %384 : vector<128x16xf32>
    %386 = math.tanh %385 : vector<128x16xf32>
    %387 = math.exp %386 : vector<128x16xf32>
    %388 = vector.extract_strided_slice %380 {offsets = [0, 0], sizes = [32, 16], strides = [1, 1]} : vector<33x16xf32> to vector<32x16xf32>
    %cst_103 = arith.constant dense<0.000000e+00> : vector<128x16xf32>
    %389 = tpu.matmul %376, %388, %cst_103 {dimension_numbers = #tpu.dot_dimension_numbers<[1], [0], [0], [1], [0, 0, 1, 1], [], []>} : vector<128x32xf32>, vector<32x16xf32>, vector<128x16xf32> -> vector<128x16xf32>
    %390 = vector.extract_strided_slice %380 {offsets = [32, 0], sizes = [1, 16], strides = [1, 1]} : vector<33x16xf32> to vector<1x16xf32>
    %391 = vector.broadcast %390 : vector<1x16xf32> to vector<128x16xf32>
    %392 = arith.addf %389, %391 : vector<128x16xf32>
    %393 = arith.mulf %340, %387 : vector<128x16xf32>
    %394 = arith.addf %393, %392 : vector<128x16xf32>
    %c3 = arith.constant 3 : index
    %c0_104 = arith.constant 0 : index
    %c0_105 = arith.constant 0 : index
    %395 = vector.load %arg11[%c3, %c0_104, %c0_105] : memref<4x17x32xf32, #tpu.memory_space<vmem>>, vector<1x17x32xf32>
    %396 = vector.shape_cast %395 : vector<1x17x32xf32> to vector<17x32xf32>
    %397 = vector.extract_strided_slice %396 {offsets = [0, 0], sizes = [16, 32], strides = [1, 1]} : vector<17x32xf32> to vector<16x32xf32>
    %cst_106 = arith.constant dense<0.000000e+00> : vector<128x32xf32>
    %398 = tpu.matmul %394, %397, %cst_106 {dimension_numbers = #tpu.dot_dimension_numbers<[1], [0], [0], [1], [0, 0, 1, 1], [], []>} : vector<128x16xf32>, vector<16x32xf32>, vector<128x32xf32> -> vector<128x32xf32>
    %399 = vector.extract_strided_slice %396 {offsets = [16, 0], sizes = [1, 32], strides = [1, 1]} : vector<17x32xf32> to vector<1x32xf32>
    %400 = vector.broadcast %399 : vector<1x32xf32> to vector<128x32xf32>
    %401 = arith.addf %398, %400 : vector<128x32xf32>
    %cst_107 = arith.constant 0.000000e+00 : f32
    %402 = vector.broadcast %cst_107 : f32 to vector<128x32xf32>
    %403 = arith.maximumf %401, %402 : vector<128x32xf32>
    %c3_108 = arith.constant 3 : index
    %c0_109 = arith.constant 0 : index
    %c0_110 = arith.constant 0 : index
    %404 = vector.load %arg12[%c3_108, %c0_109, %c0_110] : memref<8x33x16xf32, #tpu.memory_space<vmem>>, vector<1x33x16xf32>
    %405 = vector.shape_cast %404 : vector<1x33x16xf32> to vector<33x16xf32>
    %c7 = arith.constant 7 : index
    %c0_111 = arith.constant 0 : index
    %c0_112 = arith.constant 0 : index
    %406 = vector.load %arg12[%c7, %c0_111, %c0_112] : memref<8x33x16xf32, #tpu.memory_space<vmem>>, vector<1x33x16xf32>
    %407 = vector.shape_cast %406 : vector<1x33x16xf32> to vector<33x16xf32>
    %408 = vector.extract_strided_slice %405 {offsets = [0, 0], sizes = [32, 16], strides = [1, 1]} : vector<33x16xf32> to vector<32x16xf32>
    %cst_113 = arith.constant dense<0.000000e+00> : vector<128x16xf32>
    %409 = tpu.matmul %403, %408, %cst_113 {dimension_numbers = #tpu.dot_dimension_numbers<[1], [0], [0], [1], [0, 0, 1, 1], [], []>} : vector<128x32xf32>, vector<32x16xf32>, vector<128x16xf32> -> vector<128x16xf32>
    %410 = vector.extract_strided_slice %405 {offsets = [32, 0], sizes = [1, 16], strides = [1, 1]} : vector<33x16xf32> to vector<1x16xf32>
    %411 = vector.broadcast %410 : vector<1x16xf32> to vector<128x16xf32>
    %412 = arith.addf %409, %411 : vector<128x16xf32>
    %413 = math.tanh %412 : vector<128x16xf32>
    %414 = math.exp %413 : vector<128x16xf32>
    %415 = vector.extract_strided_slice %407 {offsets = [0, 0], sizes = [32, 16], strides = [1, 1]} : vector<33x16xf32> to vector<32x16xf32>
    %cst_114 = arith.constant dense<0.000000e+00> : vector<128x16xf32>
    %416 = tpu.matmul %403, %415, %cst_114 {dimension_numbers = #tpu.dot_dimension_numbers<[1], [0], [0], [1], [0, 0, 1, 1], [], []>} : vector<128x32xf32>, vector<32x16xf32>, vector<128x16xf32> -> vector<128x16xf32>
    %417 = vector.extract_strided_slice %407 {offsets = [32, 0], sizes = [1, 16], strides = [1, 1]} : vector<33x16xf32> to vector<1x16xf32>
    %418 = vector.broadcast %417 : vector<1x16xf32> to vector<128x16xf32>
    %419 = arith.addf %416, %418 : vector<128x16xf32>
    %420 = arith.mulf %367, %414 : vector<128x16xf32>
    %421 = arith.addf %420, %419 : vector<128x16xf32>
    %422 = tpu.concatenate %421, %394 in 1 : vector<128x16xf32>, vector<128x16xf32> -> vector<128x32xf32>
    %423 = arith.mulf %422, %422 : vector<128x32xf32>
    %424 = tpu.concatenate %422, %423 in 1 : vector<128x32xf32>, vector<128x32xf32> -> vector<128x64xf32>
    %c0_115 = arith.constant 0 : index
    %c0_116 = arith.constant 0 : index
    %425 = vector.load %arg4[%c0_115, %c0_116] : memref<8x128xf32, #tpu.memory_space<vmem>>, vector<8x128xf32>
    %cst_117 = arith.constant dense<0.000000e+00> : vector<8x64xf32>
    %426 = tpu.matmul %425, %424, %cst_117 {dimension_numbers = #tpu.dot_dimension_numbers<[1], [0], [0], [1], [0, 0, 1, 1], [], []>} : vector<8x128xf32>, vector<128x64xf32>, vector<8x64xf32> -> vector<8x64xf32>
    %427 = vector.extract_strided_slice %426 {offsets = [0, 0], sizes = [8, 32], strides = [1, 1]} : vector<8x64xf32> to vector<8x32xf32>
    %428 = vector.extract_strided_slice %426 {offsets = [0, 32], sizes = [8, 32], strides = [1, 1]} : vector<8x64xf32> to vector<8x32xf32>
    %cst_118 = arith.constant 1.000000e-01 : f32
    %429 = vector.broadcast %cst_118 : f32 to vector<8x32xf32>
    %430 = arith.mulf %427, %429 : vector<8x32xf32>
    %cst_119 = arith.constant 1.000000e+01 : f32
    %431 = vector.broadcast %cst_119 : f32 to vector<8x32xf32>
    %432 = arith.mulf %431, %430 : vector<8x32xf32>
    %433 = arith.mulf %432, %430 : vector<8x32xf32>
    %434 = arith.subf %428, %433 : vector<8x32xf32>
    %cst_120 = arith.constant 0.000000e+00 : f32
    %435 = vector.broadcast %cst_120 : f32 to vector<8x32xf32>
    %436 = arith.maximumf %434, %435 : vector<8x32xf32>
    %cst_121 = arith.constant 0.111111112 : f32
    %437 = vector.broadcast %cst_121 : f32 to vector<8x32xf32>
    %438 = arith.mulf %436, %437 : vector<8x32xf32>
    %439 = math.sqrt %438 : vector<8x32xf32>
    %cst_122 = arith.constant 0.000000e+00 : f32
    %440 = vector.broadcast %cst_122 : f32 to vector<8x128xf32>
    %c0_123 = arith.constant 0 : index
    %c0_124 = arith.constant 0 : index
    %441 = vector.load %arg13[%c0_123, %c0_124] : memref<8x128xf32, #tpu.memory_space<vmem>>, vector<8x128xf32>
    tpu.vector_store %arg13[%c0_123, %c0_124], %440 {strides = array<i32>} : memref<8x128xf32, #tpu.memory_space<vmem>>, vector<8x128xf32>,
    %c0_125 = arith.constant 0 : index
    %c0_126 = arith.constant 0 : index
    %442 = vector.load %arg13[%c0_125, %c0_126] : memref<8x128xf32, #tpu.memory_space<vmem>>, vector<8x32xf32>
    tpu.vector_store %arg13[%c0_125, %c0_126], %430 {strides = array<i32>} : memref<8x128xf32, #tpu.memory_space<vmem>>, vector<8x32xf32>,
    %c0_127 = arith.constant 0 : index
    %c32 = arith.constant 32 : index
    %443 = vector.load %arg13[%c0_127, %c32] : memref<8x128xf32, #tpu.memory_space<vmem>>, vector<8x32xf32>
    tpu.vector_store %arg13[%c0_127, %c32], %439 {strides = array<i32>} : memref<8x128xf32, #tpu.memory_space<vmem>>, vector<8x32xf32>,
    %444 = tpu.concatenate %255, %308, %309 in 1 : vector<8x1xf32>, vector<8x1xf32>, vector<8x1xf32> -> vector<8x3xf32>
    %c0_128 = arith.constant 0 : index
    %c64 = arith.constant 64 : index
    %445 = vector.load %arg13[%c0_128, %c64] : memref<8x128xf32, #tpu.memory_space<vmem>>, vector<8x3xf32>
    tpu.vector_store %arg13[%c0_128, %c64], %444 {strides = array<i32>} : memref<8x128xf32, #tpu.memory_space<vmem>>, vector<8x3xf32>,
    return
  }
}

</mosaic_0001>

<llo_original>
// kernel: ben_forward.1
$region0: #{ben_forward.1}
  #allocation0 [shape = 'u32[]', space=smem, size = 0x4, offset = 0x4, fixed_abs, tag = 'smem constant byte address 0x4 - core index']
  #allocation1 [shape = 'u32[144,128]{1,0:T(1,128)}', space=vmem, size = 0x12000, scoped, tag = 'internal scratch']
  %s0 = inlined_call_operand.vmem [shape: f32[64,8], index: 0, kind: input, shape index: {}]
  %s1 = inlined_call_operand.vmem [shape: f32[8,3], index: 1, kind: input, shape index: {}]
  %s2 = inlined_call_operand.vmem [shape: f32[8,16], index: 2, kind: input, shape index: {}]
  %s3 = inlined_call_operand.vmem [shape: f32[2,128,16], index: 3, kind: input, shape index: {}]
  %s4 = inlined_call_operand.vmem [shape: f32[8,128], index: 4, kind: input, shape index: {}]
  %s5 = inlined_call_operand.vmem [shape: f32[136,384], index: 5, kind: input, shape index: {}]
  %s6 = inlined_call_operand.vmem [shape: f32[1,384], index: 6, kind: input, shape index: {}]
  %s7 = inlined_call_operand.vmem [shape: f32[131,32], index: 7, kind: input, shape index: {}]
  %s8 = inlined_call_operand.vmem [shape: f32[33,1], index: 8, kind: input, shape index: {}]
  %s9 = inlined_call_operand.vmem [shape: f32[130,128], index: 9, kind: input, shape index: {}]
  %s10 = inlined_call_operand.vmem [shape: f32[133,8], index: 10, kind: input, shape index: {}]
  %s11 = inlined_call_operand.vmem [shape: f32[4,17,32], index: 11, kind: input, shape index: {}]
  %s12 = inlined_call_operand.vmem [shape: f32[8,33,16], index: 12, kind: input, shape index: {}]
  %s13 = inlined_call_operand.vmem [shape: f32[8,128], index: 13, kind: output, shape index: {}]
  %s14 = sld [smem:[#allocation0]]
  $region62: #{ben_forward.1} parent=0
    _
  %s16 = ssub.s32 1, %s14
  %s17 = scalar_select 0, %s16, %s14
  // Predicated region
  $region2: #{ben_forward.1} parent=0 // pred_check
    _
  $region3: #{ben_forward.1} parent=0 // pred_check_branch
    %19 = sbr.rel (0) target = $region5
  $region4: #{ben_forward.1} parent=0 // pred_region
    _
  $region5: #{ben_forward.1} parent=0 // pred_fallthru
    _
  // Predicated region
  $region6: #{ben_forward.1} parent=0 // pred_check
    _
  $region7: #{ben_forward.1} parent=0 // pred_check_branch
    %21 = sbr.rel (0) target = $region9
  $region8: #{ben_forward.1} parent=0 // pred_region
    _
  $region9: #{ben_forward.1} parent=0 // pred_fallthru
    _
  // Predicated region
  $region10: #{ben_forward.1} parent=0 // pred_check
    _
  $region11: #{ben_forward.1} parent=0 // pred_check_branch
    %23 = sbr.rel (0) target = $region13
  $region12: #{ben_forward.1} parent=0 // pred_region
    _
  $region13: #{ben_forward.1} parent=0 // pred_fallthru
    _
  // Predicated region
  $region14: #{ben_forward.1} parent=0 // pred_check
    _
  $region15: #{ben_forward.1} parent=0 // pred_check_branch
    %25 = sbr.rel (0) target = $region17
  $region16: #{ben_forward.1} parent=0 // pred_region
    _
  $region17: #{ben_forward.1} parent=0 // pred_fallthru
    _
  // Predicated region
  $region18: #{ben_forward.1} parent=0 // pred_check
    _
  $region19: #{ben_forward.1} parent=0 // pred_check_branch
    %27 = sbr.rel (0) target = $region21
  $region20: #{ben_forward.1} parent=0 // pred_region
    _
  $region21: #{ben_forward.1} parent=0 // pred_fallthru
    _
  // Predicated region
  $region22: #{ben_forward.1} parent=0 // pred_check
    _
  $region23: #{ben_forward.1} parent=0 // pred_check_branch
    %29 = sbr.rel (0) target = $region25
  $region24: #{ben_forward.1} parent=0 // pred_region
    _
  $region25: #{ben_forward.1} parent=0 // pred_fallthru
    _
  // Predicated region
  $region26: #{ben_forward.1} parent=0 // pred_check
    _
  $region27: #{ben_forward.1} parent=0 // pred_check_branch
    %31 = sbr.rel (0) target = $region29
  $region28: #{ben_forward.1} parent=0 // pred_region
    _
  $region29: #{ben_forward.1} parent=0 // pred_fallthru
    _
  // Predicated region
  $region30: #{ben_forward.1} parent=0 // pred_check
    _
  $region31: #{ben_forward.1} parent=0 // pred_check_branch
    %33 = sbr.rel (0) target = $region33
  $region32: #{ben_forward.1} parent=0 // pred_region
    _
  $region33: #{ben_forward.1} parent=0 // pred_fallthru
    _
  // Predicated region
  $region34: #{ben_forward.1} parent=0 // pred_check
    _
  $region35: #{ben_forward.1} parent=0 // pred_check_branch
    %35 = sbr.rel (0) target = $region37
  $region36: #{ben_forward.1} parent=0 // pred_region
    _
  $region37: #{ben_forward.1} parent=0 // pred_fallthru
    _
  // Predicated region
  $region38: #{ben_forward.1} parent=0 // pred_check
    _
  $region39: #{ben_forward.1} parent=0 // pred_check_branch
    %37 = sbr.rel (0) target = $region41
  $region40: #{ben_forward.1} parent=0 // pred_region
    _
  $region41: #{ben_forward.1} parent=0 // pred_fallthru
    _
  // Predicated region
  $region42: #{ben_forward.1} parent=0 // pred_check
    _
  $region43: #{ben_forward.1} parent=0 // pred_check_branch
    %39 = sbr.rel (0) target = $region45
  $region44: #{ben_forward.1} parent=0 // pred_region
    _
  $region45: #{ben_forward.1} parent=0 // pred_fallthru
    _
  // Predicated region
  $region46: #{ben_forward.1} parent=0 // pred_check
    _
  $region47: #{ben_forward.1} parent=0 // pred_check_branch
    %41 = sbr.rel (0) target = $region49
  $region48: #{ben_forward.1} parent=0 // pred_region
    _
  $region49: #{ben_forward.1} parent=0 // pred_fallthru
    _
  // Predicated region
  $region50: #{ben_forward.1} parent=0 // pred_check
    _
  $region51: #{ben_forward.1} parent=0 // pred_check_branch
    %43 = sbr.rel (0) target = $region53
  $region52: #{ben_forward.1} parent=0 // pred_region
    _
  $region53: #{ben_forward.1} parent=0 // pred_fallthru
    _
  %v44 = vld [vmem:[%s5] sm:$0xff]
  %v45 = vld [vmem:[%s5 + $0x8] sm:$0xff]
  %v46 = vld [vmem:[%s5 + $0x10] sm:$0xff]
  %v47 = vld [vmem:[%s5 + $0x18] sm:$0xff]
  %v48 = vld [vmem:[%s5 + $0x20] sm:$0xff]
  %v49 = vld [vmem:[%s5 + $0x28] sm:$0xff]
  %v50 = vld [vmem:[%s5 + $0x30] sm:$0xff]
  %v51 = vld [vmem:[%s5 + $0x38] sm:$0xff]
  %v52 = vld [vmem:[%s5 + $0x40] sm:$0xff]
  %v53 = vld [vmem:[%s5 + $0x48] sm:$0xff]
  %v54 = vld [vmem:[%s5 + $0x50] sm:$0xff]
  %v55 = vld [vmem:[%s5 + $0x58] sm:$0xff]
  %v56 = vld [vmem:[%s5 + $0x60] sm:$0xff]
  %v57 = vld [vmem:[%s5 + $0x68] sm:$0xff]
  %v58 = vld [vmem:[%s5 + $0x70] sm:$0xff]
  %v59 = vld [vmem:[%s5 + $0x78] sm:$0xff]
  %v60 = vld [vmem:[%s5 + $0x80] sm:$0xff]
  %v61 = vld [vmem:[%s5 + $0x88] sm:$0xff]
  %v62 = vld [vmem:[%s5 + $0x90] sm:$0xff]
  %v63 = vld [vmem:[%s5 + $0x98] sm:$0xff]
  %v64 = vld [vmem:[%s5 + $0xa0] sm:$0xff]
  %v65 = vld [vmem:[%s5 + $0xa8] sm:$0xff]
  %v66 = vld [vmem:[%s5 + $0xb0] sm:$0xff]
  %v67 = vld [vmem:[%s5 + $0xb8] sm:$0xff]
  %v68 = vld [vmem:[%s5 + $0xc0] sm:$0xff]
  %v69 = vld [vmem:[%s5 + $0xc8] sm:$0xff]
  %v70 = vld [vmem:[%s5 + $0xd0] sm:$0xff]
  %v71 = vld [vmem:[%s5 + $0xd8] sm:$0xff]
  %v72 = vld [vmem:[%s5 + $0xe0] sm:$0xff]
  %v73 = vld [vmem:[%s5 + $0xe8] sm:$0xff]
  %v74 = vld [vmem:[%s5 + $0xf0] sm:$0xff]
  %v75 = vld [vmem:[%s5 + $0xf8] sm:$0xff]
  %v76 = vld [vmem:[%s5 + $0x100] sm:$0xff]
  %v77 = vld [vmem:[%s5 + $0x108] sm:$0xff]
  %v78 = vld [vmem:[%s5 + $0x110] sm:$0xff]
  %v79 = vld [vmem:[%s5 + $0x118] sm:$0xff]
  %v80 = vld [vmem:[%s5 + $0x120] sm:$0xff]
  %v81 = vld [vmem:[%s5 + $0x128] sm:$0xff]
  %v82 = vld [vmem:[%s5 + $0x130] sm:$0xff]
  %v83 = vld [vmem:[%s5 + $0x138] sm:$0xff]
  %v84 = vld [vmem:[%s5 + $0x140] sm:$0xff]
  %v85 = vld [vmem:[%s5 + $0x148] sm:$0xff]
  %v86 = vld [vmem:[%s5 + $0x150] sm:$0xff]
  %v87 = vld [vmem:[%s5 + $0x158] sm:$0xff]
  %v88 = vld [vmem:[%s5 + $0x160] sm:$0xff]
  %v89 = vld [vmem:[%s5 + $0x168] sm:$0xff]
  %v90 = vld [vmem:[%s5 + $0x170] sm:$0xff]
  %v91 = vld [vmem:[%s5 + $0x178] sm:$0xff]
  %v92 = vld [vmem:[%s5 + $0x180] sm:$0xff]
  %v93 = vld [vmem:[%s5 + $0x188] sm:$0xff]
  %v94 = vld [vmem:[%s5 + $0x190] sm:$0xff]
  %v95 = vld [vmem:[%s6] sm:$0x7]
  %v97 = vlaneseq
  %v98 = vshrl.u32 %v97, 7
  %v99 = vsub.s32 0, %v98
  %v100 = vrot.slane %v95, %v99
  %v101 = vlaneseq
  %v102 = vshrl.u32 %v101, 7
  %v103 = vsub.s32 1, %v102
  %v104 = vrot.slane %v95, %v103
  %v105 = vlaneseq
  %v106 = vshrl.u32 %v105, 7
  %v107 = vsub.s32 2, %v106
  %v108 = vrot.slane %v95, %v107
  %v112 = vld [vmem:[%s0] sm:$0xff]
  %v113 = vld [vmem:[%s0 + $0x8] sm:$0xff]
  %v114 = vld [vmem:[%s0 + $0x10] sm:$0xff]
  %v115 = vld [vmem:[%s0 + $0x18] sm:$0xff]
  %v116 = vld [vmem:[%s0 + $0x20] sm:$0xff]
  %v117 = vld [vmem:[%s0 + $0x28] sm:$0xff]
  %v118 = vld [vmem:[%s0 + $0x30] sm:$0xff]
  %v119 = vld [vmem:[%s0 + $0x38] sm:$0xff]
  %vm120 = vcmask 64512
  %v122 = vsel %vm120, %v112, 0
  %v125 = vsel %vm120, %v113, 0
  %v128 = vsel %vm120, %v114, 0
  %v131 = vsel %vm120, %v115, 0
  %v134 = vsel %vm120, %v116, 0
  %v137 = vsel %vm120, %v117, 0
  %v140 = vsel %vm120, %v118, 0
  %v143 = vsel %vm120, %v119, 0
  %145 = vmatprep.subr.mxu0 %v45
  %146 = vmatpush1.msra.mxu0 %v44
  %147 = vmatprep.subr.mxu0 0.0
  %148 = vmatpush1.msra.mxu0 0.0
  %149 = vmatprep.subr.mxu0 0.0
  %150 = vmatpush1.msra.mxu0 0.0
  %151 = vmatprep.subr.mxu0 0.0
  %152 = vmatpush1.msra.mxu0 0.0
  %153 = vmatprep.subr.mxu0 0.0
  %154 = vmatpush1.msra.mxu0 0.0
  %155 = vmatprep.subr.mxu0 0.0
  %156 = vmatpush1.msra.mxu0 0.0
  %157 = vmatprep.subr.mxu0 0.0
  %158 = vmatpush1.msra.mxu0 0.0
  %159 = vmatprep.subr.mxu0 0.0
  %160 = vmatpush1.msra.mxu0 0.0
  %161 = vmatprep.subr.mxu0 0.0
  %162 = vmatpush1.msra.mxu0 0.0
  %163 = vmatprep.subr.mxu0 0.0
  %164 = vmatpush1.msra.mxu0 0.0
  %165 = vmatprep.subr.mxu0 0.0
  %166 = vmatpush1.msra.mxu0 0.0
  %167 = vmatprep.subr.mxu0 0.0
  %168 = vmatpush1.msra.mxu0 0.0
  %169 = vmatprep.subr.mxu0 0.0
  %170 = vmatpush1.msra.mxu0 0.0
  %171 = vmatprep.subr.mxu0 0.0
  %172 = vmatpush1.msra.mxu0 0.0
  %173 = vmatprep.subr.mxu0 0.0
  %174 = vmatpush1.msra.mxu0 0.0
  %175 = vmatprep.subr.mxu0 0.0
  %176 = vmatpush1.msra.mxu0 0.0
  %177 = vmatprep.subr.mxu0 0.0
  %178 = vmatpush1.msra.mxu0 0.0
  %179 = vmatprep.subr.mxu0 0.0
  %180 = vmatpush1.msra.mxu0 0.0
  %181 = vmatprep.subr.mxu0 0.0
  %182 = vmatpush1.msra.mxu0 0.0
  %183 = vmatprep.subr.mxu0 0.0
  %184 = vmatpush1.msra.mxu0 0.0
  %185 = vmatprep.subr.mxu0 0.0
  %186 = vmatpush1.msra.mxu0 0.0
  %187 = vmatprep.subr.mxu0 0.0
  %188 = vmatpush1.msra.mxu0 0.0
  %189 = vmatprep.subr.mxu0 0.0
  %190 = vmatpush1.msra.mxu0 0.0
  %191 = vmatprep.subr.mxu0 0.0
  %192 = vmatpush1.msra.mxu0 0.0
  %193 = vmatprep.subr.mxu0 0.0
  %194 = vmatpush1.msra.mxu0 0.0
  %195 = vmatprep.subr.mxu0 0.0
  %196 = vmatpush1.msra.mxu0 0.0
  %197 = vmatprep.subr.mxu0 0.0
  %198 = vmatpush1.msra.mxu0 0.0
  %199 = vmatprep.subr.mxu0 0.0
  %200 = vmatpush1.msra.mxu0 0.0
  %201 = vmatprep.subr.mxu0 0.0
  %202 = vmatpush1.msra.mxu0 0.0
  %203 = vmatprep.subr.mxu0 0.0
  %204 = vmatpush1.msra.mxu0 0.0
  %205 = vmatprep.subr.mxu0 0.0
  %206 = vmatpush1.msra.mxu0 0.0
  %207 = vmatprep.subr.mxu0 0.0
  %208 = vmatpush1.msra.mxu0 0.0
  %209 = vmatprep.mubr.f32.mxu0 0.0
  %210 = vmatmul.mubr.f32.gmra.mrb[0].mxu0 %v122
  %v211 = vpop.f32.mrb[0].mxu0
  %v212 = vadd.f32 0.0, %v211
  %v213 = vpop.f32.mrb[0].mxu0
  %v214 = vadd.f32 0.0, %v213
  %215 = vmatprep.mubr.f32.mxu0 0.0
  %216 = vmatmul.mubr.f32.gmra.mrb[0].mxu0 %v125
  %v217 = vpop.f32.mrb[0].mxu0
  %v218 = vadd.f32 0.0, %v217
  %v219 = vpop.f32.mrb[0].mxu0
  %v220 = vadd.f32 0.0, %v219
  %221 = vmatprep.mubr.f32.mxu0 0.0
  %222 = vmatmul.mubr.f32.gmra.mrb[0].mxu0 %v128
  %v223 = vpop.f32.mrb[0].mxu0
  %v224 = vadd.f32 0.0, %v223
  %v225 = vpop.f32.mrb[0].mxu0
  %v226 = vadd.f32 0.0, %v225
  %227 = vmatprep.mubr.f32.mxu0 0.0
  %228 = vmatmul.mubr.f32.gmra.mrb[0].mxu0 %v131
  %v229 = vpop.f32.mrb[0].mxu0
  %v230 = vadd.f32 0.0, %v229
  %v231 = vpop.f32.mrb[0].mxu0
  %v232 = vadd.f32 0.0, %v231
  %233 = vmatprep.mubr.f32.mxu0 0.0
  %234 = vmatmul.mubr.f32.gmra.mrb[0].mxu0 %v134
  %v235 = vpop.f32.mrb[0].mxu0
  %v236 = vadd.f32 0.0, %v235
  %v237 = vpop.f32.mrb[0].mxu0
  %v238 = vadd.f32 0.0, %v237
  %239 = vmatprep.mubr.f32.mxu0 0.0
  %240 = vmatmul.mubr.f32.gmra.mrb[0].mxu0 %v137
  %v241 = vpop.f32.mrb[0].mxu0
  %v242 = vadd.f32 0.0, %v241
  %v243 = vpop.f32.mrb[0].mxu0
  %v244 = vadd.f32 0.0, %v243
  %245 = vmatprep.mubr.f32.mxu0 0.0
  %246 = vmatmul.mubr.f32.gmra.mrb[0].mxu0 %v140
  %v247 = vpop.f32.mrb[0].mxu0
  %v248 = vadd.f32 0.0, %v247
  %v249 = vpop.f32.mrb[0].mxu0
  %v250 = vadd.f32 0.0, %v249
  %251 = vmatprep.mubr.f32.mxu0 0.0
  %252 = vmatmul.mubr.f32.gmra.mrb[0].mxu0 %v143
  %v253 = vpop.f32.mrb[0].mxu0
  %v254 = vadd.f32 0.0, %v253
  %v255 = vpop.f32.mrb[0].mxu0
  %v256 = vadd.f32 0.0, %v255
  %257 = vdwg.mxu0
  %258 = vmatprep.subr.mxu0 0.0
  %259 = vmatpush1.msra.mxu0 %v46
  %260 = vmatprep.subr.mxu0 0.0
  %261 = vmatpush1.msra.mxu0 0.0
  %262 = vmatprep.subr.mxu0 0.0
  %263 = vmatpush1.msra.mxu0 0.0
  %264 = vmatprep.subr.mxu0 0.0
  %265 = vmatpush1.msra.mxu0 0.0
  %266 = vmatprep.subr.mxu0 0.0
  %267 = vmatpush1.msra.mxu0 0.0
  %268 = vmatprep.subr.mxu0 0.0
  %269 = vmatpush1.msra.mxu0 0.0
  %270 = vmatprep.subr.mxu0 0.0
  %271 = vmatpush1.msra.mxu0 0.0
  %272 = vmatprep.subr.mxu0 0.0
  %273 = vmatpush1.msra.mxu0 0.0
  %274 = vmatprep.subr.mxu0 0.0
  %275 = vmatpush1.msra.mxu0 0.0
  %276 = vmatprep.subr.mxu0 0.0
  %277 = vmatpush1.msra.mxu0 0.0
  %278 = vmatprep.subr.mxu0 0.0
  %279 = vmatpush1.msra.mxu0 0.0
  %280 = vmatprep.subr.mxu0 0.0
  %281 = vmatpush1.msra.mxu0 0.0
  %282 = vmatprep.subr.mxu0 0.0
  %283 = vmatpush1.msra.mxu0 0.0
  %284 = vmatprep.subr.mxu0 0.0
  %285 = vmatpush1.msra.mxu0 0.0
  %286 = vmatprep.subr.mxu0 0.0
  %287 = vmatpush1.msra.mxu0 0.0
  %288 = vmatprep.subr.mxu0 0.0
  %289 = vmatpush1.msra.mxu0 0.0
  %290 = vmatprep.subr.mxu0 0.0
  %291 = vmatpush1.msra.mxu0 0.0
  %292 = vmatprep.subr.mxu0 0.0
  %293 = vmatpush1.msra.mxu0 0.0
  %294 = vmatprep.subr.mxu0 0.0
  %295 = vmatpush1.msra.mxu0 0.0
  %296 = vmatprep.subr.mxu0 0.0
  %297 = vmatpush1.msra.mxu0 0.0
  %298 = vmatprep.subr.mxu0 0.0
  %299 = vmatpush1.msra.mxu0 0.0
  %300 = vmatprep.subr.mxu0 0.0
  %301 = vmatpush1.msra.mxu0 0.0
  %302 = vmatprep.subr.mxu0 0.0
  %303 = vmatpush1.msra.mxu0 0.0
  %304 = vmatprep.subr.mxu0 0.0
  %305 = vmatpush1.msra.mxu0 0.0
  %306 = vmatprep.subr.mxu0 0.0
  %307 = vmatpush1.msra.mxu0 0.0
  %308 = vmatprep.subr.mxu0 0.0
  %309 = vmatpush1.msra.mxu0 0.0
  %310 = vmatprep.subr.mxu0 0.0
  %311 = vmatpush1.msra.mxu0 0.0
  %312 = vmatprep.subr.mxu0 0.0
  %313 = vmatpush1.msra.mxu0 0.0
  %314 = vmatprep.subr.mxu0 0.0
  %315 = vmatpush1.msra.mxu0 0.0
  %316 = vmatprep.subr.mxu0 0.0
  %317 = vmatpush1.msra.mxu0 0.0
  %318 = vmatprep.subr.mxu0 0.0
  %319 = vmatpush1.msra.mxu0 0.0
  %320 = vmatprep.subr.mxu0 0.0
  %321 = vmatpush1.msra.mxu0 0.0
  %322 = vmatprep.mubr.f32.mxu0 0.0
  %323 = vmatmul.mubr.f32.gmra.mrb[0].mxu0 %v122
  %v324 = vpop.f32.mrb[0].mxu0
  %v325 = vadd.f32 0.0, %v324
  %v326 = vpop.f32.mrb[0].mxu0
  %327 = vmatprep.mubr.f32.mxu0 0.0
  %328 = vmatmul.mubr.f32.gmra.mrb[0].mxu0 %v125
  %v329 = vpop.f32.mrb[0].mxu0
  %v330 = vadd.f32 0.0, %v329
  %v331 = vpop.f32.mrb[0].mxu0
  %332 = vmatprep.mubr.f32.mxu0 0.0
  %333 = vmatmul.mubr.f32.gmra.mrb[0].mxu0 %v128
  %v334 = vpop.f32.mrb[0].mxu0
  %v335 = vadd.f32 0.0, %v334
  %v336 = vpop.f32.mrb[0].mxu0
  %337 = vmatprep.mubr.f32.mxu0 0.0
  %338 = vmatmul.mubr.f32.gmra.mrb[0].mxu0 %v131
  %v339 = vpop.f32.mrb[0].mxu0
  %v340 = vadd.f32 0.0, %v339
  %v341 = vpop.f32.mrb[0].mxu0
  %342 = vmatprep.mubr.f32.mxu0 0.0
  %343 = vmatmul.mubr.f32.gmra.mrb[0].mxu0 %v134
  %v344 = vpop.f32.mrb[0].mxu0
  %v345 = vadd.f32 0.0, %v344
  %v346 = vpop.f32.mrb[0].mxu0
  %347 = vmatprep.mubr.f32.mxu0 0.0
  %348 = vmatmul.mubr.f32.gmra.mrb[0].mxu0 %v137
  %v349 = vpop.f32.mrb[0].mxu0
  %v350 = vadd.f32 0.0, %v349
  %v351 = vpop.f32.mrb[0].mxu0
  %352 = vmatprep.mubr.f32.mxu0 0.0
  %353 = vmatmul.mubr.f32.gmra.mrb[0].mxu0 %v140
  %v354 = vpop.f32.mrb[0].mxu0
  %v355 = vadd.f32 0.0, %v354
  %v356 = vpop.f32.mrb[0].mxu0
  %357 = vmatprep.mubr.f32.mxu0 0.0
  %358 = vmatmul.mubr.f32.gmra.mrb[0].mxu0 %v143
  %v359 = vpop.f32.mrb[0].mxu0
  %v360 = vadd.f32 0.0, %v359
  %v361 = vpop.f32.mrb[0].mxu0
  %362 = vdwg.mxu0
  %363 = vmatprep.subr.mxu0 %v48
  %364 = vmatpush1.msra.mxu0 %v47
  %365 = vmatprep.subr.mxu0 %v51
  %366 = vmatpush1.msra.mxu0 %v50
  %367 = vmatprep.subr.mxu0 %v54
  %368 = vmatpush1.msra.mxu0 %v53
  %369 = vmatprep.subr.mxu0 %v57
  %370 = vmatpush1.msra.mxu0 %v56
  %371 = vmatprep.subr.mxu0 %v60
  %372 = vmatpush1.msra.mxu0 %v59
  %373 = vmatprep.subr.mxu0 %v63
  %374 = vmatpush1.msra.mxu0 %v62
  %375 = vmatprep.subr.mxu0 %v66
  %376 = vmatpush1.msra.mxu0 %v65
  %377 = vmatprep.subr.mxu0 %v69
  %378 = vmatpush1.msra.mxu0 %v68
  %379 = vmatprep.subr.mxu0 %v72
  %380 = vmatpush1.msra.mxu0 %v71
  %381 = vmatprep.subr.mxu0 %v75
  %382 = vmatpush1.msra.mxu0 %v74
  %383 = vmatprep.subr.mxu0 %v78
  %384 = vmatpush1.msra.mxu0 %v77
  %385 = vmatprep.subr.mxu0 %v81
  %386 = vmatpush1.msra.mxu0 %v80
  %387 = vmatprep.subr.mxu0 %v84
  %388 = vmatpush1.msra.mxu0 %v83
  %389 = vmatprep.subr.mxu0 %v87
  %390 = vmatpush1.msra.mxu0 %v86
  %391 = vmatprep.subr.mxu0 %v90
  %392 = vmatpush1.msra.mxu0 %v89
  %393 = vmatprep.subr.mxu0 %v93
  %394 = vmatpush1.msra.mxu0 %v92
  %395 = vmatprep.subr.mxu0 0.0
  %396 = vmatpush1.msra.mxu0 0.0
  %397 = vmatprep.subr.mxu0 0.0
  %398 = vmatpush1.msra.mxu0 0.0
  %399 = vmatprep.subr.mxu0 0.0
  %400 = vmatpush1.msra.mxu0 0.0
  %401 = vmatprep.subr.mxu0 0.0
  %402 = vmatpush1.msra.mxu0 0.0
  %403 = vmatprep.subr.mxu0 0.0
  %404 = vmatpush1.msra.mxu0 0.0
  %405 = vmatprep.subr.mxu0 0.0
  %406 = vmatpush1.msra.mxu0 0.0
  %407 = vmatprep.subr.mxu0 0.0
  %408 = vmatpush1.msra.mxu0 0.0
  %409 = vmatprep.subr.mxu0 0.0
  %410 = vmatpush1.msra.mxu0 0.0
  %411 = vmatprep.subr.mxu0 0.0
  %412 = vmatpush1.msra.mxu0 0.0
  %413 = vmatprep.subr.mxu0 0.0
  %414 = vmatpush1.msra.mxu0 0.0
  %415 = vmatprep.subr.mxu0 0.0
  %416 = vmatpush1.msra.mxu0 0.0
  %417 = vmatprep.subr.mxu0 0.0
  %418 = vmatpush1.msra.mxu0 0.0
  %419 = vmatprep.subr.mxu0 0.0
  %420 = vmatpush1.msra.mxu0 0.0
  %421 = vmatprep.subr.mxu0 0.0
  %422 = vmatpush1.msra.mxu0 0.0
  %423 = vmatprep.subr.mxu0 0.0
  %424 = vmatpush1.msra.mxu0 0.0
  %425 = vmatprep.subr.mxu0 0.0
  %426 = vmatpush1.msra.mxu0 0.0
  %427 = vmatprep.mubr.f32.mxu0 0.0
  %428 = vmatmul.mubr.f32.gmra.mrb[0].mxu0 0.0
  %v429 = vpop.f32.mrb[0].mxu0
  %v430 = vadd.f32 %v100, %v429
  %v431 = vpop.f32.mrb[0].mxu0
  %v432 = vadd.f32 %v104, %v431
  %433 = vdwg.mxu0
  %434 = vmatprep.subr.mxu0 0.0
  %435 = vmatpush1.msra.mxu0 %v49
  %436 = vmatprep.subr.mxu0 0.0
  %437 = vmatpush1.msra.mxu0 %v52
  %438 = vmatprep.subr.mxu0 0.0
  %439 = vmatpush1.msra.mxu0 %v55
  %440 = vmatprep.subr.mxu0 0.0
  %441 = vmatpush1.msra.mxu0 %v58
  %442 = vmatprep.subr.mxu0 0.0
  %443 = vmatpush1.msra.mxu0 %v61
  %444 = vmatprep.subr.mxu0 0.0
  %445 = vmatpush1.msra.mxu0 %v64
  %446 = vmatprep.subr.mxu0 0.0
  %447 = vmatpush1.msra.mxu0 %v67
  %448 = vmatprep.subr.mxu0 0.0
  %449 = vmatpush1.msra.mxu0 %v70
  %450 = vmatprep.subr.mxu0 0.0
  %451 = vmatpush1.msra.mxu0 %v73
  %452 = vmatprep.subr.mxu0 0.0
  %453 = vmatpush1.msra.mxu0 %v76
  %454 = vmatprep.subr.mxu0 0.0
  %455 = vmatpush1.msra.mxu0 %v79
  %456 = vmatprep.subr.mxu0 0.0
  %457 = vmatpush1.msra.mxu0 %v82
  %458 = vmatprep.subr.mxu0 0.0
  %459 = vmatpush1.msra.mxu0 %v85
  %460 = vmatprep.subr.mxu0 0.0
  %461 = vmatpush1.msra.mxu0 %v88
  %462 = vmatprep.subr.mxu0 0.0
  %463 = vmatpush1.msra.mxu0 %v91
  %464 = vmatprep.subr.mxu0 0.0
  %465 = vmatpush1.msra.mxu0 %v94
  %466 = vmatprep.subr.mxu0 0.0
  %467 = vmatpush1.msra.mxu0 0.0
  %468 = vmatprep.subr.mxu0 0.0
  %469 = vmatpush1.msra.mxu0 0.0
  %470 = vmatprep.subr.mxu0 0.0
  %471 = vmatpush1.msra.mxu0 0.0
  %472 = vmatprep.subr.mxu0 0.0
  %473 = vmatpush1.msra.mxu0 0.0
  %474 = vmatprep.subr.mxu0 0.0
  %475 = vmatpush1.msra.mxu0 0.0
  %476 = vmatprep.subr.mxu0 0.0
  %477 = vmatpush1.msra.mxu0 0.0
  %478 = vmatprep.subr.mxu0 0.0
  %479 = vmatpush1.msra.mxu0 0.0
  %480 = vmatprep.subr.mxu0 0.0
  %481 = vmatpush1.msra.mxu0 0.0
  %482 = vmatprep.subr.mxu0 0.0
  %483 = vmatpush1.msra.mxu0 0.0
  %484 = vmatprep.subr.mxu0 0.0
  %485 = vmatpush1.msra.mxu0 0.0
  %486 = vmatprep.subr.mxu0 0.0
  %487 = vmatpush1.msra.mxu0 0.0
  %488 = vmatprep.subr.mxu0 0.0
  %489 = vmatpush1.msra.mxu0 0.0
  %490 = vmatprep.subr.mxu0 0.0
  %491 = vmatpush1.msra.mxu0 0.0
  %492 = vmatprep.subr.mxu0 0.0
  %493 = vmatpush1.msra.mxu0 0.0
  %494 = vmatprep.subr.mxu0 0.0
  %495 = vmatpush1.msra.mxu0 0.0
  %496 = vmatprep.subr.mxu0 0.0
  %497 = vmatpush1.msra.mxu0 0.0
  %498 = vmatprep.mubr.f32.mxu0 0.0
  %499 = vmatmul.mubr.f32.gmra.mrb[0].mxu0 0.0
  %v500 = vpop.f32.mrb[0].mxu0
  %v501 = vadd.f32 %v108, %v500
  %v502 = vpop.f32.mrb[0].mxu0
  %503 = vdwg.mxu0
  %v504 = vadd.f32 %v212, %v430
  %v505 = vxor.u32 %v504, 2147483648
  %v506 = vmul.f32 %v505, 1.442695
  %v507 = vpow.pop %v506
  %v508 = vadd.f32 %v507, 1.0
  %v509 = vrcp.pop %v508
  %v510 = vmul.f32 1.0, %v509
  %v511 = vadd.f32 %v214, %v432
  %v512 = vxor.u32 %v511, 2147483648
  %v513 = vmul.f32 %v512, 1.442695
  %v514 = vpow.pop %v513
  %v515 = vadd.f32 %v514, 1.0
  %v516 = vrcp.pop %v515
  %v517 = vmul.f32 1.0, %v516
  %v518 = vmul.f32 %v510, %v501
  %v519 = vadd.f32 %v325, %v518
  %v520 = vtanh.pop %v519
  %v521 = vsub.f32 1.0, %v517
  %v522 = vmul.f32 %v521, %v520
  %v523 = vmul.f32 %v517, 0.0
  %v524 = vadd.f32 %v522, %v523
  %525 = vmatprep.subr.mxu0 %v48
  %526 = vmatpush1.msra.mxu0 %v47
  %527 = vmatprep.subr.mxu0 %v51
  %528 = vmatpush1.msra.mxu0 %v50
  %529 = vmatprep.subr.mxu0 %v54
  %530 = vmatpush1.msra.mxu0 %v53
  %531 = vmatprep.subr.mxu0 %v57
  %532 = vmatpush1.msra.mxu0 %v56
  %533 = vmatprep.subr.mxu0 %v60
  %534 = vmatpush1.msra.mxu0 %v59
  %535 = vmatprep.subr.mxu0 %v63
  %536 = vmatpush1.msra.mxu0 %v62
  %537 = vmatprep.subr.mxu0 %v66
  %538 = vmatpush1.msra.mxu0 %v65
  %539 = vmatprep.subr.mxu0 %v69
  %540 = vmatpush1.msra.mxu0 %v68
  %541 = vmatprep.subr.mxu0 %v72
  %542 = vmatpush1.msra.mxu0 %v71
  %543 = vmatprep.subr.mxu0 %v75
  %544 = vmatpush1.msra.mxu0 %v74
  %545 = vmatprep.subr.mxu0 %v78
  %546 = vmatpush1.msra.mxu0 %v77
  %547 = vmatprep.subr.mxu0 %v81
  %548 = vmatpush1.msra.mxu0 %v80
  %549 = vmatprep.subr.mxu0 %v84
  %550 = vmatpush1.msra.mxu0 %v83
  %551 = vmatprep.subr.mxu0 %v87
  %552 = vmatpush1.msra.mxu0 %v86
  %553 = vmatprep.subr.mxu0 %v90
  %554 = vmatpush1.msra.mxu0 %v89
  %555 = vmatprep.subr.mxu0 %v93
  %556 = vmatpush1.msra.mxu0 %v92
  %557 = vmatprep.subr.mxu0 0.0
  %558 = vmatpush1.msra.mxu0 0.0
  %559 = vmatprep.subr.mxu0 0.0
  %560 = vmatpush1.msra.mxu0 0.0
  %561 = vmatprep.subr.mxu0 0.0
  %562 = vmatpush1.msra.mxu0 0.0
  %563 = vmatprep.subr.mxu0 0.0
  %564 = vmatpush1.msra.mxu0 0.0
  %565 = vmatprep.subr.mxu0 0.0
  %566 = vmatpush1.msra.mxu0 0.0
  %567 = vmatprep.subr.mxu0 0.0
  %568 = vmatpush1.msra.mxu0 0.0
  %569 = vmatprep.subr.mxu0 0.0
  %570 = vmatpush1.msra.mxu0 0.0
  %571 = vmatprep.subr.mxu0 0.0
  %572 = vmatpush1.msra.mxu0 0.0
  %573 = vmatprep.subr.mxu0 0.0
  %574 = vmatpush1.msra.mxu0 0.0
  %575 = vmatprep.subr.mxu0 0.0
  %576 = vmatpush1.msra.mxu0 0.0
  %577 = vmatprep.subr.mxu0 0.0
  %578 = vmatpush1.msra.mxu0 0.0
  %579 = vmatprep.subr.mxu0 0.0
  %580 = vmatpush1.msra.mxu0 0.0
  %581 = vmatprep.subr.mxu0 0.0
  %582 = vmatpush1.msra.mxu0 0.0
  %583 = vmatprep.subr.mxu0 0.0
  %584 = vmatpush1.msra.mxu0 0.0
  %585 = vmatprep.subr.mxu0 0.0
  %586 = vmatpush1.msra.mxu0 0.0
  %587 = vmatprep.subr.mxu0 0.0
  %588 = vmatpush1.msra.mxu0 0.0
  %589 = vmatprep.mubr.f32.mxu0 0.0
  %590 = vmatmul.mubr.f32.gmra.mrb[0].mxu0 %v524
  %v591 = vpop.f32.mrb[0].mxu0
  %v592 = vadd.f32 %v100, %v591
  %v593 = vpop.f32.mrb[0].mxu0
  %v594 = vadd.f32 %v104, %v593
  %595 = vdwg.mxu0
  %596 = vmatprep.subr.mxu0 0.0
  %597 = vmatpush1.msra.mxu0 %v49
  %598 = vmatprep.subr.mxu0 0.0
  %599 = vmatpush1.msra.mxu0 %v52
  %600 = vmatprep.subr.mxu0 0.0
  %601 = vmatpush1.msra.mxu0 %v55
  %602 = vmatprep.subr.mxu0 0.0
  %603 = vmatpush1.msra.mxu0 %v58
  %604 = vmatprep.subr.mxu0 0.0
  %605 = vmatpush1.msra.mxu0 %v61
  %606 = vmatprep.subr.mxu0 0.0
  %607 = vmatpush1.msra.mxu0 %v64
  %608 = vmatprep.subr.mxu0 0.0
  %609 = vmatpush1.msra.mxu0 %v67
  %610 = vmatprep.subr.mxu0 0.0
  %611 = vmatpush1.msra.mxu0 %v70
  %612 = vmatprep.subr.mxu0 0.0
  %613 = vmatpush1.msra.mxu0 %v73
  %614 = vmatprep.subr.mxu0 0.0
  %615 = vmatpush1.msra.mxu0 %v76
  %616 = vmatprep.subr.mxu0 0.0
  %617 = vmatpush1.msra.mxu0 %v79
  %618 = vmatprep.subr.mxu0 0.0
  %619 = vmatpush1.msra.mxu0 %v82
  %620 = vmatprep.subr.mxu0 0.0
  %621 = vmatpush1.msra.mxu0 %v85
  %622 = vmatprep.subr.mxu0 0.0
  %623 = vmatpush1.msra.mxu0 %v88
  %624 = vmatprep.subr.mxu0 0.0
  %625 = vmatpush1.msra.mxu0 %v91
  %626 = vmatprep.subr.mxu0 0.0
  %627 = vmatpush1.msra.mxu0 %v94
  %628 = vmatprep.subr.mxu0 0.0
  %629 = vmatpush1.msra.mxu0 0.0
  %630 = vmatprep.subr.mxu0 0.0
  %631 = vmatpush1.msra.mxu0 0.0
  %632 = vmatprep.subr.mxu0 0.0
  %633 = vmatpush1.msra.mxu0 0.0
  %634 = vmatprep.subr.mxu0 0.0
  %635 = vmatpush1.msra.mxu0 0.0
  %636 = vmatprep.subr.mxu0 0.0
  %637 = vmatpush1.msra.mxu0 0.0
  %638 = vmatprep.subr.mxu0 0.0
  %639 = vmatpush1.msra.mxu0 0.0
  %640 = vmatprep.subr.mxu0 0.0
  %641 = vmatpush1.msra.mxu0 0.0
  %642 = vmatprep.subr.mxu0 0.0
  %643 = vmatpush1.msra.mxu0 0.0
  %644 = vmatprep.subr.mxu0 0.0
  %645 = vmatpush1.msra.mxu0 0.0
  %646 = vmatprep.subr.mxu0 0.0
  %647 = vmatpush1.msra.mxu0 0.0
  %648 = vmatprep.subr.mxu0 0.0
  %649 = vmatpush1.msra.mxu0 0.0
  %650 = vmatprep.subr.mxu0 0.0
  %651 = vmatpush1.msra.mxu0 0.0
  %652 = vmatprep.subr.mxu0 0.0
  %653 = vmatpush1.msra.mxu0 0.0
  %654 = vmatprep.subr.mxu0 0.0
  %655 = vmatpush1.msra.mxu0 0.0
  %656 = vmatprep.subr.mxu0 0.0
  %657 = vmatpush1.msra.mxu0 0.0
  %658 = vmatprep.subr.mxu0 0.0
  %659 = vmatpush1.msra.mxu0 0.0
  %660 = vmatprep.mubr.f32.mxu0 0.0
  %661 = vmatmul.mubr.f32.gmra.mrb[0].mxu0 %v524
  %v662 = vpop.f32.mrb[0].mxu0
  %v663 = vadd.f32 %v108, %v662
  %v664 = vpop.f32.mrb[0].mxu0
  %665 = vdwg.mxu0
  %v666 = vadd.f32 %v218, %v592
  %v667 = vxor.u32 %v666, 2147483648
  %v668 = vmul.f32 %v667, 1.442695
  %v669 = vpow.pop %v668
  %v670 = vadd.f32 %v669, 1.0
  %v671 = vrcp.pop %v670
  %v672 = vmul.f32 1.0, %v671
  %v673 = vadd.f32 %v220, %v594
  %v674 = vxor.u32 %v673, 2147483648
  %v675 = vmul.f32 %v674, 1.442695
  %v676 = vpow.pop %v675
  %v677 = vadd.f32 %v676, 1.0
  %v678 = vrcp.pop %v677
  %v679 = vmul.f32 1.0, %v678
  %v680 = vmul.f32 %v672, %v663
  %v681 = vadd.f32 %v330, %v680
  %v682 = vtanh.pop %v681
  %v683 = vsub.f32 1.0, %v679
  %v684 = vmul.f32 %v683, %v682
  %v685 = vmul.f32 %v679, %v524
  %v686 = vadd.f32 %v684, %v685
  %687 = vmatprep.subr.mxu0 %v48
  %688 = vmatpush1.msra.mxu0 %v47
  %689 = vmatprep.subr.mxu0 %v51
  %690 = vmatpush1.msra.mxu0 %v50
  %691 = vmatprep.subr.mxu0 %v54
  %692 = vmatpush1.msra.mxu0 %v53
  %693 = vmatprep.subr.mxu0 %v57
  %694 = vmatpush1.msra.mxu0 %v56
  %695 = vmatprep.subr.mxu0 %v60
  %696 = vmatpush1.msra.mxu0 %v59
  %697 = vmatprep.subr.mxu0 %v63
  %698 = vmatpush1.msra.mxu0 %v62
  %699 = vmatprep.subr.mxu0 %v66
  %700 = vmatpush1.msra.mxu0 %v65
  %701 = vmatprep.subr.mxu0 %v69
  %702 = vmatpush1.msra.mxu0 %v68
  %703 = vmatprep.subr.mxu0 %v72
  %704 = vmatpush1.msra.mxu0 %v71
  %705 = vmatprep.subr.mxu0 %v75
  %706 = vmatpush1.msra.mxu0 %v74
  %707 = vmatprep.subr.mxu0 %v78
  %708 = vmatpush1.msra.mxu0 %v77
  %709 = vmatprep.subr.mxu0 %v81
  %710 = vmatpush1.msra.mxu0 %v80
  %711 = vmatprep.subr.mxu0 %v84
  %712 = vmatpush1.msra.mxu0 %v83
  %713 = vmatprep.subr.mxu0 %v87
  %714 = vmatpush1.msra.mxu0 %v86
  %715 = vmatprep.subr.mxu0 %v90
  %716 = vmatpush1.msra.mxu0 %v89
  %717 = vmatprep.subr.mxu0 %v93
  %718 = vmatpush1.msra.mxu0 %v92
  %719 = vmatprep.subr.mxu0 0.0
  %720 = vmatpush1.msra.mxu0 0.0
  %721 = vmatprep.subr.mxu0 0.0
  %722 = vmatpush1.msra.mxu0 0.0
  %723 = vmatprep.subr.mxu0 0.0
  %724 = vmatpush1.msra.mxu0 0.0
  %725 = vmatprep.subr.mxu0 0.0
  %726 = vmatpush1.msra.mxu0 0.0
  %727 = vmatprep.subr.mxu0 0.0
  %728 = vmatpush1.msra.mxu0 0.0
  %729 = vmatprep.subr.mxu0 0.0
  %730 = vmatpush1.msra.mxu0 0.0
  %731 = vmatprep.subr.mxu0 0.0
  %732 = vmatpush1.msra.mxu0 0.0
  %733 = vmatprep.subr.mxu0 0.0
  %734 = vmatpush1.msra.mxu0 0.0
  %735 = vmatprep.subr.mxu0 0.0
  %736 = vmatpush1.msra.mxu0 0.0
  %737 = vmatprep.subr.mxu0 0.0
  %738 = vmatpush1.msra.mxu0 0.0
  %739 = vmatprep.subr.mxu0 0.0
  %740 = vmatpush1.msra.mxu0 0.0
  %741 = vmatprep.subr.mxu0 0.0
  %742 = vmatpush1.msra.mxu0 0.0
  %743 = vmatprep.subr.mxu0 0.0
  %744 = vmatpush1.msra.mxu0 0.0
  %745 = vmatprep.subr.mxu0 0.0
  %746 = vmatpush1.msra.mxu0 0.0
  %747 = vmatprep.subr.mxu0 0.0
  %748 = vmatpush1.msra.mxu0 0.0
  %749 = vmatprep.subr.mxu0 0.0
  %750 = vmatpush1.msra.mxu0 0.0
  %751 = vmatprep.mubr.f32.mxu0 0.0
  %752 = vmatmul.mubr.f32.gmra.mrb[0].mxu0 %v686
  %v753 = vpop.f32.mrb[0].mxu0
  %v754 = vadd.f32 %v100, %v753
  %v755 = vpop.f32.mrb[0].mxu0
  %v756 = vadd.f32 %v104, %v755
  %757 = vdwg.mxu0
  %758 = vmatprep.subr.mxu0 0.0
  %759 = vmatpush1.msra.mxu0 %v49
  %760 = vmatprep.subr.mxu0 0.0
  %761 = vmatpush1.msra.mxu0 %v52
  %762 = vmatprep.subr.mxu0 0.0
  %763 = vmatpush1.msra.mxu0 %v55
  %764 = vmatprep.subr.mxu0 0.0
  %765 = vmatpush1.msra.mxu0 %v58
  %766 = vmatprep.subr.mxu0 0.0
  %767 = vmatpush1.msra.mxu0 %v61
  %768 = vmatprep.subr.mxu0 0.0
  %769 = vmatpush1.msra.mxu0 %v64
  %770 = vmatprep.subr.mxu0 0.0
  %771 = vmatpush1.msra.mxu0 %v67
  %772 = vmatprep.subr.mxu0 0.0
  %773 = vmatpush1.msra.mxu0 %v70
  %774 = vmatprep.subr.mxu0 0.0
  %775 = vmatpush1.msra.mxu0 %v73
  %776 = vmatprep.subr.mxu0 0.0
  %777 = vmatpush1.msra.mxu0 %v76
  %778 = vmatprep.subr.mxu0 0.0
  %779 = vmatpush1.msra.mxu0 %v79
  %780 = vmatprep.subr.mxu0 0.0
  %781 = vmatpush1.msra.mxu0 %v82
  %782 = vmatprep.subr.mxu0 0.0
  %783 = vmatpush1.msra.mxu0 %v85
  %784 = vmatprep.subr.mxu0 0.0
  %785 = vmatpush1.msra.mxu0 %v88
  %786 = vmatprep.subr.mxu0 0.0
  %787 = vmatpush1.msra.mxu0 %v91
  %788 = vmatprep.subr.mxu0 0.0
  %789 = vmatpush1.msra.mxu0 %v94
  %790 = vmatprep.subr.mxu0 0.0
  %791 = vmatpush1.msra.mxu0 0.0
  %792 = vmatprep.subr.mxu0 0.0
  %793 = vmatpush1.msra.mxu0 0.0
  %794 = vmatprep.subr.mxu0 0.0
  %795 = vmatpush1.msra.mxu0 0.0
  %796 = vmatprep.subr.mxu0 0.0
  %797 = vmatpush1.msra.mxu0 0.0
  %798 = vmatprep.subr.mxu0 0.0
  %799 = vmatpush1.msra.mxu0 0.0
  %800 = vmatprep.subr.mxu0 0.0
  %801 = vmatpush1.msra.mxu0 0.0
  %802 = vmatprep.subr.mxu0 0.0
  %803 = vmatpush1.msra.mxu0 0.0
  %804 = vmatprep.subr.mxu0 0.0
  %805 = vmatpush1.msra.mxu0 0.0
  %806 = vmatprep.subr.mxu0 0.0
  %807 = vmatpush1.msra.mxu0 0.0
  %808 = vmatprep.subr.mxu0 0.0
  %809 = vmatpush1.msra.mxu0 0.0
  %810 = vmatprep.subr.mxu0 0.0
  %811 = vmatpush1.msra.mxu0 0.0
  %812 = vmatprep.subr.mxu0 0.0
  %813 = vmatpush1.msra.mxu0 0.0
  %814 = vmatprep.subr.mxu0 0.0
  %815 = vmatpush1.msra.mxu0 0.0
  %816 = vmatprep.subr.mxu0 0.0
  %817 = vmatpush1.msra.mxu0 0.0
  %818 = vmatprep.subr.mxu0 0.0
  %819 = vmatpush1.msra.mxu0 0.0
  %820 = vmatprep.subr.mxu0 0.0
  %821 = vmatpush1.msra.mxu0 0.0
  %822 = vmatprep.mubr.f32.mxu0 0.0
  %823 = vmatmul.mubr.f32.gmra.mrb[0].mxu0 %v686
  %v824 = vpop.f32.mrb[0].mxu0
  %v825 = vadd.f32 %v108, %v824
  %v826 = vpop.f32.mrb[0].mxu0
  %827 = vdwg.mxu0
  %v828 = vadd.f32 %v224, %v754
  %v829 = vxor.u32 %v828, 2147483648
  %v830 = vmul.f32 %v829, 1.442695
  %v831 = vpow.pop %v830
  %v832 = vadd.f32 %v831, 1.0
  %v833 = vrcp.pop %v832
  %v834 = vmul.f32 1.0, %v833
  %v835 = vadd.f32 %v226, %v756
  %v836 = vxor.u32 %v835, 2147483648
  %v837 = vmul.f32 %v836, 1.442695
  %v838 = vpow.pop %v837
  %v839 = vadd.f32 %v838, 1.0
  %v840 = vrcp.pop %v839
  %v841 = vmul.f32 1.0, %v840
  %v842 = vmul.f32 %v834, %v825
  %v843 = vadd.f32 %v335, %v842
  %v844 = vtanh.pop %v843
  %v845 = vsub.f32 1.0, %v841
  %v846 = vmul.f32 %v845, %v844
  %v847 = vmul.f32 %v841, %v686
  %v848 = vadd.f32 %v846, %v847
  %849 = vmatprep.subr.mxu0 %v48
  %850 = vmatpush1.msra.mxu0 %v47
  %851 = vmatprep.subr.mxu0 %v51
  %852 = vmatpush1.msra.mxu0 %v50
  %853 = vmatprep.subr.mxu0 %v54
  %854 = vmatpush1.msra.mxu0 %v53
  %855 = vmatprep.subr.mxu0 %v57
  %856 = vmatpush1.msra.mxu0 %v56
  %857 = vmatprep.subr.mxu0 %v60
  %858 = vmatpush1.msra.mxu0 %v59
  %859 = vmatprep.subr.mxu0 %v63
  %860 = vmatpush1.msra.mxu0 %v62
  %861 = vmatprep.subr.mxu0 %v66
  %862 = vmatpush1.msra.mxu0 %v65
  %863 = vmatprep.subr.mxu0 %v69
  %864 = vmatpush1.msra.mxu0 %v68
  %865 = vmatprep.subr.mxu0 %v72
  %866 = vmatpush1.msra.mxu0 %v71
  %867 = vmatprep.subr.mxu0 %v75
  %868 = vmatpush1.msra.mxu0 %v74
  %869 = vmatprep.subr.mxu0 %v78
  %870 = vmatpush1.msra.mxu0 %v77
  %871 = vmatprep.subr.mxu0 %v81
  %872 = vmatpush1.msra.mxu0 %v80
  %873 = vmatprep.subr.mxu0 %v84
  %874 = vmatpush1.msra.mxu0 %v83
  %875 = vmatprep.subr.mxu0 %v87
  %876 = vmatpush1.msra.mxu0 %v86
  %877 = vmatprep.subr.mxu0 %v90
  %878 = vmatpush1.msra.mxu0 %v89
  %879 = vmatprep.subr.mxu0 %v93
  %880 = vmatpush1.msra.mxu0 %v92
  %881 = vmatprep.subr.mxu0 0.0
  %882 = vmatpush1.msra.mxu0 0.0
  %883 = vmatprep.subr.mxu0 0.0
  %884 = vmatpush1.msra.mxu0 0.0
  %885 = vmatprep.subr.mxu0 0.0
  %886 = vmatpush1.msra.mxu0 0.0
  %887 = vmatprep.subr.mxu0 0.0
  %888 = vmatpush1.msra.mxu0 0.0
  %889 = vmatprep.subr.mxu0 0.0
  %890 = vmatpush1.msra.mxu0 0.0
  %891 = vmatprep.subr.mxu0 0.0
  %892 = vmatpush1.msra.mxu0 0.0
  %893 = vmatprep.subr.mxu0 0.0
  %894 = vmatpush1.msra.mxu0 0.0
  %895 = vmatprep.subr.mxu0 0.0
  %896 = vmatpush1.msra.mxu0 0.0
  %897 = vmatprep.subr.mxu0 0.0
  %898 = vmatpush1.msra.mxu0 0.0
  %899 = vmatprep.subr.mxu0 0.0
  %900 = vmatpush1.msra.mxu0 0.0
  %901 = vmatprep.subr.mxu0 0.0
  %902 = vmatpush1.msra.mxu0 0.0
  %903 = vmatprep.subr.mxu0 0.0
  %904 = vmatpush1.msra.mxu0 0.0
  %905 = vmatprep.subr.mxu0 0.0
  %906 = vmatpush1.msra.mxu0 0.0
  %907 = vmatprep.subr.mxu0 0.0
  %908 = vmatpush1.msra.mxu0 0.0
  %909 = vmatprep.subr.mxu0 0.0
  %910 = vmatpush1.msra.mxu0 0.0
  %911 = vmatprep.subr.mxu0 0.0
  %912 = vmatpush1.msra.mxu0 0.0
  %913 = vmatprep.mubr.f32.mxu0 0.0
  %914 = vmatmul.mubr.f32.gmra.mrb[0].mxu0 %v848
  %v915 = vpop.f32.mrb[0].mxu0
  %v916 = vadd.f32 %v100, %v915
  %v917 = vpop.f32.mrb[0].mxu0
  %v918 = vadd.f32 %v104, %v917
  %919 = vdwg.mxu0
  %920 = vmatprep.subr.mxu0 0.0
  %921 = vmatpush1.msra.mxu0 %v49
  %922 = vmatprep.subr.mxu0 0.0
  %923 = vmatpush1.msra.mxu0 %v52
  %924 = vmatprep.subr.mxu0 0.0
  %925 = vmatpush1.msra.mxu0 %v55
  %926 = vmatprep.subr.mxu0 0.0
  %927 = vmatpush1.msra.mxu0 %v58
  %928 = vmatprep.subr.mxu0 0.0
  %929 = vmatpush1.msra.mxu0 %v61
  %930 = vmatprep.subr.mxu0 0.0
  %931 = vmatpush1.msra.mxu0 %v64
  %932 = vmatprep.subr.mxu0 0.0
  %933 = vmatpush1.msra.mxu0 %v67
  %934 = vmatprep.subr.mxu0 0.0
  %935 = vmatpush1.msra.mxu0 %v70
  %936 = vmatprep.subr.mxu0 0.0
  %937 = vmatpush1.msra.mxu0 %v73
  %938 = vmatprep.subr.mxu0 0.0
  %939 = vmatpush1.msra.mxu0 %v76
  %940 = vmatprep.subr.mxu0 0.0
  %941 = vmatpush1.msra.mxu0 %v79
  %942 = vmatprep.subr.mxu0 0.0
  %943 = vmatpush1.msra.mxu0 %v82
  %944 = vmatprep.subr.mxu0 0.0
  %945 = vmatpush1.msra.mxu0 %v85
  %946 = vmatprep.subr.mxu0 0.0
  %947 = vmatpush1.msra.mxu0 %v88
  %948 = vmatprep.subr.mxu0 0.0
  %949 = vmatpush1.msra.mxu0 %v91
  %950 = vmatprep.subr.mxu0 0.0
  %951 = vmatpush1.msra.mxu0 %v94
  %952 = vmatprep.subr.mxu0 0.0
  %953 = vmatpush1.msra.mxu0 0.0
  %954 = vmatprep.subr.mxu0 0.0
  %955 = vmatpush1.msra.mxu0 0.0
  %956 = vmatprep.subr.mxu0 0.0
  %957 = vmatpush1.msra.mxu0 0.0
  %958 = vmatprep.subr.mxu0 0.0
  %959 = vmatpush1.msra.mxu0 0.0
  %960 = vmatprep.subr.mxu0 0.0
  %961 = vmatpush1.msra.mxu0 0.0
  %962 = vmatprep.subr.mxu0 0.0
  %963 = vmatpush1.msra.mxu0 0.0
  %964 = vmatprep.subr.mxu0 0.0
  %965 = vmatpush1.msra.mxu0 0.0
  %966 = vmatprep.subr.mxu0 0.0
  %967 = vmatpush1.msra.mxu0 0.0
  %968 = vmatprep.subr.mxu0 0.0
  %969 = vmatpush1.msra.mxu0 0.0
  %970 = vmatprep.subr.mxu0 0.0
  %971 = vmatpush1.msra.mxu0 0.0
  %972 = vmatprep.subr.mxu0 0.0
  %973 = vmatpush1.msra.mxu0 0.0
  %974 = vmatprep.subr.mxu0 0.0
  %975 = vmatpush1.msra.mxu0 0.0
  %976 = vmatprep.subr.mxu0 0.0
  %977 = vmatpush1.msra.mxu0 0.0
  %978 = vmatprep.subr.mxu0 0.0
  %979 = vmatpush1.msra.mxu0 0.0
  %980 = vmatprep.subr.mxu0 0.0
  %981 = vmatpush1.msra.mxu0 0.0
  %982 = vmatprep.subr.mxu0 0.0
  %983 = vmatpush1.msra.mxu0 0.0
  %984 = vmatprep.mubr.f32.mxu0 0.0
  %985 = vmatmul.mubr.f32.gmra.mrb[0].mxu0 %v848
  %v986 = vpop.f32.mrb[0].mxu0
  %v987 = vadd.f32 %v108, %v986
  %v988 = vpop.f32.mrb[0].mxu0
  %989 = vdwg.mxu0
  %v990 = vadd.f32 %v230, %v916
  %v991 = vxor.u32 %v990, 2147483648
  %v992 = vmul.f32 %v991, 1.442695
  %v993 = vpow.pop %v992
  %v994 = vadd.f32 %v993, 1.0
  %v995 = vrcp.pop %v994
  %v996 = vmul.f32 1.0, %v995
  %v997 = vadd.f32 %v232, %v918
  %v998 = vxor.u32 %v997, 2147483648
  %v999 = vmul.f32 %v998, 1.442695
  %v1000 = vpow.pop %v999
  %v1001 = vadd.f32 %v1000, 1.0
  %v1002 = vrcp.pop %v1001
  %v1003 = vmul.f32 1.0, %v1002
  %v1004 = vmul.f32 %v996, %v987
  %v1005 = vadd.f32 %v340, %v1004
  %v1006 = vtanh.pop %v1005
  %v1007 = vsub.f32 1.0, %v1003
  %v1008 = vmul.f32 %v1007, %v1006
  %v1009 = vmul.f32 %v1003, %v848
  %v1010 = vadd.f32 %v1008, %v1009
  %1011 = vmatprep.subr.mxu0 %v48
  %1012 = vmatpush1.msra.mxu0 %v47
  %1013 = vmatprep.subr.mxu0 %v51
  %1014 = vmatpush1.msra.mxu0 %v50
  %1015 = vmatprep.subr.mxu0 %v54
  %1016 = vmatpush1.msra.mxu0 %v53
  %1017 = vmatprep.subr.mxu0 %v57
  %1018 = vmatpush1.msra.mxu0 %v56
  %1019 = vmatprep.subr.mxu0 %v60
  %1020 = vmatpush1.msra.mxu0 %v59
  %1021 = vmatprep.subr.mxu0 %v63
  %1022 = vmatpush1.msra.mxu0 %v62
  %1023 = vmatprep.subr.mxu0 %v66
  %1024 = vmatpush1.msra.mxu0 %v65
  %1025 = vmatprep.subr.mxu0 %v69
  %1026 = vmatpush1.msra.mxu0 %v68
  %1027 = vmatprep.subr.mxu0 %v72
  %1028 = vmatpush1.msra.mxu0 %v71
  %1029 = vmatprep.subr.mxu0 %v75
  %1030 = vmatpush1.msra.mxu0 %v74
  %1031 = vmatprep.subr.mxu0 %v78
  %1032 = vmatpush1.msra.mxu0 %v77
  %1033 = vmatprep.subr.mxu0 %v81
  %1034 = vmatpush1.msra.mxu0 %v80
  %1035 = vmatprep.subr.mxu0 %v84
  %1036 = vmatpush1.msra.mxu0 %v83
  %1037 = vmatprep.subr.mxu0 %v87
  %1038 = vmatpush1.msra.mxu0 %v86
  %1039 = vmatprep.subr.mxu0 %v90
  %1040 = vmatpush1.msra.mxu0 %v89
  %1041 = vmatprep.subr.mxu0 %v93
  %1042 = vmatpush1.msra.mxu0 %v92
  %1043 = vmatprep.subr.mxu0 0.0
  %1044 = vmatpush1.msra.mxu0 0.0
  %1045 = vmatprep.subr.mxu0 0.0
  %1046 = vmatpush1.msra.mxu0 0.0
  %1047 = vmatprep.subr.mxu0 0.0
  %1048 = vmatpush1.msra.mxu0 0.0
  %1049 = vmatprep.subr.mxu0 0.0
  %1050 = vmatpush1.msra.mxu0 0.0
  %1051 = vmatprep.subr.mxu0 0.0
  %1052 = vmatpush1.msra.mxu0 0.0
  %1053 = vmatprep.subr.mxu0 0.0
  %1054 = vmatpush1.msra.mxu0 0.0
  %1055 = vmatprep.subr.mxu0 0.0
  %1056 = vmatpush1.msra.mxu0 0.0
  %1057 = vmatprep.subr.mxu0 0.0
  %1058 = vmatpush1.msra.mxu0 0.0
  %1059 = vmatprep.subr.mxu0 0.0
  %1060 = vmatpush1.msra.mxu0 0.0
  %1061 = vmatprep.subr.mxu0 0.0
  %1062 = vmatpush1.msra.mxu0 0.0
  %1063 = vmatprep.subr.mxu0 0.0
  %1064 = vmatpush1.msra.mxu0 0.0
  %1065 = vmatprep.subr.mxu0 0.0
  %1066 = vmatpush1.msra.mxu0 0.0
  %1067 = vmatprep.subr.mxu0 0.0
  %1068 = vmatpush1.msra.mxu0 0.0
  %1069 = vmatprep.subr.mxu0 0.0
  %1070 = vmatpush1.msra.mxu0 0.0
  %1071 = vmatprep.subr.mxu0 0.0
  %1072 = vmatpush1.msra.mxu0 0.0
  %1073 = vmatprep.subr.mxu0 0.0
  %1074 = vmatpush1.msra.mxu0 0.0
  %1075 = vmatprep.mubr.f32.mxu0 0.0
  %1076 = vmatmul.mubr.f32.gmra.mrb[0].mxu0 %v1010
  %v1077 = vpop.f32.mrb[0].mxu0
  %v1078 = vadd.f32 %v100, %v1077
  %v1079 = vpop.f32.mrb[0].mxu0
  %v1080 = vadd.f32 %v104, %v1079
  %1081 = vdwg.mxu0
  %1082 = vmatprep.subr.mxu0 0.0
  %1083 = vmatpush1.msra.mxu0 %v49
  %1084 = vmatprep.subr.mxu0 0.0
  %1085 = vmatpush1.msra.mxu0 %v52
  %1086 = vmatprep.subr.mxu0 0.0
  %1087 = vmatpush1.msra.mxu0 %v55
  %1088 = vmatprep.subr.mxu0 0.0
  %1089 = vmatpush1.msra.mxu0 %v58
  %1090 = vmatprep.subr.mxu0 0.0
  %1091 = vmatpush1.msra.mxu0 %v61
  %1092 = vmatprep.subr.mxu0 0.0
  %1093 = vmatpush1.msra.mxu0 %v64
  %1094 = vmatprep.subr.mxu0 0.0
  %1095 = vmatpush1.msra.mxu0 %v67
  %1096 = vmatprep.subr.mxu0 0.0
  %1097 = vmatpush1.msra.mxu0 %v70
  %1098 = vmatprep.subr.mxu0 0.0
  %1099 = vmatpush1.msra.mxu0 %v73
  %1100 = vmatprep.subr.mxu0 0.0
  %1101 = vmatpush1.msra.mxu0 %v76
  %1102 = vmatprep.subr.mxu0 0.0
  %1103 = vmatpush1.msra.mxu0 %v79
  %1104 = vmatprep.subr.mxu0 0.0
  %1105 = vmatpush1.msra.mxu0 %v82
  %1106 = vmatprep.subr.mxu0 0.0
  %1107 = vmatpush1.msra.mxu0 %v85
  %1108 = vmatprep.subr.mxu0 0.0
  %1109 = vmatpush1.msra.mxu0 %v88
  %1110 = vmatprep.subr.mxu0 0.0
  %1111 = vmatpush1.msra.mxu0 %v91
  %1112 = vmatprep.subr.mxu0 0.0
  %1113 = vmatpush1.msra.mxu0 %v94
  %1114 = vmatprep.subr.mxu0 0.0
  %1115 = vmatpush1.msra.mxu0 0.0
  %1116 = vmatprep.subr.mxu0 0.0
  %1117 = vmatpush1.msra.mxu0 0.0
  %1118 = vmatprep.subr.mxu0 0.0
  %1119 = vmatpush1.msra.mxu0 0.0
  %1120 = vmatprep.subr.mxu0 0.0
  %1121 = vmatpush1.msra.mxu0 0.0
  %1122 = vmatprep.subr.mxu0 0.0
  %1123 = vmatpush1.msra.mxu0 0.0
  %1124 = vmatprep.subr.mxu0 0.0
  %1125 = vmatpush1.msra.mxu0 0.0
  %1126 = vmatprep.subr.mxu0 0.0
  %1127 = vmatpush1.msra.mxu0 0.0
  %1128 = vmatprep.subr.mxu0 0.0
  %1129 = vmatpush1.msra.mxu0 0.0
  %1130 = vmatprep.subr.mxu0 0.0
  %1131 = vmatpush1.msra.mxu0 0.0
  %1132 = vmatprep.subr.mxu0 0.0
  %1133 = vmatpush1.msra.mxu0 0.0
  %1134 = vmatprep.subr.mxu0 0.0
  %1135 = vmatpush1.msra.mxu0 0.0
  %1136 = vmatprep.subr.mxu0 0.0
  %1137 = vmatpush1.msra.mxu0 0.0
  %1138 = vmatprep.subr.mxu0 0.0
  %1139 = vmatpush1.msra.mxu0 0.0
  %1140 = vmatprep.subr.mxu0 0.0
  %1141 = vmatpush1.msra.mxu0 0.0
  %1142 = vmatprep.subr.mxu0 0.0
  %1143 = vmatpush1.msra.mxu0 0.0
  %1144 = vmatprep.subr.mxu0 0.0
  %1145 = vmatpush1.msra.mxu0 0.0
  %1146 = vmatprep.mubr.f32.mxu0 0.0
  %1147 = vmatmul.mubr.f32.gmra.mrb[0].mxu0 %v1010
  %v1148 = vpop.f32.mrb[0].mxu0
  %v1149 = vadd.f32 %v108, %v1148
  %v1150 = vpop.f32.mrb[0].mxu0
  %1151 = vdwg.mxu0
  %v1152 = vadd.f32 %v236, %v1078
  %v1153 = vxor.u32 %v1152, 2147483648
  %v1154 = vmul.f32 %v1153, 1.442695
  %v1155 = vpow.pop %v1154
  %v1156 = vadd.f32 %v1155, 1.0
  %v1157 = vrcp.pop %v1156
  %v1158 = vmul.f32 1.0, %v1157
  %v1159 = vadd.f32 %v238, %v1080
  %v1160 = vxor.u32 %v1159, 2147483648
  %v1161 = vmul.f32 %v1160, 1.442695
  %v1162 = vpow.pop %v1161
  %v1163 = vadd.f32 %v1162, 1.0
  %v1164 = vrcp.pop %v1163
  %v1165 = vmul.f32 1.0, %v1164
  %v1166 = vmul.f32 %v1158, %v1149
  %v1167 = vadd.f32 %v345, %v1166
  %v1168 = vtanh.pop %v1167
  %v1169 = vsub.f32 1.0, %v1165
  %v1170 = vmul.f32 %v1169, %v1168
  %v1171 = vmul.f32 %v1165, %v1010
  %v1172 = vadd.f32 %v1170, %v1171
  %1173 = vmatprep.subr.mxu0 %v48
  %1174 = vmatpush1.msra.mxu0 %v47
  %1175 = vmatprep.subr.mxu0 %v51
  %1176 = vmatpush1.msra.mxu0 %v50
  %1177 = vmatprep.subr.mxu0 %v54
  %1178 = vmatpush1.msra.mxu0 %v53
  %1179 = vmatprep.subr.mxu0 %v57
  %1180 = vmatpush1.msra.mxu0 %v56
  %1181 = vmatprep.subr.mxu0 %v60
  %1182 = vmatpush1.msra.mxu0 %v59
  %1183 = vmatprep.subr.mxu0 %v63
  %1184 = vmatpush1.msra.mxu0 %v62
  %1185 = vmatprep.subr.mxu0 %v66
  %1186 = vmatpush1.msra.mxu0 %v65
  %1187 = vmatprep.subr.mxu0 %v69
  %1188 = vmatpush1.msra.mxu0 %v68
  %1189 = vmatprep.subr.mxu0 %v72
  %1190 = vmatpush1.msra.mxu0 %v71
  %1191 = vmatprep.subr.mxu0 %v75
  %1192 = vmatpush1.msra.mxu0 %v74
  %1193 = vmatprep.subr.mxu0 %v78
  %1194 = vmatpush1.msra.mxu0 %v77
  %1195 = vmatprep.subr.mxu0 %v81
  %1196 = vmatpush1.msra.mxu0 %v80
  %1197 = vmatprep.subr.mxu0 %v84
  %1198 = vmatpush1.msra.mxu0 %v83
  %1199 = vmatprep.subr.mxu0 %v87
  %1200 = vmatpush1.msra.mxu0 %v86
  %1201 = vmatprep.subr.mxu0 %v90
  %1202 = vmatpush1.msra.mxu0 %v89
  %1203 = vmatprep.subr.mxu0 %v93
  %1204 = vmatpush1.msra.mxu0 %v92
  %1205 = vmatprep.subr.mxu0 0.0
  %1206 = vmatpush1.msra.mxu0 0.0
  %1207 = vmatprep.subr.mxu0 0.0
  %1208 = vmatpush1.msra.mxu0 0.0
  %1209 = vmatprep.subr.mxu0 0.0
  %1210 = vmatpush1.msra.mxu0 0.0
  %1211 = vmatprep.subr.mxu0 0.0
  %1212 = vmatpush1.msra.mxu0 0.0
  %1213 = vmatprep.subr.mxu0 0.0
  %1214 = vmatpush1.msra.mxu0 0.0
  %1215 = vmatprep.subr.mxu0 0.0
  %1216 = vmatpush1.msra.mxu0 0.0
  %1217 = vmatprep.subr.mxu0 0.0
  %1218 = vmatpush1.msra.mxu0 0.0
  %1219 = vmatprep.subr.mxu0 0.0
  %1220 = vmatpush1.msra.mxu0 0.0
  %1221 = vmatprep.subr.mxu0 0.0
  %1222 = vmatpush1.msra.mxu0 0.0
  %1223 = vmatprep.subr.mxu0 0.0
  %1224 = vmatpush1.msra.mxu0 0.0
  %1225 = vmatprep.subr.mxu0 0.0
  %1226 = vmatpush1.msra.mxu0 0.0
  %1227 = vmatprep.subr.mxu0 0.0
  %1228 = vmatpush1.msra.mxu0 0.0
  %1229 = vmatprep.subr.mxu0 0.0
  %1230 = vmatpush1.msra.mxu0 0.0
  %1231 = vmatprep.subr.mxu0 0.0
  %1232 = vmatpush1.msra.mxu0 0.0
  %1233 = vmatprep.subr.mxu0 0.0
  %1234 = vmatpush1.msra.mxu0 0.0
  %1235 = vmatprep.subr.mxu0 0.0
  %1236 = vmatpush1.msra.mxu0 0.0
  %1237 = vmatprep.mubr.f32.mxu0 0.0
  %1238 = vmatmul.mubr.f32.gmra.mrb[0].mxu0 %v1172
  %v1239 = vpop.f32.mrb[0].mxu0
  %v1240 = vadd.f32 %v100, %v1239
  %v1241 = vpop.f32.mrb[0].mxu0
  %v1242 = vadd.f32 %v104, %v1241
  %1243 = vdwg.mxu0
  %1244 = vmatprep.subr.mxu0 0.0
  %1245 = vmatpush1.msra.mxu0 %v49
  %1246 = vmatprep.subr.mxu0 0.0
  %1247 = vmatpush1.msra.mxu0 %v52
  %1248 = vmatprep.subr.mxu0 0.0
  %1249 = vmatpush1.msra.mxu0 %v55
  %1250 = vmatprep.subr.mxu0 0.0
  %1251 = vmatpush1.msra.mxu0 %v58
  %1252 = vmatprep.subr.mxu0 0.0
  %1253 = vmatpush1.msra.mxu0 %v61
  %1254 = vmatprep.subr.mxu0 0.0
  %1255 = vmatpush1.msra.mxu0 %v64
  %1256 = vmatprep.subr.mxu0 0.0
  %1257 = vmatpush1.msra.mxu0 %v67
  %1258 = vmatprep.subr.mxu0 0.0
  %1259 = vmatpush1.msra.mxu0 %v70
  %1260 = vmatprep.subr.mxu0 0.0
  %1261 = vmatpush1.msra.mxu0 %v73
  %1262 = vmatprep.subr.mxu0 0.0
  %1263 = vmatpush1.msra.mxu0 %v76
  %1264 = vmatprep.subr.mxu0 0.0
  %1265 = vmatpush1.msra.mxu0 %v79
  %1266 = vmatprep.subr.mxu0 0.0
  %1267 = vmatpush1.msra.mxu0 %v82
  %1268 = vmatprep.subr.mxu0 0.0
  %1269 = vmatpush1.msra.mxu0 %v85
  %1270 = vmatprep.subr.mxu0 0.0
  %1271 = vmatpush1.msra.mxu0 %v88
  %1272 = vmatprep.subr.mxu0 0.0
  %1273 = vmatpush1.msra.mxu0 %v91
  %1274 = vmatprep.subr.mxu0 0.0
  %1275 = vmatpush1.msra.mxu0 %v94
  %1276 = vmatprep.subr.mxu0 0.0
  %1277 = vmatpush1.msra.mxu0 0.0
  %1278 = vmatprep.subr.mxu0 0.0
  %1279 = vmatpush1.msra.mxu0 0.0
  %1280 = vmatprep.subr.mxu0 0.0
  %1281 = vmatpush1.msra.mxu0 0.0
  %1282 = vmatprep.subr.mxu0 0.0
  %1283 = vmatpush1.msra.mxu0 0.0
  %1284 = vmatprep.subr.mxu0 0.0
  %1285 = vmatpush1.msra.mxu0 0.0
  %1286 = vmatprep.subr.mxu0 0.0
  %1287 = vmatpush1.msra.mxu0 0.0
  %1288 = vmatprep.subr.mxu0 0.0
  %1289 = vmatpush1.msra.mxu0 0.0
  %1290 = vmatprep.subr.mxu0 0.0
  %1291 = vmatpush1.msra.mxu0 0.0
  %1292 = vmatprep.subr.mxu0 0.0
  %1293 = vmatpush1.msra.mxu0 0.0
  %1294 = vmatprep.subr.mxu0 0.0
  %1295 = vmatpush1.msra.mxu0 0.0
  %1296 = vmatprep.subr.mxu0 0.0
  %1297 = vmatpush1.msra.mxu0 0.0
  %1298 = vmatprep.subr.mxu0 0.0
  %1299 = vmatpush1.msra.mxu0 0.0
  %1300 = vmatprep.subr.mxu0 0.0
  %1301 = vmatpush1.msra.mxu0 0.0
  %1302 = vmatprep.subr.mxu0 0.0
  %1303 = vmatpush1.msra.mxu0 0.0
  %1304 = vmatprep.subr.mxu0 0.0
  %1305 = vmatpush1.msra.mxu0 0.0
  %1306 = vmatprep.subr.mxu0 0.0
  %1307 = vmatpush1.msra.mxu0 0.0
  %1308 = vmatprep.mubr.f32.mxu0 0.0
  %1309 = vmatmul.mubr.f32.gmra.mrb[0].mxu0 %v1172
  %v1310 = vpop.f32.mrb[0].mxu0
  %v1311 = vadd.f32 %v108, %v1310
  %v1312 = vpop.f32.mrb[0].mxu0
  %1313 = vdwg.mxu0
  %v1314 = vadd.f32 %v242, %v1240
  %v1315 = vxor.u32 %v1314, 2147483648
  %v1316 = vmul.f32 %v1315, 1.442695
  %v1317 = vpow.pop %v1316
  %v1318 = vadd.f32 %v1317, 1.0
  %v1319 = vrcp.pop %v1318
  %v1320 = vmul.f32 1.0, %v1319
  %v1321 = vadd.f32 %v244, %v1242
  %v1322 = vxor.u32 %v1321, 2147483648
  %v1323 = vmul.f32 %v1322, 1.442695
  %v1324 = vpow.pop %v1323
  %v1325 = vadd.f32 %v1324, 1.0
  %v1326 = vrcp.pop %v1325
  %v1327 = vmul.f32 1.0, %v1326
  %v1328 = vmul.f32 %v1320, %v1311
  %v1329 = vadd.f32 %v350, %v1328
  %v1330 = vtanh.pop %v1329
  %v1331 = vsub.f32 1.0, %v1327
  %v1332 = vmul.f32 %v1331, %v1330
  %v1333 = vmul.f32 %v1327, %v1172
  %v1334 = vadd.f32 %v1332, %v1333
  %1335 = vmatprep.subr.mxu0 %v48
  %1336 = vmatpush1.msra.mxu0 %v47
  %1337 = vmatprep.subr.mxu0 %v51
  %1338 = vmatpush1.msra.mxu0 %v50
  %1339 = vmatprep.subr.mxu0 %v54
  %1340 = vmatpush1.msra.mxu0 %v53
  %1341 = vmatprep.subr.mxu0 %v57
  %1342 = vmatpush1.msra.mxu0 %v56
  %1343 = vmatprep.subr.mxu0 %v60
  %1344 = vmatpush1.msra.mxu0 %v59
  %1345 = vmatprep.subr.mxu0 %v63
  %1346 = vmatpush1.msra.mxu0 %v62
  %1347 = vmatprep.subr.mxu0 %v66
  %1348 = vmatpush1.msra.mxu0 %v65
  %1349 = vmatprep.subr.mxu0 %v69
  %1350 = vmatpush1.msra.mxu0 %v68
  %1351 = vmatprep.subr.mxu0 %v72
  %1352 = vmatpush1.msra.mxu0 %v71
  %1353 = vmatprep.subr.mxu0 %v75
  %1354 = vmatpush1.msra.mxu0 %v74
  %1355 = vmatprep.subr.mxu0 %v78
  %1356 = vmatpush1.msra.mxu0 %v77
  %1357 = vmatprep.subr.mxu0 %v81
  %1358 = vmatpush1.msra.mxu0 %v80
  %1359 = vmatprep.subr.mxu0 %v84
  %1360 = vmatpush1.msra.mxu0 %v83
  %1361 = vmatprep.subr.mxu0 %v87
  %1362 = vmatpush1.msra.mxu0 %v86
  %1363 = vmatprep.subr.mxu0 %v90
  %1364 = vmatpush1.msra.mxu0 %v89
  %1365 = vmatprep.subr.mxu0 %v93
  %1366 = vmatpush1.msra.mxu0 %v92
  %1367 = vmatprep.subr.mxu0 0.0
  %1368 = vmatpush1.msra.mxu0 0.0
  %1369 = vmatprep.subr.mxu0 0.0
  %1370 = vmatpush1.msra.mxu0 0.0
  %1371 = vmatprep.subr.mxu0 0.0
  %1372 = vmatpush1.msra.mxu0 0.0
  %1373 = vmatprep.subr.mxu0 0.0
  %1374 = vmatpush1.msra.mxu0 0.0
  %1375 = vmatprep.subr.mxu0 0.0
  %1376 = vmatpush1.msra.mxu0 0.0
  %1377 = vmatprep.subr.mxu0 0.0
  %1378 = vmatpush1.msra.mxu0 0.0
  %1379 = vmatprep.subr.mxu0 0.0
  %1380 = vmatpush1.msra.mxu0 0.0
  %1381 = vmatprep.subr.mxu0 0.0
  %1382 = vmatpush1.msra.mxu0 0.0
  %1383 = vmatprep.subr.mxu0 0.0
  %1384 = vmatpush1.msra.mxu0 0.0
  %1385 = vmatprep.subr.mxu0 0.0
  %1386 = vmatpush1.msra.mxu0 0.0
  %1387 = vmatprep.subr.mxu0 0.0
  %1388 = vmatpush1.msra.mxu0 0.0
  %1389 = vmatprep.subr.mxu0 0.0
  %1390 = vmatpush1.msra.mxu0 0.0
  %1391 = vmatprep.subr.mxu0 0.0
  %1392 = vmatpush1.msra.mxu0 0.0
  %1393 = vmatprep.subr.mxu0 0.0
  %1394 = vmatpush1.msra.mxu0 0.0
  %1395 = vmatprep.subr.mxu0 0.0
  %1396 = vmatpush1.msra.mxu0 0.0
  %1397 = vmatprep.subr.mxu0 0.0
  %1398 = vmatpush1.msra.mxu0 0.0
  %1399 = vmatprep.mubr.f32.mxu0 0.0
  %1400 = vmatmul.mubr.f32.gmra.mrb[0].mxu0 %v1334
  %v1401 = vpop.f32.mrb[0].mxu0
  %v1402 = vadd.f32 %v100, %v1401
  %v1403 = vpop.f32.mrb[0].mxu0
  %v1404 = vadd.f32 %v104, %v1403
  %1405 = vdwg.mxu0
  %1406 = vmatprep.subr.mxu0 0.0
  %1407 = vmatpush1.msra.mxu0 %v49
  %1408 = vmatprep.subr.mxu0 0.0
  %1409 = vmatpush1.msra.mxu0 %v52
  %1410 = vmatprep.subr.mxu0 0.0
  %1411 = vmatpush1.msra.mxu0 %v55
  %1412 = vmatprep.subr.mxu0 0.0
  %1413 = vmatpush1.msra.mxu0 %v58
  %1414 = vmatprep.subr.mxu0 0.0
  %1415 = vmatpush1.msra.mxu0 %v61
  %1416 = vmatprep.subr.mxu0 0.0
  %1417 = vmatpush1.msra.mxu0 %v64
  %1418 = vmatprep.subr.mxu0 0.0
  %1419 = vmatpush1.msra.mxu0 %v67
  %1420 = vmatprep.subr.mxu0 0.0
  %1421 = vmatpush1.msra.mxu0 %v70
  %1422 = vmatprep.subr.mxu0 0.0
  %1423 = vmatpush1.msra.mxu0 %v73
  %1424 = vmatprep.subr.mxu0 0.0
  %1425 = vmatpush1.msra.mxu0 %v76
  %1426 = vmatprep.subr.mxu0 0.0
  %1427 = vmatpush1.msra.mxu0 %v79
  %1428 = vmatprep.subr.mxu0 0.0
  %1429 = vmatpush1.msra.mxu0 %v82
  %1430 = vmatprep.subr.mxu0 0.0
  %1431 = vmatpush1.msra.mxu0 %v85
  %1432 = vmatprep.subr.mxu0 0.0
  %1433 = vmatpush1.msra.mxu0 %v88
  %1434 = vmatprep.subr.mxu0 0.0
  %1435 = vmatpush1.msra.mxu0 %v91
  %1436 = vmatprep.subr.mxu0 0.0
  %1437 = vmatpush1.msra.mxu0 %v94
  %1438 = vmatprep.subr.mxu0 0.0
  %1439 = vmatpush1.msra.mxu0 0.0
  %1440 = vmatprep.subr.mxu0 0.0
  %1441 = vmatpush1.msra.mxu0 0.0
  %1442 = vmatprep.subr.mxu0 0.0
  %1443 = vmatpush1.msra.mxu0 0.0
  %1444 = vmatprep.subr.mxu0 0.0
  %1445 = vmatpush1.msra.mxu0 0.0
  %1446 = vmatprep.subr.mxu0 0.0
  %1447 = vmatpush1.msra.mxu0 0.0
  %1448 = vmatprep.subr.mxu0 0.0
  %1449 = vmatpush1.msra.mxu0 0.0
  %1450 = vmatprep.subr.mxu0 0.0
  %1451 = vmatpush1.msra.mxu0 0.0
  %1452 = vmatprep.subr.mxu0 0.0
  %1453 = vmatpush1.msra.mxu0 0.0
  %1454 = vmatprep.subr.mxu0 0.0
  %1455 = vmatpush1.msra.mxu0 0.0
  %1456 = vmatprep.subr.mxu0 0.0
  %1457 = vmatpush1.msra.mxu0 0.0
  %1458 = vmatprep.subr.mxu0 0.0
  %1459 = vmatpush1.msra.mxu0 0.0
  %1460 = vmatprep.subr.mxu0 0.0
  %1461 = vmatpush1.msra.mxu0 0.0
  %1462 = vmatprep.subr.mxu0 0.0
  %1463 = vmatpush1.msra.mxu0 0.0
  %1464 = vmatprep.subr.mxu0 0.0
  %1465 = vmatpush1.msra.mxu0 0.0
  %1466 = vmatprep.subr.mxu0 0.0
  %1467 = vmatpush1.msra.mxu0 0.0
  %1468 = vmatprep.subr.mxu0 0.0
  %1469 = vmatpush1.msra.mxu0 0.0
  %1470 = vmatprep.mubr.f32.mxu0 0.0
  %1471 = vmatmul.mubr.f32.gmra.mrb[0].mxu0 %v1334
  %v1472 = vpop.f32.mrb[0].mxu0
  %v1473 = vadd.f32 %v108, %v1472
  %v1474 = vpop.f32.mrb[0].mxu0
  %1475 = vdwg.mxu0
  %v1476 = vadd.f32 %v248, %v1402
  %v1477 = vxor.u32 %v1476, 2147483648
  %v1478 = vmul.f32 %v1477, 1.442695
  %v1479 = vpow.pop %v1478
  %v1480 = vadd.f32 %v1479, 1.0
  %v1481 = vrcp.pop %v1480
  %v1482 = vmul.f32 1.0, %v1481
  %v1483 = vadd.f32 %v250, %v1404
  %v1484 = vxor.u32 %v1483, 2147483648
  %v1485 = vmul.f32 %v1484, 1.442695
  %v1486 = vpow.pop %v1485
  %v1487 = vadd.f32 %v1486, 1.0
  %v1488 = vrcp.pop %v1487
  %v1489 = vmul.f32 1.0, %v1488
  %v1490 = vmul.f32 %v1482, %v1473
  %v1491 = vadd.f32 %v355, %v1490
  %v1492 = vtanh.pop %v1491
  %v1493 = vsub.f32 1.0, %v1489
  %v1494 = vmul.f32 %v1493, %v1492
  %v1495 = vmul.f32 %v1489, %v1334
  %v1496 = vadd.f32 %v1494, %v1495
  %1497 = vmatprep.subr.mxu0 %v48
  %1498 = vmatpush1.msra.mxu0 %v47
  %1499 = vmatprep.subr.mxu0 %v51
  %1500 = vmatpush1.msra.mxu0 %v50
  %1501 = vmatprep.subr.mxu0 %v54
  %1502 = vmatpush1.msra.mxu0 %v53
  %1503 = vmatprep.subr.mxu0 %v57
  %1504 = vmatpush1.msra.mxu0 %v56
  %1505 = vmatprep.subr.mxu0 %v60
  %1506 = vmatpush1.msra.mxu0 %v59
  %1507 = vmatprep.subr.mxu0 %v63
  %1508 = vmatpush1.msra.mxu0 %v62
  %1509 = vmatprep.subr.mxu0 %v66
  %1510 = vmatpush1.msra.mxu0 %v65
  %1511 = vmatprep.subr.mxu0 %v69
  %1512 = vmatpush1.msra.mxu0 %v68
  %1513 = vmatprep.subr.mxu0 %v72
  %1514 = vmatpush1.msra.mxu0 %v71
  %1515 = vmatprep.subr.mxu0 %v75
  %1516 = vmatpush1.msra.mxu0 %v74
  %1517 = vmatprep.subr.mxu0 %v78
  %1518 = vmatpush1.msra.mxu0 %v77
  %1519 = vmatprep.subr.mxu0 %v81
  %1520 = vmatpush1.msra.mxu0 %v80
  %1521 = vmatprep.subr.mxu0 %v84
  %1522 = vmatpush1.msra.mxu0 %v83
  %1523 = vmatprep.subr.mxu0 %v87
  %1524 = vmatpush1.msra.mxu0 %v86
  %1525 = vmatprep.subr.mxu0 %v90
  %1526 = vmatpush1.msra.mxu0 %v89
  %1527 = vmatprep.subr.mxu0 %v93
  %1528 = vmatpush1.msra.mxu0 %v92
  %1529 = vmatprep.subr.mxu0 0.0
  %1530 = vmatpush1.msra.mxu0 0.0
  %1531 = vmatprep.subr.mxu0 0.0
  %1532 = vmatpush1.msra.mxu0 0.0
  %1533 = vmatprep.subr.mxu0 0.0
  %1534 = vmatpush1.msra.mxu0 0.0
  %1535 = vmatprep.subr.mxu0 0.0
  %1536 = vmatpush1.msra.mxu0 0.0
  %1537 = vmatprep.subr.mxu0 0.0
  %1538 = vmatpush1.msra.mxu0 0.0
  %1539 = vmatprep.subr.mxu0 0.0
  %1540 = vmatpush1.msra.mxu0 0.0
  %1541 = vmatprep.subr.mxu0 0.0
  %1542 = vmatpush1.msra.mxu0 0.0
  %1543 = vmatprep.subr.mxu0 0.0
  %1544 = vmatpush1.msra.mxu0 0.0
  %1545 = vmatprep.subr.mxu0 0.0
  %1546 = vmatpush1.msra.mxu0 0.0
  %1547 = vmatprep.subr.mxu0 0.0
  %1548 = vmatpush1.msra.mxu0 0.0
  %1549 = vmatprep.subr.mxu0 0.0
  %1550 = vmatpush1.msra.mxu0 0.0
  %1551 = vmatprep.subr.mxu0 0.0
  %1552 = vmatpush1.msra.mxu0 0.0
  %1553 = vmatprep.subr.mxu0 0.0
  %1554 = vmatpush1.msra.mxu0 0.0
  %1555 = vmatprep.subr.mxu0 0.0
  %1556 = vmatpush1.msra.mxu0 0.0
  %1557 = vmatprep.subr.mxu0 0.0
  %1558 = vmatpush1.msra.mxu0 0.0
  %1559 = vmatprep.subr.mxu0 0.0
  %1560 = vmatpush1.msra.mxu0 0.0
  %1561 = vmatprep.mubr.f32.mxu0 0.0
  %1562 = vmatmul.mubr.f32.gmra.mrb[0].mxu0 %v1496
  %v1563 = vpop.f32.mrb[0].mxu0
  %v1564 = vadd.f32 %v100, %v1563
  %v1565 = vpop.f32.mrb[0].mxu0
  %v1566 = vadd.f32 %v104, %v1565
  %1567 = vdwg.mxu0
  %1568 = vmatprep.subr.mxu0 0.0
  %1569 = vmatpush1.msra.mxu0 %v49
  %1570 = vmatprep.subr.mxu0 0.0
  %1571 = vmatpush1.msra.mxu0 %v52
  %1572 = vmatprep.subr.mxu0 0.0
  %1573 = vmatpush1.msra.mxu0 %v55
  %1574 = vmatprep.subr.mxu0 0.0
  %1575 = vmatpush1.msra.mxu0 %v58
  %1576 = vmatprep.subr.mxu0 0.0
  %1577 = vmatpush1.msra.mxu0 %v61
  %1578 = vmatprep.subr.mxu0 0.0
  %1579 = vmatpush1.msra.mxu0 %v64
  %1580 = vmatprep.subr.mxu0 0.0
  %1581 = vmatpush1.msra.mxu0 %v67
  %1582 = vmatprep.subr.mxu0 0.0
  %1583 = vmatpush1.msra.mxu0 %v70
  %1584 = vmatprep.subr.mxu0 0.0
  %1585 = vmatpush1.msra.mxu0 %v73
  %1586 = vmatprep.subr.mxu0 0.0
  %1587 = vmatpush1.msra.mxu0 %v76
  %1588 = vmatprep.subr.mxu0 0.0
  %1589 = vmatpush1.msra.mxu0 %v79
  %1590 = vmatprep.subr.mxu0 0.0
  %1591 = vmatpush1.msra.mxu0 %v82
  %1592 = vmatprep.subr.mxu0 0.0
  %1593 = vmatpush1.msra.mxu0 %v85
  %1594 = vmatprep.subr.mxu0 0.0
  %1595 = vmatpush1.msra.mxu0 %v88
  %1596 = vmatprep.subr.mxu0 0.0
  %1597 = vmatpush1.msra.mxu0 %v91
  %1598 = vmatprep.subr.mxu0 0.0
  %1599 = vmatpush1.msra.mxu0 %v94
  %1600 = vmatprep.subr.mxu0 0.0
  %1601 = vmatpush1.msra.mxu0 0.0
  %1602 = vmatprep.subr.mxu0 0.0
  %1603 = vmatpush1.msra.mxu0 0.0
  %1604 = vmatprep.subr.mxu0 0.0
  %1605 = vmatpush1.msra.mxu0 0.0
  %1606 = vmatprep.subr.mxu0 0.0
  %1607 = vmatpush1.msra.mxu0 0.0
  %1608 = vmatprep.subr.mxu0 0.0
  %1609 = vmatpush1.msra.mxu0 0.0
  %1610 = vmatprep.subr.mxu0 0.0
  %1611 = vmatpush1.msra.mxu0 0.0
  %1612 = vmatprep.subr.mxu0 0.0
  %1613 = vmatpush1.msra.mxu0 0.0
  %1614 = vmatprep.subr.mxu0 0.0
  %1615 = vmatpush1.msra.mxu0 0.0
  %1616 = vmatprep.subr.mxu0 0.0
  %1617 = vmatpush1.msra.mxu0 0.0
  %1618 = vmatprep.subr.mxu0 0.0
  %1619 = vmatpush1.msra.mxu0 0.0
  %1620 = vmatprep.subr.mxu0 0.0
  %1621 = vmatpush1.msra.mxu0 0.0
  %1622 = vmatprep.subr.mxu0 0.0
  %1623 = vmatpush1.msra.mxu0 0.0
  %1624 = vmatprep.subr.mxu0 0.0
  %1625 = vmatpush1.msra.mxu0 0.0
  %1626 = vmatprep.subr.mxu0 0.0
  %1627 = vmatpush1.msra.mxu0 0.0
  %1628 = vmatprep.subr.mxu0 0.0
  %1629 = vmatpush1.msra.mxu0 0.0
  %1630 = vmatprep.subr.mxu0 0.0
  %1631 = vmatpush1.msra.mxu0 0.0
  %1632 = vmatprep.mubr.f32.mxu0 0.0
  %1633 = vmatmul.mubr.f32.gmra.mrb[0].mxu0 %v1496
  %v1634 = vpop.f32.mrb[0].mxu0
  %v1635 = vadd.f32 %v108, %v1634
  %v1636 = vpop.f32.mrb[0].mxu0
  %1637 = vdwg.mxu0
  %v1638 = vadd.f32 %v254, %v1564
  %v1639 = vxor.u32 %v1638, 2147483648
  %v1640 = vmul.f32 %v1639, 1.442695
  %v1641 = vpow.pop %v1640
  %v1642 = vadd.f32 %v1641, 1.0
  %v1643 = vrcp.pop %v1642
  %v1644 = vmul.f32 1.0, %v1643
  %v1645 = vadd.f32 %v256, %v1566
  %v1646 = vxor.u32 %v1645, 2147483648
  %v1647 = vmul.f32 %v1646, 1.442695
  %v1648 = vpow.pop %v1647
  %v1649 = vadd.f32 %v1648, 1.0
  %v1650 = vrcp.pop %v1649
  %v1651 = vmul.f32 1.0, %v1650
  %v1652 = vmul.f32 %v1644, %v1635
  %v1653 = vadd.f32 %v360, %v1652
  %v1654 = vtanh.pop %v1653
  %v1655 = vsub.f32 1.0, %v1651
  %v1656 = vmul.f32 %v1655, %v1654
  %v1657 = vmul.f32 %v1651, %v1496
  %v1658 = vadd.f32 %v1656, %v1657
  %v1659 = vld [vmem:[%s7] sm:$0xff]
  %v1660 = vld [vmem:[%s7 + $0x8] sm:$0xff]
  %v1661 = vld [vmem:[%s7 + $0x10] sm:$0xff]
  %v1662 = vld [vmem:[%s7 + $0x18] sm:$0xff]
  %v1663 = vld [vmem:[%s7 + $0x20] sm:$0xff]
  %v1664 = vld [vmem:[%s7 + $0x28] sm:$0xff]
  %v1665 = vld [vmem:[%s7 + $0x30] sm:$0xff]
  %v1666 = vld [vmem:[%s7 + $0x38] sm:$0xff]
  %v1667 = vld [vmem:[%s7 + $0x40] sm:$0xff]
  %v1668 = vld [vmem:[%s7 + $0x48] sm:$0xff]
  %v1669 = vld [vmem:[%s7 + $0x50] sm:$0xff]
  %v1670 = vld [vmem:[%s7 + $0x58] sm:$0xff]
  %v1671 = vld [vmem:[%s7 + $0x60] sm:$0xff]
  %v1672 = vld [vmem:[%s7 + $0x68] sm:$0xff]
  %v1673 = vld [vmem:[%s7 + $0x70] sm:$0xff]
  %v1674 = vld [vmem:[%s7 + $0x78] sm:$0xff]
  %v1675 = vld [vmem:[%s7 + $0x80] sm:$0x7]
  %v1676 = vld [vmem:[%s1] sm:$0xff]
  %vm1677 = vcmask 23552
  %v1679 = vsel %vm1677, %v1676, 0
  %vm1681 = vcmask 1042432
  %v1683 = vsel %vm1681, %v1675, 0
  %1685 = vmatprep.subr.mxu0 0.0
  %1686 = vmatpush1.msra.mxu0 %v1683
  %1687 = vmatprep.subr.mxu0 0.0
  %1688 = vmatpush1.msra.mxu0 0.0
  %1689 = vmatprep.subr.mxu0 0.0
  %1690 = vmatpush1.msra.mxu0 0.0
  %1691 = vmatprep.subr.mxu0 0.0
  %1692 = vmatpush1.msra.mxu0 0.0
  %1693 = vmatprep.subr.mxu0 0.0
  %1694 = vmatpush1.msra.mxu0 0.0
  %1695 = vmatprep.subr.mxu0 0.0
  %1696 = vmatpush1.msra.mxu0 0.0
  %1697 = vmatprep.subr.mxu0 0.0
  %1698 = vmatpush1.msra.mxu0 0.0
  %1699 = vmatprep.subr.mxu0 0.0
  %1700 = vmatpush1.msra.mxu0 0.0
  %1701 = vmatprep.subr.mxu0 0.0
  %1702 = vmatpush1.msra.mxu0 0.0
  %1703 = vmatprep.subr.mxu0 0.0
  %1704 = vmatpush1.msra.mxu0 0.0
  %1705 = vmatprep.subr.mxu0 0.0
  %1706 = vmatpush1.msra.mxu0 0.0
  %1707 = vmatprep.subr.mxu0 0.0
  %1708 = vmatpush1.msra.mxu0 0.0
  %1709 = vmatprep.subr.mxu0 0.0
  %1710 = vmatpush1.msra.mxu0 0.0
  %1711 = vmatprep.subr.mxu0 0.0
  %1712 = vmatpush1.msra.mxu0 0.0
  %1713 = vmatprep.subr.mxu0 0.0
  %1714 = vmatpush1.msra.mxu0 0.0
  %1715 = vmatprep.subr.mxu0 0.0
  %1716 = vmatpush1.msra.mxu0 0.0
  %1717 = vmatprep.subr.mxu0 0.0
  %1718 = vmatpush1.msra.mxu0 0.0
  %1719 = vmatprep.subr.mxu0 0.0
  %1720 = vmatpush1.msra.mxu0 0.0
  %1721 = vmatprep.subr.mxu0 0.0
  %1722 = vmatpush1.msra.mxu0 0.0
  %1723 = vmatprep.subr.mxu0 0.0
  %1724 = vmatpush1.msra.mxu0 0.0
  %1725 = vmatprep.subr.mxu0 0.0
  %1726 = vmatpush1.msra.mxu0 0.0
  %1727 = vmatprep.subr.mxu0 0.0
  %1728 = vmatpush1.msra.mxu0 0.0
  %1729 = vmatprep.subr.mxu0 0.0
  %1730 = vmatpush1.msra.mxu0 0.0
  %1731 = vmatprep.subr.mxu0 0.0
  %1732 = vmatpush1.msra.mxu0 0.0
  %1733 = vmatprep.subr.mxu0 0.0
  %1734 = vmatpush1.msra.mxu0 0.0
  %1735 = vmatprep.subr.mxu0 0.0
  %1736 = vmatpush1.msra.mxu0 0.0
  %1737 = vmatprep.subr.mxu0 0.0
  %1738 = vmatpush1.msra.mxu0 0.0
  %1739 = vmatprep.subr.mxu0 0.0
  %1740 = vmatpush1.msra.mxu0 0.0
  %1741 = vmatprep.subr.mxu0 0.0
  %1742 = vmatpush1.msra.mxu0 0.0
  %1743 = vmatprep.subr.mxu0 0.0
  %1744 = vmatpush1.msra.mxu0 0.0
  %1745 = vmatprep.subr.mxu0 0.0
  %1746 = vmatpush1.msra.mxu0 0.0
  %1747 = vmatprep.subr.mxu0 0.0
  %1748 = vmatpush1.msra.mxu0 0.0
  %1749 = vmatprep.mubr.f32.mxu0 0.0
  %1750 = vmatmul.mubr.f32.gmra.mrb[0].mxu0 %v1679
  %v1751 = vpop.f32.mrb[0].mxu0
  %v1752 = vadd.f32 0.0, %v1751
  %v1753 = vpop.f32.mrb[0].mxu0
  %1754 = vdwg.mxu0
  %1755 = vmatprep.subr.mxu0 0.0
  %1756 = vmatpush1.msra.mxu0 %v1659
  %1757 = vmatprep.subr.mxu0 0.0
  %1758 = vmatpush1.msra.mxu0 %v1660
  %1759 = vmatprep.subr.mxu0 0.0
  %1760 = vmatpush1.msra.mxu0 %v1661
  %1761 = vmatprep.subr.mxu0 0.0
  %1762 = vmatpush1.msra.mxu0 %v1662
  %1763 = vmatprep.subr.mxu0 0.0
  %1764 = vmatpush1.msra.mxu0 %v1663
  %1765 = vmatprep.subr.mxu0 0.0
  %1766 = vmatpush1.msra.mxu0 %v1664
  %1767 = vmatprep.subr.mxu0 0.0
  %1768 = vmatpush1.msra.mxu0 %v1665
  %1769 = vmatprep.subr.mxu0 0.0
  %1770 = vmatpush1.msra.mxu0 %v1666
  %1771 = vmatprep.subr.mxu0 0.0
  %1772 = vmatpush1.msra.mxu0 %v1667
  %1773 = vmatprep.subr.mxu0 0.0
  %1774 = vmatpush1.msra.mxu0 %v1668
  %1775 = vmatprep.subr.mxu0 0.0
  %1776 = vmatpush1.msra.mxu0 %v1669
  %1777 = vmatprep.subr.mxu0 0.0
  %1778 = vmatpush1.msra.mxu0 %v1670
  %1779 = vmatprep.subr.mxu0 0.0
  %1780 = vmatpush1.msra.mxu0 %v1671
  %1781 = vmatprep.subr.mxu0 0.0
  %1782 = vmatpush1.msra.mxu0 %v1672
  %1783 = vmatprep.subr.mxu0 0.0
  %1784 = vmatpush1.msra.mxu0 %v1673
  %1785 = vmatprep.subr.mxu0 0.0
  %1786 = vmatpush1.msra.mxu0 %v1674
  %1787 = vmatprep.subr.mxu0 0.0
  %1788 = vmatpush1.msra.mxu0 0.0
  %1789 = vmatprep.subr.mxu0 0.0
  %1790 = vmatpush1.msra.mxu0 0.0
  %1791 = vmatprep.subr.mxu0 0.0
  %1792 = vmatpush1.msra.mxu0 0.0
  %1793 = vmatprep.subr.mxu0 0.0
  %1794 = vmatpush1.msra.mxu0 0.0
  %1795 = vmatprep.subr.mxu0 0.0
  %1796 = vmatpush1.msra.mxu0 0.0
  %1797 = vmatprep.subr.mxu0 0.0
  %1798 = vmatpush1.msra.mxu0 0.0
  %1799 = vmatprep.subr.mxu0 0.0
  %1800 = vmatpush1.msra.mxu0 0.0
  %1801 = vmatprep.subr.mxu0 0.0
  %1802 = vmatpush1.msra.mxu0 0.0
  %1803 = vmatprep.subr.mxu0 0.0
  %1804 = vmatpush1.msra.mxu0 0.0
  %1805 = vmatprep.subr.mxu0 0.0
  %1806 = vmatpush1.msra.mxu0 0.0
  %1807 = vmatprep.subr.mxu0 0.0
  %1808 = vmatpush1.msra.mxu0 0.0
  %1809 = vmatprep.subr.mxu0 0.0
  %1810 = vmatpush1.msra.mxu0 0.0
  %1811 = vmatprep.subr.mxu0 0.0
  %1812 = vmatpush1.msra.mxu0 0.0
  %1813 = vmatprep.subr.mxu0 0.0
  %1814 = vmatpush1.msra.mxu0 0.0
  %1815 = vmatprep.subr.mxu0 0.0
  %1816 = vmatpush1.msra.mxu0 0.0
  %1817 = vmatprep.subr.mxu0 0.0
  %1818 = vmatpush1.msra.mxu0 0.0
  %1819 = vmatprep.mubr.f32.mxu0 0.0
  %1820 = vmatmul.mubr.f32.gmra.mrb[0].mxu0 %v1658
  %v1821 = vpop.f32.mrb[0].mxu0
  %v1822 = vadd.f32 %v1752, %v1821
  %v1823 = vpop.f32.mrb[0].mxu0
  %1824 = vdwg.mxu0
  %v1825 = vmax.f32 %v1822, 0.0
  %v1826 = vld [vmem:[%s8] sm:$0xff]
  %v1827 = vld [vmem:[%s8 + $0x8] sm:$0xff]
  %v1828 = vld [vmem:[%s8 + $0x10] sm:$0xff]
  %v1829 = vld [vmem:[%s8 + $0x18] sm:$0xff]
  %v1830 = vld [vmem:[%s8 + $0x20] sm:$0x1]
  %v1831 = vlaneseq
  %v1832 = vshrl.u32 %v1831, 7
  %v1833 = vsub.s32 0, %v1832
  %v1834 = vrot.slane %v1830, %v1833
  %vm1835 = vcmask 261120
  %v1837 = vsel %vm1835, %v1825, 0
  %1839 = vmatprep.subr.mxu0 0.0
  %1840 = vmatpush1.msra.mxu0 %v1826
  %1841 = vmatprep.subr.mxu0 0.0
  %1842 = vmatpush1.msra.mxu0 %v1827
  %1843 = vmatprep.subr.mxu0 0.0
  %1844 = vmatpush1.msra.mxu0 %v1828
  %1845 = vmatprep.subr.mxu0 0.0
  %1846 = vmatpush1.msra.mxu0 %v1829
  %1847 = vmatprep.subr.mxu0 0.0
  %1848 = vmatpush1.msra.mxu0 0.0
  %1849 = vmatprep.subr.mxu0 0.0
  %1850 = vmatpush1.msra.mxu0 0.0
  %1851 = vmatprep.subr.mxu0 0.0
  %1852 = vmatpush1.msra.mxu0 0.0
  %1853 = vmatprep.subr.mxu0 0.0
  %1854 = vmatpush1.msra.mxu0 0.0
  %1855 = vmatprep.subr.mxu0 0.0
  %1856 = vmatpush1.msra.mxu0 0.0
  %1857 = vmatprep.subr.mxu0 0.0
  %1858 = vmatpush1.msra.mxu0 0.0
  %1859 = vmatprep.subr.mxu0 0.0
  %1860 = vmatpush1.msra.mxu0 0.0
  %1861 = vmatprep.subr.mxu0 0.0
  %1862 = vmatpush1.msra.mxu0 0.0
  %1863 = vmatprep.subr.mxu0 0.0
  %1864 = vmatpush1.msra.mxu0 0.0
  %1865 = vmatprep.subr.mxu0 0.0
  %1866 = vmatpush1.msra.mxu0 0.0
  %1867 = vmatprep.subr.mxu0 0.0
  %1868 = vmatpush1.msra.mxu0 0.0
  %1869 = vmatprep.subr.mxu0 0.0
  %1870 = vmatpush1.msra.mxu0 0.0
  %1871 = vmatprep.subr.mxu0 0.0
  %1872 = vmatpush1.msra.mxu0 0.0
  %1873 = vmatprep.subr.mxu0 0.0
  %1874 = vmatpush1.msra.mxu0 0.0
  %1875 = vmatprep.subr.mxu0 0.0
  %1876 = vmatpush1.msra.mxu0 0.0
  %1877 = vmatprep.subr.mxu0 0.0
  %1878 = vmatpush1.msra.mxu0 0.0
  %1879 = vmatprep.subr.mxu0 0.0
  %1880 = vmatpush1.msra.mxu0 0.0
  %1881 = vmatprep.subr.mxu0 0.0
  %1882 = vmatpush1.msra.mxu0 0.0
  %1883 = vmatprep.subr.mxu0 0.0
  %1884 = vmatpush1.msra.mxu0 0.0
  %1885 = vmatprep.subr.mxu0 0.0
  %1886 = vmatpush1.msra.mxu0 0.0
  %1887 = vmatprep.subr.mxu0 0.0
  %1888 = vmatpush1.msra.mxu0 0.0
  %1889 = vmatprep.subr.mxu0 0.0
  %1890 = vmatpush1.msra.mxu0 0.0
  %1891 = vmatprep.subr.mxu0 0.0
  %1892 = vmatpush1.msra.mxu0 0.0
  %1893 = vmatprep.subr.mxu0 0.0
  %1894 = vmatpush1.msra.mxu0 0.0
  %1895 = vmatprep.subr.mxu0 0.0
  %1896 = vmatpush1.msra.mxu0 0.0
  %1897 = vmatprep.subr.mxu0 0.0
  %1898 = vmatpush1.msra.mxu0 0.0
  %1899 = vmatprep.subr.mxu0 0.0
  %1900 = vmatpush1.msra.mxu0 0.0
  %1901 = vmatprep.subr.mxu0 0.0
  %1902 = vmatpush1.msra.mxu0 0.0
  %1903 = vmatprep.mubr.f32.mxu0 0.0
  %1904 = vmatmul.mubr.f32.gmra.mrb[0].mxu0 %v1837
  %v1905 = vpop.f32.mrb[0].mxu0
  %v1906 = vadd.f32 %v1834, %v1905
  %v1907 = vpop.f32.mrb[0].mxu0
  %1908 = vdwg.mxu0
  %v1909 = vld [vmem:[%s9] sm:$0xff]
  %v1910 = vld [vmem:[%s9 + $0x8] sm:$0xff]
  %v1911 = vld [vmem:[%s9 + $0x10] sm:$0xff]
  %v1912 = vld [vmem:[%s9 + $0x18] sm:$0xff]
  %v1913 = vld [vmem:[%s9 + $0x20] sm:$0xff]
  %v1914 = vld [vmem:[%s9 + $0x28] sm:$0xff]
  %v1915 = vld [vmem:[%s9 + $0x30] sm:$0xff]
  %v1916 = vld [vmem:[%s9 + $0x38] sm:$0xff]
  %v1917 = vld [vmem:[%s9 + $0x40] sm:$0xff]
  %v1918 = vld [vmem:[%s9 + $0x48] sm:$0xff]
  %v1919 = vld [vmem:[%s9 + $0x50] sm:$0xff]
  %v1920 = vld [vmem:[%s9 + $0x58] sm:$0xff]
  %v1921 = vld [vmem:[%s9 + $0x60] sm:$0xff]
  %v1922 = vld [vmem:[%s9 + $0x68] sm:$0xff]
  %v1923 = vld [vmem:[%s9 + $0x70] sm:$0xff]
  %v1924 = vld [vmem:[%s9 + $0x78] sm:$0xff]
  %v1925 = vld [vmem:[%s9 + $0x80] sm:$0x3]
  %1927 = vset.pattern.permute.xlu0 0
  %1928 = vperm.xlu0 %1927, %v1906
  %v1929 = vpop.permute.xlu0 %1928
  %v1931 = vlaneseq
  %v1932 = vshrl.u32 %v1931, 7
  %v1933 = vsub.s32 0, %v1932
  %v1934 = vrot.slane %v1925, %v1933
  %v1935 = vmul.f32 %v1929, %v1934
  %1936 = vmatprep.subr.mxu0 0.0
  %1937 = vmatpush1.msra.mxu0 %v1909
  %1938 = vmatprep.subr.mxu0 0.0
  %1939 = vmatpush1.msra.mxu0 %v1910
  %1940 = vmatprep.subr.mxu0 0.0
  %1941 = vmatpush1.msra.mxu0 %v1911
  %1942 = vmatprep.subr.mxu0 0.0
  %1943 = vmatpush1.msra.mxu0 %v1912
  %1944 = vmatprep.subr.mxu0 0.0
  %1945 = vmatpush1.msra.mxu0 %v1913
  %1946 = vmatprep.subr.mxu0 0.0
  %1947 = vmatpush1.msra.mxu0 %v1914
  %1948 = vmatprep.subr.mxu0 0.0
  %1949 = vmatpush1.msra.mxu0 %v1915
  %1950 = vmatprep.subr.mxu0 0.0
  %1951 = vmatpush1.msra.mxu0 %v1916
  %1952 = vmatprep.subr.mxu0 0.0
  %1953 = vmatpush1.msra.mxu0 %v1917
  %1954 = vmatprep.subr.mxu0 0.0
  %1955 = vmatpush1.msra.mxu0 %v1918
  %1956 = vmatprep.subr.mxu0 0.0
  %1957 = vmatpush1.msra.mxu0 %v1919
  %1958 = vmatprep.subr.mxu0 0.0
  %1959 = vmatpush1.msra.mxu0 %v1920
  %1960 = vmatprep.subr.mxu0 0.0
  %1961 = vmatpush1.msra.mxu0 %v1921
  %1962 = vmatprep.subr.mxu0 0.0
  %1963 = vmatpush1.msra.mxu0 %v1922
  %1964 = vmatprep.subr.mxu0 0.0
  %1965 = vmatpush1.msra.mxu0 %v1923
  %1966 = vmatprep.subr.mxu0 0.0
  %1967 = vmatpush1.msra.mxu0 %v1924
  %1968 = vmatprep.subr.mxu0 0.0
  %1969 = vmatpush1.msra.mxu0 0.0
  %1970 = vmatprep.subr.mxu0 0.0
  %1971 = vmatpush1.msra.mxu0 0.0
  %1972 = vmatprep.subr.mxu0 0.0
  %1973 = vmatpush1.msra.mxu0 0.0
  %1974 = vmatprep.subr.mxu0 0.0
  %1975 = vmatpush1.msra.mxu0 0.0
  %1976 = vmatprep.subr.mxu0 0.0
  %1977 = vmatpush1.msra.mxu0 0.0
  %1978 = vmatprep.subr.mxu0 0.0
  %1979 = vmatpush1.msra.mxu0 0.0
  %1980 = vmatprep.subr.mxu0 0.0
  %1981 = vmatpush1.msra.mxu0 0.0
  %1982 = vmatprep.subr.mxu0 0.0
  %1983 = vmatpush1.msra.mxu0 0.0
  %1984 = vmatprep.subr.mxu0 0.0
  %1985 = vmatpush1.msra.mxu0 0.0
  %1986 = vmatprep.subr.mxu0 0.0
  %1987 = vmatpush1.msra.mxu0 0.0
  %1988 = vmatprep.subr.mxu0 0.0
  %1989 = vmatpush1.msra.mxu0 0.0
  %1990 = vmatprep.subr.mxu0 0.0
  %1991 = vmatpush1.msra.mxu0 0.0
  %1992 = vmatprep.subr.mxu0 0.0
  %1993 = vmatpush1.msra.mxu0 0.0
  %1994 = vmatprep.subr.mxu0 0.0
  %1995 = vmatpush1.msra.mxu0 0.0
  %1996 = vmatprep.subr.mxu0 0.0
  %1997 = vmatpush1.msra.mxu0 0.0
  %1998 = vmatprep.subr.mxu0 0.0
  %1999 = vmatpush1.msra.mxu0 0.0
  %2000 = vmatprep.mubr.f32.mxu0 0.0
  %2001 = vmatmul.mubr.f32.gmra.mrb[0].mxu0 %v1658
  %v2002 = vpop.f32.mrb[0].mxu0
  %v2003 = vadd.f32 %v1935, %v2002
  %v2004 = vpop.f32.mrb[0].mxu0
  %2005 = vdwg.mxu0
  %v2006 = vlaneseq
  %v2007 = vshrl.u32 %v2006, 7
  %v2008 = vsub.s32 1, %v2007
  %v2009 = vrot.slane %v1925, %v2008
  %v2010 = vadd.f32 %v2003, %v2009
  %v2011 = vmax.f32 %v2010, 0.0
  %v2012 = vld [vmem:[%s10] sm:$0xff]
  %v2013 = vld [vmem:[%s10 + $0x8] sm:$0xff]
  %v2014 = vld [vmem:[%s10 + $0x10] sm:$0xff]
  %v2015 = vld [vmem:[%s10 + $0x18] sm:$0xff]
  %v2016 = vld [vmem:[%s10 + $0x20] sm:$0xff]
  %v2017 = vld [vmem:[%s10 + $0x28] sm:$0xff]
  %v2018 = vld [vmem:[%s10 + $0x30] sm:$0xff]
  %v2019 = vld [vmem:[%s10 + $0x38] sm:$0xff]
  %v2020 = vld [vmem:[%s10 + $0x40] sm:$0xff]
  %v2021 = vld [vmem:[%s10 + $0x48] sm:$0xff]
  %v2022 = vld [vmem:[%s10 + $0x50] sm:$0xff]
  %v2023 = vld [vmem:[%s10 + $0x58] sm:$0xff]
  %v2024 = vld [vmem:[%s10 + $0x60] sm:$0xff]
  %v2025 = vld [vmem:[%s10 + $0x68] sm:$0xff]
  %v2026 = vld [vmem:[%s10 + $0x70] sm:$0xff]
  %v2027 = vld [vmem:[%s10 + $0x78] sm:$0xff]
  %v2028 = vld [vmem:[%s10 + $0x80] sm:$0x1f]
  %v2029 = vlaneseq
  %v2030 = vshrl.u32 %v2029, 7
  %v2031 = vsub.s32 0, %v2030
  %v2032 = vrot.slane %v2028, %v2031
  %2033 = vmatprep.subr.mxu0 0.0
  %2034 = vmatpush1.msra.mxu0 %v2012
  %2035 = vmatprep.subr.mxu0 0.0
  %2036 = vmatpush1.msra.mxu0 %v2013
  %2037 = vmatprep.subr.mxu0 0.0
  %2038 = vmatpush1.msra.mxu0 %v2014
  %2039 = vmatprep.subr.mxu0 0.0
  %2040 = vmatpush1.msra.mxu0 %v2015
  %2041 = vmatprep.subr.mxu0 0.0
  %2042 = vmatpush1.msra.mxu0 %v2016
  %2043 = vmatprep.subr.mxu0 0.0
  %2044 = vmatpush1.msra.mxu0 %v2017
  %2045 = vmatprep.subr.mxu0 0.0
  %2046 = vmatpush1.msra.mxu0 %v2018
  %2047 = vmatprep.subr.mxu0 0.0
  %2048 = vmatpush1.msra.mxu0 %v2019
  %2049 = vmatprep.subr.mxu0 0.0
  %2050 = vmatpush1.msra.mxu0 %v2020
  %2051 = vmatprep.subr.mxu0 0.0
  %2052 = vmatpush1.msra.mxu0 %v2021
  %2053 = vmatprep.subr.mxu0 0.0
  %2054 = vmatpush1.msra.mxu0 %v2022
  %2055 = vmatprep.subr.mxu0 0.0
  %2056 = vmatpush1.msra.mxu0 %v2023
  %2057 = vmatprep.subr.mxu0 0.0
  %2058 = vmatpush1.msra.mxu0 %v2024
  %2059 = vmatprep.subr.mxu0 0.0
  %2060 = vmatpush1.msra.mxu0 %v2025
  %2061 = vmatprep.subr.mxu0 0.0
  %2062 = vmatpush1.msra.mxu0 %v2026
  %2063 = vmatprep.subr.mxu0 0.0
  %2064 = vmatpush1.msra.mxu0 %v2027
  %2065 = vmatprep.subr.mxu0 0.0
  %2066 = vmatpush1.msra.mxu0 0.0
  %2067 = vmatprep.subr.mxu0 0.0
  %2068 = vmatpush1.msra.mxu0 0.0
  %2069 = vmatprep.subr.mxu0 0.0
  %2070 = vmatpush1.msra.mxu0 0.0
  %2071 = vmatprep.subr.mxu0 0.0
  %2072 = vmatpush1.msra.mxu0 0.0
  %2073 = vmatprep.subr.mxu0 0.0
  %2074 = vmatpush1.msra.mxu0 0.0
  %2075 = vmatprep.subr.mxu0 0.0
  %2076 = vmatpush1.msra.mxu0 0.0
  %2077 = vmatprep.subr.mxu0 0.0
  %2078 = vmatpush1.msra.mxu0 0.0
  %2079 = vmatprep.subr.mxu0 0.0
  %2080 = vmatpush1.msra.mxu0 0.0
  %2081 = vmatprep.subr.mxu0 0.0
  %2082 = vmatpush1.msra.mxu0 0.0
  %2083 = vmatprep.subr.mxu0 0.0
  %2084 = vmatpush1.msra.mxu0 0.0
  %2085 = vmatprep.subr.mxu0 0.0
  %2086 = vmatpush1.msra.mxu0 0.0
  %2087 = vmatprep.subr.mxu0 0.0
  %2088 = vmatpush1.msra.mxu0 0.0
  %2089 = vmatprep.subr.mxu0 0.0
  %2090 = vmatpush1.msra.mxu0 0.0
  %2091 = vmatprep.subr.mxu0 0.0
  %2092 = vmatpush1.msra.mxu0 0.0
  %2093 = vmatprep.subr.mxu0 0.0
  %2094 = vmatpush1.msra.mxu0 0.0
  %2095 = vmatprep.subr.mxu0 0.0
  %2096 = vmatpush1.msra.mxu0 0.0
  %2097 = vmatprep.mubr.f32.mxu0 0.0
  %2098 = vmatmul.mubr.f32.gmra.mrb[0].mxu0 %v2011
  %v2099 = vpop.f32.mrb[0].mxu0
  %v2100 = vadd.f32 %v2032, %v2099
  %v2101 = vpop.f32.mrb[0].mxu0
  %2102 = vdwg.mxu0
  %v2103 = vtanh.pop %v2100
  %vm2104 = vcmask 31744
  %v2105 = vsel %vm2104, %v2103, 0.0
  %2106 = vadd.xlane.f32.xlu0 %v2105
  %v2107 = vpop.xlane.xlu0 %2106
  %v2108 = vmul.f32 %v2107, 1.442695
  %v2109 = vpow.pop %v2108
  %v2111 = vrot.slane %v2028, 1
  %v2113 = vsel %vm2104, %v2103, 0
  %vm2115 = vcmask 1043456
  %v2116 = vsel %vm2115, %v2111, 0
  %2118 = vmatprep.subr.mxu0 0.0
  %2119 = vmatpush1.msra.mxu0 %v2116
  %2120 = vmatprep.subr.mxu0 0.0
  %2121 = vmatpush1.msra.mxu0 0.0
  %2122 = vmatprep.subr.mxu0 0.0
  %2123 = vmatpush1.msra.mxu0 0.0
  %2124 = vmatprep.subr.mxu0 0.0
  %2125 = vmatpush1.msra.mxu0 0.0
  %2126 = vmatprep.subr.mxu0 0.0
  %2127 = vmatpush1.msra.mxu0 0.0
  %2128 = vmatprep.subr.mxu0 0.0
  %2129 = vmatpush1.msra.mxu0 0.0
  %2130 = vmatprep.subr.mxu0 0.0
  %2131 = vmatpush1.msra.mxu0 0.0
  %2132 = vmatprep.subr.mxu0 0.0
  %2133 = vmatpush1.msra.mxu0 0.0
  %2134 = vmatprep.subr.mxu0 0.0
  %2135 = vmatpush1.msra.mxu0 0.0
  %2136 = vmatprep.subr.mxu0 0.0
  %2137 = vmatpush1.msra.mxu0 0.0
  %2138 = vmatprep.subr.mxu0 0.0
  %2139 = vmatpush1.msra.mxu0 0.0
  %2140 = vmatprep.subr.mxu0 0.0
  %2141 = vmatpush1.msra.mxu0 0.0
  %2142 = vmatprep.subr.mxu0 0.0
  %2143 = vmatpush1.msra.mxu0 0.0
  %2144 = vmatprep.subr.mxu0 0.0
  %2145 = vmatpush1.msra.mxu0 0.0
  %2146 = vmatprep.subr.mxu0 0.0
  %2147 = vmatpush1.msra.mxu0 0.0
  %2148 = vmatprep.subr.mxu0 0.0
  %2149 = vmatpush1.msra.mxu0 0.0
  %2150 = vmatprep.subr.mxu0 0.0
  %2151 = vmatpush1.msra.mxu0 0.0
  %2152 = vmatprep.subr.mxu0 0.0
  %2153 = vmatpush1.msra.mxu0 0.0
  %2154 = vmatprep.subr.mxu0 0.0
  %2155 = vmatpush1.msra.mxu0 0.0
  %2156 = vmatprep.subr.mxu0 0.0
  %2157 = vmatpush1.msra.mxu0 0.0
  %2158 = vmatprep.subr.mxu0 0.0
  %2159 = vmatpush1.msra.mxu0 0.0
  %2160 = vmatprep.subr.mxu0 0.0
  %2161 = vmatpush1.msra.mxu0 0.0
  %2162 = vmatprep.subr.mxu0 0.0
  %2163 = vmatpush1.msra.mxu0 0.0
  %2164 = vmatprep.subr.mxu0 0.0
  %2165 = vmatpush1.msra.mxu0 0.0
  %2166 = vmatprep.subr.mxu0 0.0
  %2167 = vmatpush1.msra.mxu0 0.0
  %2168 = vmatprep.subr.mxu0 0.0
  %2169 = vmatpush1.msra.mxu0 0.0
  %2170 = vmatprep.subr.mxu0 0.0
  %2171 = vmatpush1.msra.mxu0 0.0
  %2172 = vmatprep.subr.mxu0 0.0
  %2173 = vmatpush1.msra.mxu0 0.0
  %2174 = vmatprep.subr.mxu0 0.0
  %2175 = vmatpush1.msra.mxu0 0.0
  %2176 = vmatprep.subr.mxu0 0.0
  %2177 = vmatpush1.msra.mxu0 0.0
  %2178 = vmatprep.subr.mxu0 0.0
  %2179 = vmatpush1.msra.mxu0 0.0
  %2180 = vmatprep.subr.mxu0 0.0
  %2181 = vmatpush1.msra.mxu0 0.0
  %2182 = vmatprep.mubr.f32.mxu0 0.0
  %2183 = vmatmul.mubr.f32.gmra.mrb[0].mxu0 %v2113
  %v2184 = vpop.f32.mrb[0].mxu0
  %v2185 = vadd.f32 0.0, %v2184
  %v2186 = vpop.f32.mrb[0].mxu0
  %2187 = vdwg.mxu0
  %v2188 = vmul.f32 %v2185, 1.442695
  %v2189 = vpow.pop %v2188
  %2191 = vrot.lane.b32.xlu0 %v2189, 4
  %v2192 = vpop.permute.xlu0 %2191
  %v2194 = vmul.f32 %v2100, %v2192
  %2196 = vrot.lane.b32.xlu0 %v2194, 124
  %v2197 = vpop.permute.xlu0 %2196
  %v2199 = vsel %vm2104, %v2197, 0.0
  %2200 = vadd.xlane.f32.xlu0 %v2199
  %v2201 = vpop.xlane.xlu0 %2200
  %v2202 = vld [vmem:[%s2] sm:$0xff]
  %v2203 = vlaneseq
  %v2204 = vand.u32 %v2203, 127
  %vm2205 = vcmp.lt.s32.totalorder %v2204, 10
  %v2206 = vsel %vm2205, 1, 0
  %v2207 = vcvt.s32.f32 %v2206
  %v2208 = vmul.f32 %v2202, %v2207
  %vm2209 = vcmask 130048
  %v2210 = vsel %vm2209, %v2208, 0.0
  %2211 = vadd.xlane.f32.xlu0 %v2210
  %v2212 = vpop.xlane.xlu0 %2211
  %v2213 = vmul.f32 %v2212, 0.1
  %v2214 = vsub.f32 %v2202, %v2213
  %v2215 = vmul.f32 %v2214, %v2207
  %v2216 = vmul.f32 %v2215, %v2215
  %v2217 = vsel %vm2209, %v2216, 0.0
  %2218 = vadd.xlane.f32.xlu0 %v2217
  %v2219 = vpop.xlane.xlu0 %2218
  %v2220 = vmul.f32 %v2219, 0.11111111
  %v2221 = vrsqrt.pop %v2220
  %v2222 = vmul.f32 %v2220, %v2221
  %vm2223 = vcmp.eq.f32.partialorder %v2220, inf
  %v2224 = vsel %vm2223, %v2220, %v2222
  %vm2225 = vcmp.eq.f32.partialorder %v2220, 0.0
  %v2226 = vand.u32 %v2220, 2147483648
  %v2227 = vsel %vm2225, %v2226, %v2224
  %v2228 = vmul.f32 %v2109, %v2213
  %v2229 = vadd.f32 %v2228, %v2201
  %v2230 = vmul.f32 %v2109, %v2227
  %v2231 = vld [vmem:[%s3] sm:$0xff]
  %v2232 = vld [vmem:[%s3 + $0x8] sm:$0xff]
  %v2233 = vld [vmem:[%s3 + $0x10] sm:$0xff]
  %v2234 = vld [vmem:[%s3 + $0x18] sm:$0xff]
  %v2235 = vld [vmem:[%s3 + $0x20] sm:$0xff]
  %v2236 = vld [vmem:[%s3 + $0x28] sm:$0xff]
  %v2237 = vld [vmem:[%s3 + $0x30] sm:$0xff]
  %v2238 = vld [vmem:[%s3 + $0x38] sm:$0xff]
  %v2239 = vld [vmem:[%s3 + $0x40] sm:$0xff]
  %v2240 = vld [vmem:[%s3 + $0x48] sm:$0xff]
  %v2241 = vld [vmem:[%s3 + $0x50] sm:$0xff]
  %v2242 = vld [vmem:[%s3 + $0x58] sm:$0xff]
  %v2243 = vld [vmem:[%s3 + $0x60] sm:$0xff]
  %v2244 = vld [vmem:[%s3 + $0x68] sm:$0xff]
  %v2245 = vld [vmem:[%s3 + $0x70] sm:$0xff]
  %v2246 = vld [vmem:[%s3 + $0x78] sm:$0xff]
  %s2247 = scalar_lea.vmem %s3, 128
  %v2248 = vld [vmem:[%s2247] sm:$0xff]
  %v2249 = vld [vmem:[%s2247 + $0x8] sm:$0xff]
  %v2250 = vld [vmem:[%s2247 + $0x10] sm:$0xff]
  %v2251 = vld [vmem:[%s2247 + $0x18] sm:$0xff]
  %v2252 = vld [vmem:[%s2247 + $0x20] sm:$0xff]
  %v2253 = vld [vmem:[%s2247 + $0x28] sm:$0xff]
  %v2254 = vld [vmem:[%s2247 + $0x30] sm:$0xff]
  %v2255 = vld [vmem:[%s2247 + $0x38] sm:$0xff]
  %v2256 = vld [vmem:[%s2247 + $0x40] sm:$0xff]
  %v2257 = vld [vmem:[%s2247 + $0x48] sm:$0xff]
  %v2258 = vld [vmem:[%s2247 + $0x50] sm:$0xff]
  %v2259 = vld [vmem:[%s2247 + $0x58] sm:$0xff]
  %v2260 = vld [vmem:[%s2247 + $0x60] sm:$0xff]
  %v2261 = vld [vmem:[%s2247 + $0x68] sm:$0xff]
  %v2262 = vld [vmem:[%s2247 + $0x70] sm:$0xff]
  %v2263 = vld [vmem:[%s2247 + $0x78] sm:$0xff]
  %v2264 = vld [vmem:[%s11] sm:$0xff]
  %v2265 = vld [vmem:[%s11 + $0x8] sm:$0xff]
  %v2266 = vld [vmem:[%s11 + $0x10] sm:$0x1]
  %v2267 = vlaneseq
  %v2268 = vshrl.u32 %v2267, 7
  %v2269 = vsub.s32 0, %v2268
  %v2270 = vrot.slane %v2266, %v2269
  %v2272 = vsel %vm2209, %v2231, 0
  %v2275 = vsel %vm2209, %v2232, 0
  %v2278 = vsel %vm2209, %v2233, 0
  %v2281 = vsel %vm2209, %v2234, 0
  %v2284 = vsel %vm2209, %v2235, 0
  %v2287 = vsel %vm2209, %v2236, 0
  %v2290 = vsel %vm2209, %v2237, 0
  %v2293 = vsel %vm2209, %v2238, 0
  %v2296 = vsel %vm2209, %v2239, 0
  %v2299 = vsel %vm2209, %v2240, 0
  %v2302 = vsel %vm2209, %v2241, 0
  %v2305 = vsel %vm2209, %v2242, 0
  %v2308 = vsel %vm2209, %v2243, 0
  %v2311 = vsel %vm2209, %v2244, 0
  %v2314 = vsel %vm2209, %v2245, 0
  %v2317 = vsel %vm2209, %v2246, 0
  %2319 = vmatprep.subr.mxu0 0.0
  %2320 = vmatpush1.msra.mxu0 %v2264
  %2321 = vmatprep.subr.mxu0 0.0
  %2322 = vmatpush1.msra.mxu0 %v2265
  %2323 = vmatprep.subr.mxu0 0.0
  %2324 = vmatpush1.msra.mxu0 0.0
  %2325 = vmatprep.subr.mxu0 0.0
  %2326 = vmatpush1.msra.mxu0 0.0
  %2327 = vmatprep.subr.mxu0 0.0
  %2328 = vmatpush1.msra.mxu0 0.0
  %2329 = vmatprep.subr.mxu0 0.0
  %2330 = vmatpush1.msra.mxu0 0.0
  %2331 = vmatprep.subr.mxu0 0.0
  %2332 = vmatpush1.msra.mxu0 0.0
  %2333 = vmatprep.subr.mxu0 0.0
  %2334 = vmatpush1.msra.mxu0 0.0
  %2335 = vmatprep.subr.mxu0 0.0
  %2336 = vmatpush1.msra.mxu0 0.0
  %2337 = vmatprep.subr.mxu0 0.0
  %2338 = vmatpush1.msra.mxu0 0.0
  %2339 = vmatprep.subr.mxu0 0.0
  %2340 = vmatpush1.msra.mxu0 0.0
  %2341 = vmatprep.subr.mxu0 0.0
  %2342 = vmatpush1.msra.mxu0 0.0
  %2343 = vmatprep.subr.mxu0 0.0
  %2344 = vmatpush1.msra.mxu0 0.0
  %2345 = vmatprep.subr.mxu0 0.0
  %2346 = vmatpush1.msra.mxu0 0.0
  %2347 = vmatprep.subr.mxu0 0.0
  %2348 = vmatpush1.msra.mxu0 0.0
  %2349 = vmatprep.subr.mxu0 0.0
  %2350 = vmatpush1.msra.mxu0 0.0
  %2351 = vmatprep.subr.mxu0 0.0
  %2352 = vmatpush1.msra.mxu0 0.0
  %2353 = vmatprep.subr.mxu0 0.0
  %2354 = vmatpush1.msra.mxu0 0.0
  %2355 = vmatprep.subr.mxu0 0.0
  %2356 = vmatpush1.msra.mxu0 0.0
  %2357 = vmatprep.subr.mxu0 0.0
  %2358 = vmatpush1.msra.mxu0 0.0
  %2359 = vmatprep.subr.mxu0 0.0
  %2360 = vmatpush1.msra.mxu0 0.0
  %2361 = vmatprep.subr.mxu0 0.0
  %2362 = vmatpush1.msra.mxu0 0.0
  %2363 = vmatprep.subr.mxu0 0.0
  %2364 = vmatpush1.msra.mxu0 0.0
  %2365 = vmatprep.subr.mxu0 0.0
  %2366 = vmatpush1.msra.mxu0 0.0
  %2367 = vmatprep.subr.mxu0 0.0
  %2368 = vmatpush1.msra.mxu0 0.0
  %2369 = vmatprep.subr.mxu0 0.0
  %2370 = vmatpush1.msra.mxu0 0.0
  %2371 = vmatprep.subr.mxu0 0.0
  %2372 = vmatpush1.msra.mxu0 0.0
  %2373 = vmatprep.subr.mxu0 0.0
  %2374 = vmatpush1.msra.mxu0 0.0
  %2375 = vmatprep.subr.mxu0 0.0
  %2376 = vmatpush1.msra.mxu0 0.0
  %2377 = vmatprep.subr.mxu0 0.0
  %2378 = vmatpush1.msra.mxu0 0.0
  %2379 = vmatprep.subr.mxu0 0.0
  %2380 = vmatpush1.msra.mxu0 0.0
  %2381 = vmatprep.subr.mxu0 0.0
  %2382 = vmatpush1.msra.mxu0 0.0
  %2383 = vmatprep.mubr.f32.mxu0 0.0
  %2384 = vmatmul.mubr.f32.gmra.mrb[0].mxu0 %v2272
  %v2385 = vpop.f32.mrb[0].mxu0
  %v2386 = vadd.f32 %v2270, %v2385
  %v2387 = vpop.f32.mrb[0].mxu0
  %2388 = vmatprep.mubr.f32.mxu0 0.0
  %2389 = vmatmul.mubr.f32.gmra.mrb[0].mxu0 %v2275
  %v2390 = vpop.f32.mrb[0].mxu0
  %v2391 = vadd.f32 %v2270, %v2390
  %v2392 = vpop.f32.mrb[0].mxu0
  %2393 = vmatprep.mubr.f32.mxu0 0.0
  %2394 = vmatmul.mubr.f32.gmra.mrb[0].mxu0 %v2278
  %v2395 = vpop.f32.mrb[0].mxu0
  %v2396 = vadd.f32 %v2270, %v2395
  %v2397 = vpop.f32.mrb[0].mxu0
  %2398 = vmatprep.mubr.f32.mxu0 0.0
  %2399 = vmatmul.mubr.f32.gmra.mrb[0].mxu0 %v2281
  %v2400 = vpop.f32.mrb[0].mxu0
  %v2401 = vadd.f32 %v2270, %v2400
  %v2402 = vpop.f32.mrb[0].mxu0
  %2403 = vmatprep.mubr.f32.mxu0 0.0
  %2404 = vmatmul.mubr.f32.gmra.mrb[0].mxu0 %v2284
  %v2405 = vpop.f32.mrb[0].mxu0
  %v2406 = vadd.f32 %v2270, %v2405
  %v2407 = vpop.f32.mrb[0].mxu0
  %2408 = vmatprep.mubr.f32.mxu0 0.0
  %2409 = vmatmul.mubr.f32.gmra.mrb[0].mxu0 %v2287
  %v2410 = vpop.f32.mrb[0].mxu0
  %v2411 = vadd.f32 %v2270, %v2410
  %v2412 = vpop.f32.mrb[0].mxu0
  %2413 = vmatprep.mubr.f32.mxu0 0.0
  %2414 = vmatmul.mubr.f32.gmra.mrb[0].mxu0 %v2290
  %v2415 = vpop.f32.mrb[0].mxu0
  %v2416 = vadd.f32 %v2270, %v2415
  %v2417 = vpop.f32.mrb[0].mxu0
  %2418 = vmatprep.mubr.f32.mxu0 0.0
  %2419 = vmatmul.mubr.f32.gmra.mrb[0].mxu0 %v2293
  %v2420 = vpop.f32.mrb[0].mxu0
  %v2421 = vadd.f32 %v2270, %v2420
  %v2422 = vpop.f32.mrb[0].mxu0
  %2423 = vmatprep.mubr.f32.mxu0 0.0
  %2424 = vmatmul.mubr.f32.gmra.mrb[0].mxu0 %v2296
  %v2425 = vpop.f32.mrb[0].mxu0
  %v2426 = vadd.f32 %v2270, %v2425
  %v2427 = vpop.f32.mrb[0].mxu0
  %2428 = vmatprep.mubr.f32.mxu0 0.0
  %2429 = vmatmul.mubr.f32.gmra.mrb[0].mxu0 %v2299
  %v2430 = vpop.f32.mrb[0].mxu0
  %v2431 = vadd.f32 %v2270, %v2430
  %v2432 = vpop.f32.mrb[0].mxu0
  %2433 = vmatprep.mubr.f32.mxu0 0.0
  %2434 = vmatmul.mubr.f32.gmra.mrb[0].mxu0 %v2302
  %v2435 = vpop.f32.mrb[0].mxu0
  %v2436 = vadd.f32 %v2270, %v2435
  %v2437 = vpop.f32.mrb[0].mxu0
  %2438 = vmatprep.mubr.f32.mxu0 0.0
  %2439 = vmatmul.mubr.f32.gmra.mrb[0].mxu0 %v2305
  %v2440 = vpop.f32.mrb[0].mxu0
  %v2441 = vadd.f32 %v2270, %v2440
  %v2442 = vpop.f32.mrb[0].mxu0
  %2443 = vmatprep.mubr.f32.mxu0 0.0
  %2444 = vmatmul.mubr.f32.gmra.mrb[0].mxu0 %v2308
  %v2445 = vpop.f32.mrb[0].mxu0
  %v2446 = vadd.f32 %v2270, %v2445
  %v2447 = vpop.f32.mrb[0].mxu0
  %2448 = vmatprep.mubr.f32.mxu0 0.0
  %2449 = vmatmul.mubr.f32.gmra.mrb[0].mxu0 %v2311
  %v2450 = vpop.f32.mrb[0].mxu0
  %v2451 = vadd.f32 %v2270, %v2450
  %v2452 = vpop.f32.mrb[0].mxu0
  %2453 = vmatprep.mubr.f32.mxu0 0.0
  %2454 = vmatmul.mubr.f32.gmra.mrb[0].mxu0 %v2314
  %v2455 = vpop.f32.mrb[0].mxu0
  %v2456 = vadd.f32 %v2270, %v2455
  %v2457 = vpop.f32.mrb[0].mxu0
  %2458 = vmatprep.mubr.f32.mxu0 0.0
  %2459 = vmatmul.mubr.f32.gmra.mrb[0].mxu0 %v2317
  %v2460 = vpop.f32.mrb[0].mxu0
  %v2461 = vadd.f32 %v2270, %v2460
  %v2462 = vpop.f32.mrb[0].mxu0
  %2463 = vdwg.mxu0
  %v2464 = vmax.f32 %v2386, 0.0
  %v2465 = vmax.f32 %v2391, 0.0
  %v2466 = vmax.f32 %v2396, 0.0
  %v2467 = vmax.f32 %v2401, 0.0
  %v2468 = vmax.f32 %v2406, 0.0
  %v2469 = vmax.f32 %v2411, 0.0
  %v2470 = vmax.f32 %v2416, 0.0
  %v2471 = vmax.f32 %v2421, 0.0
  %v2472 = vmax.f32 %v2426, 0.0
  %v2473 = vmax.f32 %v2431, 0.0
  %v2474 = vmax.f32 %v2436, 0.0
  %v2475 = vmax.f32 %v2441, 0.0
  %v2476 = vmax.f32 %v2446, 0.0
  %v2477 = vmax.f32 %v2451, 0.0
  %v2478 = vmax.f32 %v2456, 0.0
  %v2479 = vmax.f32 %v2461, 0.0
  %v2480 = vld [vmem:[%s12] sm:$0xff]
  %v2481 = vld [vmem:[%s12 + $0x8] sm:$0xff]
  %v2482 = vld [vmem:[%s12 + $0x10] sm:$0xff]
  %v2483 = vld [vmem:[%s12 + $0x18] sm:$0xff]
  %v2484 = vld [vmem:[%s12 + $0x20] sm:$0x1]
  %s2485 = scalar_lea.vmem %s12, 160
  %v2486 = vld [vmem:[%s2485] sm:$0xff]
  %v2487 = vld [vmem:[%s2485 + $0x8] sm:$0xff]
  %v2488 = vld [vmem:[%s2485 + $0x10] sm:$0xff]
  %v2489 = vld [vmem:[%s2485 + $0x18] sm:$0xff]
  %v2490 = vld [vmem:[%s2485 + $0x20] sm:$0x1]
  %v2491 = vlaneseq
  %v2492 = vshrl.u32 %v2491, 7
  %v2493 = vsub.s32 0, %v2492
  %v2494 = vrot.slane %v2484, %v2493
  %v2496 = vsel %vm1835, %v2464, 0
  %v2499 = vsel %vm1835, %v2465, 0
  %v2502 = vsel %vm1835, %v2466, 0
  %v2505 = vsel %vm1835, %v2467, 0
  %v2508 = vsel %vm1835, %v2468, 0
  %v2511 = vsel %vm1835, %v2469, 0
  %v2514 = vsel %vm1835, %v2470, 0
  %v2517 = vsel %vm1835, %v2471, 0
  %v2520 = vsel %vm1835, %v2472, 0
  %v2523 = vsel %vm1835, %v2473, 0
  %v2526 = vsel %vm1835, %v2474, 0
  %v2529 = vsel %vm1835, %v2475, 0
  %v2532 = vsel %vm1835, %v2476, 0
  %v2535 = vsel %vm1835, %v2477, 0
  %v2538 = vsel %vm1835, %v2478, 0
  %v2541 = vsel %vm1835, %v2479, 0
  %2543 = vmatprep.subr.mxu0 0.0
  %2544 = vmatpush1.msra.mxu0 %v2480
  %2545 = vmatprep.subr.mxu0 0.0
  %2546 = vmatpush1.msra.mxu0 %v2481
  %2547 = vmatprep.subr.mxu0 0.0
  %2548 = vmatpush1.msra.mxu0 %v2482
  %2549 = vmatprep.subr.mxu0 0.0
  %2550 = vmatpush1.msra.mxu0 %v2483
  %2551 = vmatprep.subr.mxu0 0.0
  %2552 = vmatpush1.msra.mxu0 0.0
  %2553 = vmatprep.subr.mxu0 0.0
  %2554 = vmatpush1.msra.mxu0 0.0
  %2555 = vmatprep.subr.mxu0 0.0
  %2556 = vmatpush1.msra.mxu0 0.0
  %2557 = vmatprep.subr.mxu0 0.0
  %2558 = vmatpush1.msra.mxu0 0.0
  %2559 = vmatprep.subr.mxu0 0.0
  %2560 = vmatpush1.msra.mxu0 0.0
  %2561 = vmatprep.subr.mxu0 0.0
  %2562 = vmatpush1.msra.mxu0 0.0
  %2563 = vmatprep.subr.mxu0 0.0
  %2564 = vmatpush1.msra.mxu0 0.0
  %2565 = vmatprep.subr.mxu0 0.0
  %2566 = vmatpush1.msra.mxu0 0.0
  %2567 = vmatprep.subr.mxu0 0.0
  %2568 = vmatpush1.msra.mxu0 0.0
  %2569 = vmatprep.subr.mxu0 0.0
  %2570 = vmatpush1.msra.mxu0 0.0
  %2571 = vmatprep.subr.mxu0 0.0
  %2572 = vmatpush1.msra.mxu0 0.0
  %2573 = vmatprep.subr.mxu0 0.0
  %2574 = vmatpush1.msra.mxu0 0.0
  %2575 = vmatprep.subr.mxu0 0.0
  %2576 = vmatpush1.msra.mxu0 0.0
  %2577 = vmatprep.subr.mxu0 0.0
  %2578 = vmatpush1.msra.mxu0 0.0
  %2579 = vmatprep.subr.mxu0 0.0
  %2580 = vmatpush1.msra.mxu0 0.0
  %2581 = vmatprep.subr.mxu0 0.0
  %2582 = vmatpush1.msra.mxu0 0.0
  %2583 = vmatprep.subr.mxu0 0.0
  %2584 = vmatpush1.msra.mxu0 0.0
  %2585 = vmatprep.subr.mxu0 0.0
  %2586 = vmatpush1.msra.mxu0 0.0
  %2587 = vmatprep.subr.mxu0 0.0
  %2588 = vmatpush1.msra.mxu0 0.0
  %2589 = vmatprep.subr.mxu0 0.0
  %2590 = vmatpush1.msra.mxu0 0.0
  %2591 = vmatprep.subr.mxu0 0.0
  %2592 = vmatpush1.msra.mxu0 0.0
  %2593 = vmatprep.subr.mxu0 0.0
  %2594 = vmatpush1.msra.mxu0 0.0
  %2595 = vmatprep.subr.mxu0 0.0
  %2596 = vmatpush1.msra.mxu0 0.0
  %2597 = vmatprep.subr.mxu0 0.0
  %2598 = vmatpush1.msra.mxu0 0.0
  %2599 = vmatprep.subr.mxu0 0.0
  %2600 = vmatpush1.msra.mxu0 0.0
  %2601 = vmatprep.subr.mxu0 0.0
  %2602 = vmatpush1.msra.mxu0 0.0
  %2603 = vmatprep.subr.mxu0 0.0
  %2604 = vmatpush1.msra.mxu0 0.0
  %2605 = vmatprep.subr.mxu0 0.0
  %2606 = vmatpush1.msra.mxu0 0.0
  %2607 = vmatprep.mubr.f32.mxu0 0.0
  %2608 = vmatmul.mubr.f32.gmra.mrb[0].mxu0 %v2496
  %v2609 = vpop.f32.mrb[0].mxu0
  %v2610 = vadd.f32 %v2494, %v2609
  %v2611 = vpop.f32.mrb[0].mxu0
  %2612 = vmatprep.mubr.f32.mxu0 0.0
  %2613 = vmatmul.mubr.f32.gmra.mrb[0].mxu0 %v2499
  %v2614 = vpop.f32.mrb[0].mxu0
  %v2615 = vadd.f32 %v2494, %v2614
  %v2616 = vpop.f32.mrb[0].mxu0
  %2617 = vmatprep.mubr.f32.mxu0 0.0
  %2618 = vmatmul.mubr.f32.gmra.mrb[0].mxu0 %v2502
  %v2619 = vpop.f32.mrb[0].mxu0
  %v2620 = vadd.f32 %v2494, %v2619
  %v2621 = vpop.f32.mrb[0].mxu0
  %2622 = vmatprep.mubr.f32.mxu0 0.0
  %2623 = vmatmul.mubr.f32.gmra.mrb[0].mxu0 %v2505
  %v2624 = vpop.f32.mrb[0].mxu0
  %v2625 = vadd.f32 %v2494, %v2624
  %v2626 = vpop.f32.mrb[0].mxu0
  %2627 = vmatprep.mubr.f32.mxu0 0.0
  %2628 = vmatmul.mubr.f32.gmra.mrb[0].mxu0 %v2508
  %v2629 = vpop.f32.mrb[0].mxu0
  %v2630 = vadd.f32 %v2494, %v2629
  %v2631 = vpop.f32.mrb[0].mxu0
  %2632 = vmatprep.mubr.f32.mxu0 0.0
  %2633 = vmatmul.mubr.f32.gmra.mrb[0].mxu0 %v2511
  %v2634 = vpop.f32.mrb[0].mxu0
  %v2635 = vadd.f32 %v2494, %v2634
  %v2636 = vpop.f32.mrb[0].mxu0
  %2637 = vmatprep.mubr.f32.mxu0 0.0
  %2638 = vmatmul.mubr.f32.gmra.mrb[0].mxu0 %v2514
  %v2639 = vpop.f32.mrb[0].mxu0
  %v2640 = vadd.f32 %v2494, %v2639
  %v2641 = vpop.f32.mrb[0].mxu0
  %2642 = vmatprep.mubr.f32.mxu0 0.0
  %2643 = vmatmul.mubr.f32.gmra.mrb[0].mxu0 %v2517
  %v2644 = vpop.f32.mrb[0].mxu0
  %v2645 = vadd.f32 %v2494, %v2644
  %v2646 = vpop.f32.mrb[0].mxu0
  %2647 = vmatprep.mubr.f32.mxu0 0.0
  %2648 = vmatmul.mubr.f32.gmra.mrb[0].mxu0 %v2520
  %v2649 = vpop.f32.mrb[0].mxu0
  %v2650 = vadd.f32 %v2494, %v2649
  %v2651 = vpop.f32.mrb[0].mxu0
  %2652 = vmatprep.mubr.f32.mxu0 0.0
  %2653 = vmatmul.mubr.f32.gmra.mrb[0].mxu0 %v2523
  %v2654 = vpop.f32.mrb[0].mxu0
  %v2655 = vadd.f32 %v2494, %v2654
  %v2656 = vpop.f32.mrb[0].mxu0
  %2657 = vmatprep.mubr.f32.mxu0 0.0
  %2658 = vmatmul.mubr.f32.gmra.mrb[0].mxu0 %v2526
  %v2659 = vpop.f32.mrb[0].mxu0
  %v2660 = vadd.f32 %v2494, %v2659
  %v2661 = vpop.f32.mrb[0].mxu0
  %2662 = vmatprep.mubr.f32.mxu0 0.0
  %2663 = vmatmul.mubr.f32.gmra.mrb[0].mxu0 %v2529
  %v2664 = vpop.f32.mrb[0].mxu0
  %v2665 = vadd.f32 %v2494, %v2664
  %v2666 = vpop.f32.mrb[0].mxu0
  %2667 = vmatprep.mubr.f32.mxu0 0.0
  %2668 = vmatmul.mubr.f32.gmra.mrb[0].mxu0 %v2532
  %v2669 = vpop.f32.mrb[0].mxu0
  %v2670 = vadd.f32 %v2494, %v2669
  %v2671 = vpop.f32.mrb[0].mxu0
  %2672 = vmatprep.mubr.f32.mxu0 0.0
  %2673 = vmatmul.mubr.f32.gmra.mrb[0].mxu0 %v2535
  %v2674 = vpop.f32.mrb[0].mxu0
  %v2675 = vadd.f32 %v2494, %v2674
  %v2676 = vpop.f32.mrb[0].mxu0
  %2677 = vmatprep.mubr.f32.mxu0 0.0
  %2678 = vmatmul.mubr.f32.gmra.mrb[0].mxu0 %v2538
  %v2679 = vpop.f32.mrb[0].mxu0
  %v2680 = vadd.f32 %v2494, %v2679
  %v2681 = vpop.f32.mrb[0].mxu0
  %2682 = vmatprep.mubr.f32.mxu0 0.0
  %2683 = vmatmul.mubr.f32.gmra.mrb[0].mxu0 %v2541
  %v2684 = vpop.f32.mrb[0].mxu0
  %v2685 = vadd.f32 %v2494, %v2684
  %v2686 = vpop.f32.mrb[0].mxu0
  %2687 = vdwg.mxu0
  %v2688 = vtanh.pop %v2610
  %v2689 = vtanh.pop %v2615
  %v2690 = vtanh.pop %v2620
  %v2691 = vtanh.pop %v2625
  %v2692 = vtanh.pop %v2630
  %v2693 = vtanh.pop %v2635
  %v2694 = vtanh.pop %v2640
  %v2695 = vtanh.pop %v2645
  %v2696 = vtanh.pop %v2650
  %v2697 = vtanh.pop %v2655
  %v2698 = vtanh.pop %v2660
  %v2699 = vtanh.pop %v2665
  %v2700 = vtanh.pop %v2670
  %v2701 = vtanh.pop %v2675
  %v2702 = vtanh.pop %v2680
  %v2703 = vtanh.pop %v2685
  %v2704 = vmul.f32 %v2688, 1.442695
  %v2705 = vpow.pop %v2704
  %v2706 = vmul.f32 %v2689, 1.442695
  %v2707 = vpow.pop %v2706
  %v2708 = vmul.f32 %v2690, 1.442695
  %v2709 = vpow.pop %v2708
  %v2710 = vmul.f32 %v2691, 1.442695
  %v2711 = vpow.pop %v2710
  %v2712 = vmul.f32 %v2692, 1.442695
  %v2713 = vpow.pop %v2712
  %v2714 = vmul.f32 %v2693, 1.442695
  %v2715 = vpow.pop %v2714
  %v2716 = vmul.f32 %v2694, 1.442695
  %v2717 = vpow.pop %v2716
  %v2718 = vmul.f32 %v2695, 1.442695
  %v2719 = vpow.pop %v2718
  %v2720 = vmul.f32 %v2696, 1.442695
  %v2721 = vpow.pop %v2720
  %v2722 = vmul.f32 %v2697, 1.442695
  %v2723 = vpow.pop %v2722
  %v2724 = vmul.f32 %v2698, 1.442695
  %v2725 = vpow.pop %v2724
  %v2726 = vmul.f32 %v2699, 1.442695
  %v2727 = vpow.pop %v2726
  %v2728 = vmul.f32 %v2700, 1.442695
  %v2729 = vpow.pop %v2728
  %v2730 = vmul.f32 %v2701, 1.442695
  %v2731 = vpow.pop %v2730
  %v2732 = vmul.f32 %v2702, 1.442695
  %v2733 = vpow.pop %v2732
  %v2734 = vmul.f32 %v2703, 1.442695
  %v2735 = vpow.pop %v2734
  %v2736 = vlaneseq
  %v2737 = vshrl.u32 %v2736, 7
  %v2738 = vsub.s32 0, %v2737
  %v2739 = vrot.slane %v2490, %v2738
  %2740 = vmatprep.subr.mxu0 0.0
  %2741 = vmatpush1.msra.mxu0 %v2486
  %2742 = vmatprep.subr.mxu0 0.0
  %2743 = vmatpush1.msra.mxu0 %v2487
  %2744 = vmatprep.subr.mxu0 0.0
  %2745 = vmatpush1.msra.mxu0 %v2488
  %2746 = vmatprep.subr.mxu0 0.0
  %2747 = vmatpush1.msra.mxu0 %v2489
  %2748 = vmatprep.subr.mxu0 0.0
  %2749 = vmatpush1.msra.mxu0 0.0
  %2750 = vmatprep.subr.mxu0 0.0
  %2751 = vmatpush1.msra.mxu0 0.0
  %2752 = vmatprep.subr.mxu0 0.0
  %2753 = vmatpush1.msra.mxu0 0.0
  %2754 = vmatprep.subr.mxu0 0.0
  %2755 = vmatpush1.msra.mxu0 0.0
  %2756 = vmatprep.subr.mxu0 0.0
  %2757 = vmatpush1.msra.mxu0 0.0
  %2758 = vmatprep.subr.mxu0 0.0
  %2759 = vmatpush1.msra.mxu0 0.0
  %2760 = vmatprep.subr.mxu0 0.0
  %2761 = vmatpush1.msra.mxu0 0.0
  %2762 = vmatprep.subr.mxu0 0.0
  %2763 = vmatpush1.msra.mxu0 0.0
  %2764 = vmatprep.subr.mxu0 0.0
  %2765 = vmatpush1.msra.mxu0 0.0
  %2766 = vmatprep.subr.mxu0 0.0
  %2767 = vmatpush1.msra.mxu0 0.0
  %2768 = vmatprep.subr.mxu0 0.0
  %2769 = vmatpush1.msra.mxu0 0.0
  %2770 = vmatprep.subr.mxu0 0.0
  %2771 = vmatpush1.msra.mxu0 0.0
  %2772 = vmatprep.subr.mxu0 0.0
  %2773 = vmatpush1.msra.mxu0 0.0
  %2774 = vmatprep.subr.mxu0 0.0
  %2775 = vmatpush1.msra.mxu0 0.0
  %2776 = vmatprep.subr.mxu0 0.0
  %2777 = vmatpush1.msra.mxu0 0.0
  %2778 = vmatprep.subr.mxu0 0.0
  %2779 = vmatpush1.msra.mxu0 0.0
  %2780 = vmatprep.subr.mxu0 0.0
  %2781 = vmatpush1.msra.mxu0 0.0
  %2782 = vmatprep.subr.mxu0 0.0
  %2783 = vmatpush1.msra.mxu0 0.0
  %2784 = vmatprep.subr.mxu0 0.0
  %2785 = vmatpush1.msra.mxu0 0.0
  %2786 = vmatprep.subr.mxu0 0.0
  %2787 = vmatpush1.msra.mxu0 0.0
  %2788 = vmatprep.subr.mxu0 0.0
  %2789 = vmatpush1.msra.mxu0 0.0
  %2790 = vmatprep.subr.mxu0 0.0
  %2791 = vmatpush1.msra.mxu0 0.0
  %2792 = vmatprep.subr.mxu0 0.0
  %2793 = vmatpush1.msra.mxu0 0.0
  %2794 = vmatprep.subr.mxu0 0.0
  %2795 = vmatpush1.msra.mxu0 0.0
  %2796 = vmatprep.subr.mxu0 0.0
  %2797 = vmatpush1.msra.mxu0 0.0
  %2798 = vmatprep.subr.mxu0 0.0
  %2799 = vmatpush1.msra.mxu0 0.0
  %2800 = vmatprep.subr.mxu0 0.0
  %2801 = vmatpush1.msra.mxu0 0.0
  %2802 = vmatprep.subr.mxu0 0.0
  %2803 = vmatpush1.msra.mxu0 0.0
  %2804 = vmatprep.mubr.f32.mxu0 0.0
  %2805 = vmatmul.mubr.f32.gmra.mrb[0].mxu0 %v2496
  %v2806 = vpop.f32.mrb[0].mxu0
  %v2807 = vadd.f32 %v2739, %v2806
  %v2808 = vpop.f32.mrb[0].mxu0
  %2809 = vmatprep.mubr.f32.mxu0 0.0
  %2810 = vmatmul.mubr.f32.gmra.mrb[0].mxu0 %v2499
  %v2811 = vpop.f32.mrb[0].mxu0
  %v2812 = vadd.f32 %v2739, %v2811
  %v2813 = vpop.f32.mrb[0].mxu0
  %2814 = vmatprep.mubr.f32.mxu0 0.0
  %2815 = vmatmul.mubr.f32.gmra.mrb[0].mxu0 %v2502
  %v2816 = vpop.f32.mrb[0].mxu0
  %v2817 = vadd.f32 %v2739, %v2816
  %v2818 = vpop.f32.mrb[0].mxu0
  %2819 = vmatprep.mubr.f32.mxu0 0.0
  %2820 = vmatmul.mubr.f32.gmra.mrb[0].mxu0 %v2505
  %v2821 = vpop.f32.mrb[0].mxu0
  %v2822 = vadd.f32 %v2739, %v2821
  %v2823 = vpop.f32.mrb[0].mxu0
  %2824 = vmatprep.mubr.f32.mxu0 0.0
  %2825 = vmatmul.mubr.f32.gmra.mrb[0].mxu0 %v2508
  %v2826 = vpop.f32.mrb[0].mxu0
  %v2827 = vadd.f32 %v2739, %v2826
  %v2828 = vpop.f32.mrb[0].mxu0
  %2829 = vmatprep.mubr.f32.mxu0 0.0
  %2830 = vmatmul.mubr.f32.gmra.mrb[0].mxu0 %v2511
  %v2831 = vpop.f32.mrb[0].mxu0
  %v2832 = vadd.f32 %v2739, %v2831
  %v2833 = vpop.f32.mrb[0].mxu0
  %2834 = vmatprep.mubr.f32.mxu0 0.0
  %2835 = vmatmul.mubr.f32.gmra.mrb[0].mxu0 %v2514
  %v2836 = vpop.f32.mrb[0].mxu0
  %v2837 = vadd.f32 %v2739, %v2836
  %v2838 = vpop.f32.mrb[0].mxu0
  %2839 = vmatprep.mubr.f32.mxu0 0.0
  %2840 = vmatmul.mubr.f32.gmra.mrb[0].mxu0 %v2517
  %v2841 = vpop.f32.mrb[0].mxu0
  %v2842 = vadd.f32 %v2739, %v2841
  %v2843 = vpop.f32.mrb[0].mxu0
  %2844 = vmatprep.mubr.f32.mxu0 0.0
  %2845 = vmatmul.mubr.f32.gmra.mrb[0].mxu0 %v2520
  %v2846 = vpop.f32.mrb[0].mxu0
  %v2847 = vadd.f32 %v2739, %v2846
  %v2848 = vpop.f32.mrb[0].mxu0
  %2849 = vmatprep.mubr.f32.mxu0 0.0
  %2850 = vmatmul.mubr.f32.gmra.mrb[0].mxu0 %v2523
  %v2851 = vpop.f32.mrb[0].mxu0
  %v2852 = vadd.f32 %v2739, %v2851
  %v2853 = vpop.f32.mrb[0].mxu0
  %2854 = vmatprep.mubr.f32.mxu0 0.0
  %2855 = vmatmul.mubr.f32.gmra.mrb[0].mxu0 %v2526
  %v2856 = vpop.f32.mrb[0].mxu0
  %v2857 = vadd.f32 %v2739, %v2856
  %v2858 = vpop.f32.mrb[0].mxu0
  %2859 = vmatprep.mubr.f32.mxu0 0.0
  %2860 = vmatmul.mubr.f32.gmra.mrb[0].mxu0 %v2529
  %v2861 = vpop.f32.mrb[0].mxu0
  %v2862 = vadd.f32 %v2739, %v2861
  %v2863 = vpop.f32.mrb[0].mxu0
  %2864 = vmatprep.mubr.f32.mxu0 0.0
  %2865 = vmatmul.mubr.f32.gmra.mrb[0].mxu0 %v2532
  %v2866 = vpop.f32.mrb[0].mxu0
  %v2867 = vadd.f32 %v2739, %v2866
  %v2868 = vpop.f32.mrb[0].mxu0
  %2869 = vmatprep.mubr.f32.mxu0 0.0
  %2870 = vmatmul.mubr.f32.gmra.mrb[0].mxu0 %v2535
  %v2871 = vpop.f32.mrb[0].mxu0
  %v2872 = vadd.f32 %v2739, %v2871
  %v2873 = vpop.f32.mrb[0].mxu0
  %2874 = vmatprep.mubr.f32.mxu0 0.0
  %2875 = vmatmul.mubr.f32.gmra.mrb[0].mxu0 %v2538
  %v2876 = vpop.f32.mrb[0].mxu0
  %v2877 = vadd.f32 %v2739, %v2876
  %v2878 = vpop.f32.mrb[0].mxu0
  %2879 = vmatprep.mubr.f32.mxu0 0.0
  %2880 = vmatmul.mubr.f32.gmra.mrb[0].mxu0 %v2541
  %v2881 = vpop.f32.mrb[0].mxu0
  %v2882 = vadd.f32 %v2739, %v2881
  %v2883 = vpop.f32.mrb[0].mxu0
  %2884 = vdwg.mxu0
  %v2885 = vmul.f32 %v2248, %v2705
  %v2886 = vmul.f32 %v2249, %v2707
  %v2887 = vmul.f32 %v2250, %v2709
  %v2888 = vmul.f32 %v2251, %v2711
  %v2889 = vmul.f32 %v2252, %v2713
  %v2890 = vmul.f32 %v2253, %v2715
  %v2891 = vmul.f32 %v2254, %v2717
  %v2892 = vmul.f32 %v2255, %v2719
  %v2893 = vmul.f32 %v2256, %v2721
  %v2894 = vmul.f32 %v2257, %v2723
  %v2895 = vmul.f32 %v2258, %v2725
  %v2896 = vmul.f32 %v2259, %v2727
  %v2897 = vmul.f32 %v2260, %v2729
  %v2898 = vmul.f32 %v2261, %v2731
  %v2899 = vmul.f32 %v2262, %v2733
  %v2900 = vmul.f32 %v2263, %v2735
  %v2901 = vadd.f32 %v2885, %v2807
  %v2902 = vadd.f32 %v2886, %v2812
  %v2903 = vadd.f32 %v2887, %v2817
  %v2904 = vadd.f32 %v2888, %v2822
  %v2905 = vadd.f32 %v2889, %v2827
  %v2906 = vadd.f32 %v2890, %v2832
  %v2907 = vadd.f32 %v2891, %v2837
  %v2908 = vadd.f32 %v2892, %v2842
  %v2909 = vadd.f32 %v2893, %v2847
  %v2910 = vadd.f32 %v2894, %v2852
  %v2911 = vadd.f32 %v2895, %v2857
  %v2912 = vadd.f32 %v2896, %v2862
  %v2913 = vadd.f32 %v2897, %v2867
  %v2914 = vadd.f32 %v2898, %v2872
  %v2915 = vadd.f32 %v2899, %v2877
  %v2916 = vadd.f32 %v2900, %v2882
  %s2917 = scalar_lea.vmem %s11, 24
  %v2918 = vld [vmem:[%s2917] sm:$0xff]
  %v2919 = vld [vmem:[%s2917 + $0x8] sm:$0xff]
  %v2920 = vld [vmem:[%s2917 + $0x10] sm:$0x1]
  %v2921 = vlaneseq
  %v2922 = vshrl.u32 %v2921, 7
  %v2923 = vsub.s32 0, %v2922
  %v2924 = vrot.slane %v2920, %v2923
  %v2926 = vsel %vm2209, %v2901, 0
  %v2929 = vsel %vm2209, %v2902, 0
  %v2932 = vsel %vm2209, %v2903, 0
  %v2935 = vsel %vm2209, %v2904, 0
  %v2938 = vsel %vm2209, %v2905, 0
  %v2941 = vsel %vm2209, %v2906, 0
  %v2944 = vsel %vm2209, %v2907, 0
  %v2947 = vsel %vm2209, %v2908, 0
  %v2950 = vsel %vm2209, %v2909, 0
  %v2953 = vsel %vm2209, %v2910, 0
  %v2956 = vsel %vm2209, %v2911, 0
  %v2959 = vsel %vm2209, %v2912, 0
  %v2962 = vsel %vm2209, %v2913, 0
  %v2965 = vsel %vm2209, %v2914, 0
  %v2968 = vsel %vm2209, %v2915, 0
  %v2971 = vsel %vm2209, %v2916, 0
  %2973 = vmatprep.subr.mxu0 0.0
  %2974 = vmatpush1.msra.mxu0 %v2918
  %2975 = vmatprep.subr.mxu0 0.0
  %2976 = vmatpush1.msra.mxu0 %v2919
  %2977 = vmatprep.subr.mxu0 0.0
  %2978 = vmatpush1.msra.mxu0 0.0
  %2979 = vmatprep.subr.mxu0 0.0
  %2980 = vmatpush1.msra.mxu0 0.0
  %2981 = vmatprep.subr.mxu0 0.0
  %2982 = vmatpush1.msra.mxu0 0.0
  %2983 = vmatprep.subr.mxu0 0.0
  %2984 = vmatpush1.msra.mxu0 0.0
  %2985 = vmatprep.subr.mxu0 0.0
  %2986 = vmatpush1.msra.mxu0 0.0
  %2987 = vmatprep.subr.mxu0 0.0
  %2988 = vmatpush1.msra.mxu0 0.0
  %2989 = vmatprep.subr.mxu0 0.0
  %2990 = vmatpush1.msra.mxu0 0.0
  %2991 = vmatprep.subr.mxu0 0.0
  %2992 = vmatpush1.msra.mxu0 0.0
  %2993 = vmatprep.subr.mxu0 0.0
  %2994 = vmatpush1.msra.mxu0 0.0
  %2995 = vmatprep.subr.mxu0 0.0
  %2996 = vmatpush1.msra.mxu0 0.0
  %2997 = vmatprep.subr.mxu0 0.0
  %2998 = vmatpush1.msra.mxu0 0.0
  %2999 = vmatprep.subr.mxu0 0.0
  %3000 = vmatpush1.msra.mxu0 0.0
  %3001 = vmatprep.subr.mxu0 0.0
  %3002 = vmatpush1.msra.mxu0 0.0
  %3003 = vmatprep.subr.mxu0 0.0
  %3004 = vmatpush1.msra.mxu0 0.0
  %3005 = vmatprep.subr.mxu0 0.0
  %3006 = vmatpush1.msra.mxu0 0.0
  %3007 = vmatprep.subr.mxu0 0.0
  %3008 = vmatpush1.msra.mxu0 0.0
  %3009 = vmatprep.subr.mxu0 0.0
  %3010 = vmatpush1.msra.mxu0 0.0
  %3011 = vmatprep.subr.mxu0 0.0
  %3012 = vmatpush1.msra.mxu0 0.0
  %3013 = vmatprep.subr.mxu0 0.0
  %3014 = vmatpush1.msra.mxu0 0.0
  %3015 = vmatprep.subr.mxu0 0.0
  %3016 = vmatpush1.msra.mxu0 0.0
  %3017 = vmatprep.subr.mxu0 0.0
  %3018 = vmatpush1.msra.mxu0 0.0
  %3019 = vmatprep.subr.mxu0 0.0
  %3020 = vmatpush1.msra.mxu0 0.0
  %3021 = vmatprep.subr.mxu0 0.0
  %3022 = vmatpush1.msra.mxu0 0.0
  %3023 = vmatprep.subr.mxu0 0.0
  %3024 = vmatpush1.msra.mxu0 0.0
  %3025 = vmatprep.subr.mxu0 0.0
  %3026 = vmatpush1.msra.mxu0 0.0
  %3027 = vmatprep.subr.mxu0 0.0
  %3028 = vmatpush1.msra.mxu0 0.0
  %3029 = vmatprep.subr.mxu0 0.0
  %3030 = vmatpush1.msra.mxu0 0.0
  %3031 = vmatprep.subr.mxu0 0.0
  %3032 = vmatpush1.msra.mxu0 0.0
  %3033 = vmatprep.subr.mxu0 0.0
  %3034 = vmatpush1.msra.mxu0 0.0
  %3035 = vmatprep.subr.mxu0 0.0
  %3036 = vmatpush1.msra.mxu0 0.0
  %3037 = vmatprep.mubr.f32.mxu0 0.0
  %3038 = vmatmul.mubr.f32.gmra.mrb[0].mxu0 %v2926
  %v3039 = vpop.f32.mrb[0].mxu0
  %v3040 = vadd.f32 %v2924, %v3039
  %v3041 = vpop.f32.mrb[0].mxu0
  %3042 = vmatprep.mubr.f32.mxu0 0.0
  %3043 = vmatmul.mubr.f32.gmra.mrb[0].mxu0 %v2929
  %v3044 = vpop.f32.mrb[0].mxu0
  %v3045 = vadd.f32 %v2924, %v3044
  %v3046 = vpop.f32.mrb[0].mxu0
  %3047 = vmatprep.mubr.f32.mxu0 0.0
  %3048 = vmatmul.mubr.f32.gmra.mrb[0].mxu0 %v2932
  %v3049 = vpop.f32.mrb[0].mxu0
  %v3050 = vadd.f32 %v2924, %v3049
  %v3051 = vpop.f32.mrb[0].mxu0
  %3052 = vmatprep.mubr.f32.mxu0 0.0
  %3053 = vmatmul.mubr.f32.gmra.mrb[0].mxu0 %v2935
  %v3054 = vpop.f32.mrb[0].mxu0
  %v3055 = vadd.f32 %v2924, %v3054
  %v3056 = vpop.f32.mrb[0].mxu0
  %3057 = vmatprep.mubr.f32.mxu0 0.0
  %3058 = vmatmul.mubr.f32.gmra.mrb[0].mxu0 %v2938
  %v3059 = vpop.f32.mrb[0].mxu0
  %v3060 = vadd.f32 %v2924, %v3059
  %v3061 = vpop.f32.mrb[0].mxu0
  %3062 = vmatprep.mubr.f32.mxu0 0.0
  %3063 = vmatmul.mubr.f32.gmra.mrb[0].mxu0 %v2941
  %v3064 = vpop.f32.mrb[0].mxu0
  %v3065 = vadd.f32 %v2924, %v3064
  %v3066 = vpop.f32.mrb[0].mxu0
  %3067 = vmatprep.mubr.f32.mxu0 0.0
  %3068 = vmatmul.mubr.f32.gmra.mrb[0].mxu0 %v2944
  %v3069 = vpop.f32.mrb[0].mxu0
  %v3070 = vadd.f32 %v2924, %v3069
  %v3071 = vpop.f32.mrb[0].mxu0
  %3072 = vmatprep.mubr.f32.mxu0 0.0
  %3073 = vmatmul.mubr.f32.gmra.mrb[0].mxu0 %v2947
  %v3074 = vpop.f32.mrb[0].mxu0
  %v3075 = vadd.f32 %v2924, %v3074
  %v3076 = vpop.f32.mrb[0].mxu0
  %3077 = vmatprep.mubr.f32.mxu0 0.0
  %3078 = vmatmul.mubr.f32.gmra.mrb[0].mxu0 %v2950
  %v3079 = vpop.f32.mrb[0].mxu0
  %v3080 = vadd.f32 %v2924, %v3079
  %v3081 = vpop.f32.mrb[0].mxu0
  %3082 = vmatprep.mubr.f32.mxu0 0.0
  %3083 = vmatmul.mubr.f32.gmra.mrb[0].mxu0 %v2953
  %v3084 = vpop.f32.mrb[0].mxu0
  %v3085 = vadd.f32 %v2924, %v3084
  %v3086 = vpop.f32.mrb[0].mxu0
  %3087 = vmatprep.mubr.f32.mxu0 0.0
  %3088 = vmatmul.mubr.f32.gmra.mrb[0].mxu0 %v2956
  %v3089 = vpop.f32.mrb[0].mxu0
  %v3090 = vadd.f32 %v2924, %v3089
  %v3091 = vpop.f32.mrb[0].mxu0
  %3092 = vmatprep.mubr.f32.mxu0 0.0
  %3093 = vmatmul.mubr.f32.gmra.mrb[0].mxu0 %v2959
  %v3094 = vpop.f32.mrb[0].mxu0
  %v3095 = vadd.f32 %v2924, %v3094
  %v3096 = vpop.f32.mrb[0].mxu0
  %3097 = vmatprep.mubr.f32.mxu0 0.0
  %3098 = vmatmul.mubr.f32.gmra.mrb[0].mxu0 %v2962
  %v3099 = vpop.f32.mrb[0].mxu0
  %v3100 = vadd.f32 %v2924, %v3099
  %v3101 = vpop.f32.mrb[0].mxu0
  %3102 = vmatprep.mubr.f32.mxu0 0.0
  %3103 = vmatmul.mubr.f32.gmra.mrb[0].mxu0 %v2965
  %v3104 = vpop.f32.mrb[0].mxu0
  %v3105 = vadd.f32 %v2924, %v3104
  %v3106 = vpop.f32.mrb[0].mxu0
  %3107 = vmatprep.mubr.f32.mxu0 0.0
  %3108 = vmatmul.mubr.f32.gmra.mrb[0].mxu0 %v2968
  %v3109 = vpop.f32.mrb[0].mxu0
  %v3110 = vadd.f32 %v2924, %v3109
  %v3111 = vpop.f32.mrb[0].mxu0
  %3112 = vmatprep.mubr.f32.mxu0 0.0
  %3113 = vmatmul.mubr.f32.gmra.mrb[0].mxu0 %v2971
  %v3114 = vpop.f32.mrb[0].mxu0
  %v3115 = vadd.f32 %v2924, %v3114
  %v3116 = vpop.f32.mrb[0].mxu0
  %3117 = vdwg.mxu0
  %v3118 = vmax.f32 %v3040, 0.0
  %v3119 = vmax.f32 %v3045, 0.0
  %v3120 = vmax.f32 %v3050, 0.0
  %v3121 = vmax.f32 %v3055, 0.0
  %v3122 = vmax.f32 %v3060, 0.0
  %v3123 = vmax.f32 %v3065, 0.0
  %v3124 = vmax.f32 %v3070, 0.0
  %v3125 = vmax.f32 %v3075, 0.0
  %v3126 = vmax.f32 %v3080, 0.0
  %v3127 = vmax.f32 %v3085, 0.0
  %v3128 = vmax.f32 %v3090, 0.0
  %v3129 = vmax.f32 %v3095, 0.0
  %v3130 = vmax.f32 %v3100, 0.0
  %v3131 = vmax.f32 %v3105, 0.0
  %v3132 = vmax.f32 %v3110, 0.0
  %v3133 = vmax.f32 %v3115, 0.0
  %s3134 = scalar_lea.vmem %s12, 40
  %v3135 = vld [vmem:[%s3134] sm:$0xff]
  %v3136 = vld [vmem:[%s3134 + $0x8] sm:$0xff]
  %v3137 = vld [vmem:[%s3134 + $0x10] sm:$0xff]
  %v3138 = vld [vmem:[%s3134 + $0x18] sm:$0xff]
  %v3139 = vld [vmem:[%s3134 + $0x20] sm:$0x1]
  %s3140 = scalar_lea.vmem %s12, 200
  %v3141 = vld [vmem:[%s3140] sm:$0xff]
  %v3142 = vld [vmem:[%s3140 + $0x8] sm:$0xff]
  %v3143 = vld [vmem:[%s3140 + $0x10] sm:$0xff]
  %v3144 = vld [vmem:[%s3140 + $0x18] sm:$0xff]
  %v3145 = vld [vmem:[%s3140 + $0x20] sm:$0x1]
  %v3146 = vlaneseq
  %v3147 = vshrl.u32 %v3146, 7
  %v3148 = vsub.s32 0, %v3147
  %v3149 = vrot.slane %v3139, %v3148
  %v3151 = vsel %vm1835, %v3118, 0
  %v3154 = vsel %vm1835, %v3119, 0
  %v3157 = vsel %vm1835, %v3120, 0
  %v3160 = vsel %vm1835, %v3121, 0
  %v3163 = vsel %vm1835, %v3122, 0
  %v3166 = vsel %vm1835, %v3123, 0
  %v3169 = vsel %vm1835, %v3124, 0
  %v3172 = vsel %vm1835, %v3125, 0
  %v3175 = vsel %vm1835, %v3126, 0
  %v3178 = vsel %vm1835, %v3127, 0
  %v3181 = vsel %vm1835, %v3128, 0
  %v3184 = vsel %vm1835, %v3129, 0
  %v3187 = vsel %vm1835, %v3130, 0
  %v3190 = vsel %vm1835, %v3131, 0
  %v3193 = vsel %vm1835, %v3132, 0
  %v3196 = vsel %vm1835, %v3133, 0
  %3198 = vmatprep.subr.mxu0 0.0
  %3199 = vmatpush1.msra.mxu0 %v3135
  %3200 = vmatprep.subr.mxu0 0.0
  %3201 = vmatpush1.msra.mxu0 %v3136
  %3202 = vmatprep.subr.mxu0 0.0
  %3203 = vmatpush1.msra.mxu0 %v3137
  %3204 = vmatprep.subr.mxu0 0.0
  %3205 = vmatpush1.msra.mxu0 %v3138
  %3206 = vmatprep.subr.mxu0 0.0
  %3207 = vmatpush1.msra.mxu0 0.0
  %3208 = vmatprep.subr.mxu0 0.0
  %3209 = vmatpush1.msra.mxu0 0.0
  %3210 = vmatprep.subr.mxu0 0.0
  %3211 = vmatpush1.msra.mxu0 0.0
  %3212 = vmatprep.subr.mxu0 0.0
  %3213 = vmatpush1.msra.mxu0 0.0
  %3214 = vmatprep.subr.mxu0 0.0
  %3215 = vmatpush1.msra.mxu0 0.0
  %3216 = vmatprep.subr.mxu0 0.0
  %3217 = vmatpush1.msra.mxu0 0.0
  %3218 = vmatprep.subr.mxu0 0.0
  %3219 = vmatpush1.msra.mxu0 0.0
  %3220 = vmatprep.subr.mxu0 0.0
  %3221 = vmatpush1.msra.mxu0 0.0
  %3222 = vmatprep.subr.mxu0 0.0
  %3223 = vmatpush1.msra.mxu0 0.0
  %3224 = vmatprep.subr.mxu0 0.0
  %3225 = vmatpush1.msra.mxu0 0.0
  %3226 = vmatprep.subr.mxu0 0.0
  %3227 = vmatpush1.msra.mxu0 0.0
  %3228 = vmatprep.subr.mxu0 0.0
  %3229 = vmatpush1.msra.mxu0 0.0
  %3230 = vmatprep.subr.mxu0 0.0
  %3231 = vmatpush1.msra.mxu0 0.0
  %3232 = vmatprep.subr.mxu0 0.0
  %3233 = vmatpush1.msra.mxu0 0.0
  %3234 = vmatprep.subr.mxu0 0.0
  %3235 = vmatpush1.msra.mxu0 0.0
  %3236 = vmatprep.subr.mxu0 0.0
  %3237 = vmatpush1.msra.mxu0 0.0
  %3238 = vmatprep.subr.mxu0 0.0
  %3239 = vmatpush1.msra.mxu0 0.0
  %3240 = vmatprep.subr.mxu0 0.0
  %3241 = vmatpush1.msra.mxu0 0.0
  %3242 = vmatprep.subr.mxu0 0.0
  %3243 = vmatpush1.msra.mxu0 0.0
  %3244 = vmatprep.subr.mxu0 0.0
  %3245 = vmatpush1.msra.mxu0 0.0
  %3246 = vmatprep.subr.mxu0 0.0
  %3247 = vmatpush1.msra.mxu0 0.0
  %3248 = vmatprep.subr.mxu0 0.0
  %3249 = vmatpush1.msra.mxu0 0.0
  %3250 = vmatprep.subr.mxu0 0.0
  %3251 = vmatpush1.msra.mxu0 0.0
  %3252 = vmatprep.subr.mxu0 0.0
  %3253 = vmatpush1.msra.mxu0 0.0
  %3254 = vmatprep.subr.mxu0 0.0
  %3255 = vmatpush1.msra.mxu0 0.0
  %3256 = vmatprep.subr.mxu0 0.0
  %3257 = vmatpush1.msra.mxu0 0.0
  %3258 = vmatprep.subr.mxu0 0.0
  %3259 = vmatpush1.msra.mxu0 0.0
  %3260 = vmatprep.subr.mxu0 0.0
  %3261 = vmatpush1.msra.mxu0 0.0
  %3262 = vmatprep.mubr.f32.mxu0 0.0
  %3263 = vmatmul.mubr.f32.gmra.mrb[0].mxu0 %v3151
  %v3264 = vpop.f32.mrb[0].mxu0
  %v3265 = vadd.f32 %v3149, %v3264
  %v3266 = vpop.f32.mrb[0].mxu0
  %3267 = vmatprep.mubr.f32.mxu0 0.0
  %3268 = vmatmul.mubr.f32.gmra.mrb[0].mxu0 %v3154
  %v3269 = vpop.f32.mrb[0].mxu0
  %v3270 = vadd.f32 %v3149, %v3269
  %v3271 = vpop.f32.mrb[0].mxu0
  %3272 = vmatprep.mubr.f32.mxu0 0.0
  %3273 = vmatmul.mubr.f32.gmra.mrb[0].mxu0 %v3157
  %v3274 = vpop.f32.mrb[0].mxu0
  %v3275 = vadd.f32 %v3149, %v3274
  %v3276 = vpop.f32.mrb[0].mxu0
  %3277 = vmatprep.mubr.f32.mxu0 0.0
  %3278 = vmatmul.mubr.f32.gmra.mrb[0].mxu0 %v3160
  %v3279 = vpop.f32.mrb[0].mxu0
  %v3280 = vadd.f32 %v3149, %v3279
  %v3281 = vpop.f32.mrb[0].mxu0
  %3282 = vmatprep.mubr.f32.mxu0 0.0
  %3283 = vmatmul.mubr.f32.gmra.mrb[0].mxu0 %v3163
  %v3284 = vpop.f32.mrb[0].mxu0
  %v3285 = vadd.f32 %v3149, %v3284
  %v3286 = vpop.f32.mrb[0].mxu0
  %3287 = vmatprep.mubr.f32.mxu0 0.0
  %3288 = vmatmul.mubr.f32.gmra.mrb[0].mxu0 %v3166
  %v3289 = vpop.f32.mrb[0].mxu0
  %v3290 = vadd.f32 %v3149, %v3289
  %v3291 = vpop.f32.mrb[0].mxu0
  %3292 = vmatprep.mubr.f32.mxu0 0.0
  %3293 = vmatmul.mubr.f32.gmra.mrb[0].mxu0 %v3169
  %v3294 = vpop.f32.mrb[0].mxu0
  %v3295 = vadd.f32 %v3149, %v3294
  %v3296 = vpop.f32.mrb[0].mxu0
  %3297 = vmatprep.mubr.f32.mxu0 0.0
  %3298 = vmatmul.mubr.f32.gmra.mrb[0].mxu0 %v3172
  %v3299 = vpop.f32.mrb[0].mxu0
  %v3300 = vadd.f32 %v3149, %v3299
  %v3301 = vpop.f32.mrb[0].mxu0
  %3302 = vmatprep.mubr.f32.mxu0 0.0
  %3303 = vmatmul.mubr.f32.gmra.mrb[0].mxu0 %v3175
  %v3304 = vpop.f32.mrb[0].mxu0
  %v3305 = vadd.f32 %v3149, %v3304
  %v3306 = vpop.f32.mrb[0].mxu0
  %3307 = vmatprep.mubr.f32.mxu0 0.0
  %3308 = vmatmul.mubr.f32.gmra.mrb[0].mxu0 %v3178
  %v3309 = vpop.f32.mrb[0].mxu0
  %v3310 = vadd.f32 %v3149, %v3309
  %v3311 = vpop.f32.mrb[0].mxu0
  %3312 = vmatprep.mubr.f32.mxu0 0.0
  %3313 = vmatmul.mubr.f32.gmra.mrb[0].mxu0 %v3181
  %v3314 = vpop.f32.mrb[0].mxu0
  %v3315 = vadd.f32 %v3149, %v3314
  %v3316 = vpop.f32.mrb[0].mxu0
  %3317 = vmatprep.mubr.f32.mxu0 0.0
  %3318 = vmatmul.mubr.f32.gmra.mrb[0].mxu0 %v3184
  %v3319 = vpop.f32.mrb[0].mxu0
  %v3320 = vadd.f32 %v3149, %v3319
  %v3321 = vpop.f32.mrb[0].mxu0
  %3322 = vmatprep.mubr.f32.mxu0 0.0
  %3323 = vmatmul.mubr.f32.gmra.mrb[0].mxu0 %v3187
  %v3324 = vpop.f32.mrb[0].mxu0
  %v3325 = vadd.f32 %v3149, %v3324
  %v3326 = vpop.f32.mrb[0].mxu0
  %3327 = vmatprep.mubr.f32.mxu0 0.0
  %3328 = vmatmul.mubr.f32.gmra.mrb[0].mxu0 %v3190
  %v3329 = vpop.f32.mrb[0].mxu0
  %v3330 = vadd.f32 %v3149, %v3329
  %v3331 = vpop.f32.mrb[0].mxu0
  %3332 = vmatprep.mubr.f32.mxu0 0.0
  %3333 = vmatmul.mubr.f32.gmra.mrb[0].mxu0 %v3193
  %v3334 = vpop.f32.mrb[0].mxu0
  %v3335 = vadd.f32 %v3149, %v3334
  %v3336 = vpop.f32.mrb[0].mxu0
  %3337 = vmatprep.mubr.f32.mxu0 0.0
  %3338 = vmatmul.mubr.f32.gmra.mrb[0].mxu0 %v3196
  %v3339 = vpop.f32.mrb[0].mxu0
  %v3340 = vadd.f32 %v3149, %v3339
  %v3341 = vpop.f32.mrb[0].mxu0
  %3342 = vdwg.mxu0
  %v3343 = vtanh.pop %v3265
  %v3344 = vtanh.pop %v3270
  %v3345 = vtanh.pop %v3275
  %v3346 = vtanh.pop %v3280
  %v3347 = vtanh.pop %v3285
  %v3348 = vtanh.pop %v3290
  %v3349 = vtanh.pop %v3295
  %v3350 = vtanh.pop %v3300
  %v3351 = vtanh.pop %v3305
  %v3352 = vtanh.pop %v3310
  %v3353 = vtanh.pop %v3315
  %v3354 = vtanh.pop %v3320
  %v3355 = vtanh.pop %v3325
  %v3356 = vtanh.pop %v3330
  %v3357 = vtanh.pop %v3335
  %v3358 = vtanh.pop %v3340
  %v3359 = vmul.f32 %v3343, 1.442695
  %v3360 = vpow.pop %v3359
  %v3361 = vmul.f32 %v3344, 1.442695
  %v3362 = vpow.pop %v3361
  %v3363 = vmul.f32 %v3345, 1.442695
  %v3364 = vpow.pop %v3363
  %v3365 = vmul.f32 %v3346, 1.442695
  %v3366 = vpow.pop %v3365
  %v3367 = vmul.f32 %v3347, 1.442695
  %v3368 = vpow.pop %v3367
  %v3369 = vmul.f32 %v3348, 1.442695
  %v3370 = vpow.pop %v3369
  %v3371 = vmul.f32 %v3349, 1.442695
  %v3372 = vpow.pop %v3371
  %v3373 = vmul.f32 %v3350, 1.442695
  %v3374 = vpow.pop %v3373
  %v3375 = vmul.f32 %v3351, 1.442695
  %v3376 = vpow.pop %v3375
  %v3377 = vmul.f32 %v3352, 1.442695
  %v3378 = vpow.pop %v3377
  %v3379 = vmul.f32 %v3353, 1.442695
  %v3380 = vpow.pop %v3379
  %v3381 = vmul.f32 %v3354, 1.442695
  %v3382 = vpow.pop %v3381
  %v3383 = vmul.f32 %v3355, 1.442695
  %v3384 = vpow.pop %v3383
  %v3385 = vmul.f32 %v3356, 1.442695
  %v3386 = vpow.pop %v3385
  %v3387 = vmul.f32 %v3357, 1.442695
  %v3388 = vpow.pop %v3387
  %v3389 = vmul.f32 %v3358, 1.442695
  %v3390 = vpow.pop %v3389
  %v3391 = vlaneseq
  %v3392 = vshrl.u32 %v3391, 7
  %v3393 = vsub.s32 0, %v3392
  %v3394 = vrot.slane %v3145, %v3393
  %3395 = vmatprep.subr.mxu0 0.0
  %3396 = vmatpush1.msra.mxu0 %v3141
  %3397 = vmatprep.subr.mxu0 0.0
  %3398 = vmatpush1.msra.mxu0 %v3142
  %3399 = vmatprep.subr.mxu0 0.0
  %3400 = vmatpush1.msra.mxu0 %v3143
  %3401 = vmatprep.subr.mxu0 0.0
  %3402 = vmatpush1.msra.mxu0 %v3144
  %3403 = vmatprep.subr.mxu0 0.0
  %3404 = vmatpush1.msra.mxu0 0.0
  %3405 = vmatprep.subr.mxu0 0.0
  %3406 = vmatpush1.msra.mxu0 0.0
  %3407 = vmatprep.subr.mxu0 0.0
  %3408 = vmatpush1.msra.mxu0 0.0
  %3409 = vmatprep.subr.mxu0 0.0
  %3410 = vmatpush1.msra.mxu0 0.0
  %3411 = vmatprep.subr.mxu0 0.0
  %3412 = vmatpush1.msra.mxu0 0.0
  %3413 = vmatprep.subr.mxu0 0.0
  %3414 = vmatpush1.msra.mxu0 0.0
  %3415 = vmatprep.subr.mxu0 0.0
  %3416 = vmatpush1.msra.mxu0 0.0
  %3417 = vmatprep.subr.mxu0 0.0
  %3418 = vmatpush1.msra.mxu0 0.0
  %3419 = vmatprep.subr.mxu0 0.0
  %3420 = vmatpush1.msra.mxu0 0.0
  %3421 = vmatprep.subr.mxu0 0.0
  %3422 = vmatpush1.msra.mxu0 0.0
  %3423 = vmatprep.subr.mxu0 0.0
  %3424 = vmatpush1.msra.mxu0 0.0
  %3425 = vmatprep.subr.mxu0 0.0
  %3426 = vmatpush1.msra.mxu0 0.0
  %3427 = vmatprep.subr.mxu0 0.0
  %3428 = vmatpush1.msra.mxu0 0.0
  %3429 = vmatprep.subr.mxu0 0.0
  %3430 = vmatpush1.msra.mxu0 0.0
  %3431 = vmatprep.subr.mxu0 0.0
  %3432 = vmatpush1.msra.mxu0 0.0
  %3433 = vmatprep.subr.mxu0 0.0
  %3434 = vmatpush1.msra.mxu0 0.0
  %3435 = vmatprep.subr.mxu0 0.0
  %3436 = vmatpush1.msra.mxu0 0.0
  %3437 = vmatprep.subr.mxu0 0.0
  %3438 = vmatpush1.msra.mxu0 0.0
  %3439 = vmatprep.subr.mxu0 0.0
  %3440 = vmatpush1.msra.mxu0 0.0
  %3441 = vmatprep.subr.mxu0 0.0
  %3442 = vmatpush1.msra.mxu0 0.0
  %3443 = vmatprep.subr.mxu0 0.0
  %3444 = vmatpush1.msra.mxu0 0.0
  %3445 = vmatprep.subr.mxu0 0.0
  %3446 = vmatpush1.msra.mxu0 0.0
  %3447 = vmatprep.subr.mxu0 0.0
  %3448 = vmatpush1.msra.mxu0 0.0
  %3449 = vmatprep.subr.mxu0 0.0
  %3450 = vmatpush1.msra.mxu0 0.0
  %3451 = vmatprep.subr.mxu0 0.0
  %3452 = vmatpush1.msra.mxu0 0.0
  %3453 = vmatprep.subr.mxu0 0.0
  %3454 = vmatpush1.msra.mxu0 0.0
  %3455 = vmatprep.subr.mxu0 0.0
  %3456 = vmatpush1.msra.mxu0 0.0
  %3457 = vmatprep.subr.mxu0 0.0
  %3458 = vmatpush1.msra.mxu0 0.0
  %3459 = vmatprep.mubr.f32.mxu0 0.0
  %3460 = vmatmul.mubr.f32.gmra.mrb[0].mxu0 %v3151
  %v3461 = vpop.f32.mrb[0].mxu0
  %v3462 = vadd.f32 %v3394, %v3461
  %v3463 = vpop.f32.mrb[0].mxu0
  %3464 = vmatprep.mubr.f32.mxu0 0.0
  %3465 = vmatmul.mubr.f32.gmra.mrb[0].mxu0 %v3154
  %v3466 = vpop.f32.mrb[0].mxu0
  %v3467 = vadd.f32 %v3394, %v3466
  %v3468 = vpop.f32.mrb[0].mxu0
  %3469 = vmatprep.mubr.f32.mxu0 0.0
  %3470 = vmatmul.mubr.f32.gmra.mrb[0].mxu0 %v3157
  %v3471 = vpop.f32.mrb[0].mxu0
  %v3472 = vadd.f32 %v3394, %v3471
  %v3473 = vpop.f32.mrb[0].mxu0
  %3474 = vmatprep.mubr.f32.mxu0 0.0
  %3475 = vmatmul.mubr.f32.gmra.mrb[0].mxu0 %v3160
  %v3476 = vpop.f32.mrb[0].mxu0
  %v3477 = vadd.f32 %v3394, %v3476
  %v3478 = vpop.f32.mrb[0].mxu0
  %3479 = vmatprep.mubr.f32.mxu0 0.0
  %3480 = vmatmul.mubr.f32.gmra.mrb[0].mxu0 %v3163
  %v3481 = vpop.f32.mrb[0].mxu0
  %v3482 = vadd.f32 %v3394, %v3481
  %v3483 = vpop.f32.mrb[0].mxu0
  %3484 = vmatprep.mubr.f32.mxu0 0.0
  %3485 = vmatmul.mubr.f32.gmra.mrb[0].mxu0 %v3166
  %v3486 = vpop.f32.mrb[0].mxu0
  %v3487 = vadd.f32 %v3394, %v3486
  %v3488 = vpop.f32.mrb[0].mxu0
  %3489 = vmatprep.mubr.f32.mxu0 0.0
  %3490 = vmatmul.mubr.f32.gmra.mrb[0].mxu0 %v3169
  %v3491 = vpop.f32.mrb[0].mxu0
  %v3492 = vadd.f32 %v3394, %v3491
  %v3493 = vpop.f32.mrb[0].mxu0
  %3494 = vmatprep.mubr.f32.mxu0 0.0
  %3495 = vmatmul.mubr.f32.gmra.mrb[0].mxu0 %v3172
  %v3496 = vpop.f32.mrb[0].mxu0
  %v3497 = vadd.f32 %v3394, %v3496
  %v3498 = vpop.f32.mrb[0].mxu0
  %3499 = vmatprep.mubr.f32.mxu0 0.0
  %3500 = vmatmul.mubr.f32.gmra.mrb[0].mxu0 %v3175
  %v3501 = vpop.f32.mrb[0].mxu0
  %v3502 = vadd.f32 %v3394, %v3501
  %v3503 = vpop.f32.mrb[0].mxu0
  %3504 = vmatprep.mubr.f32.mxu0 0.0
  %3505 = vmatmul.mubr.f32.gmra.mrb[0].mxu0 %v3178
  %v3506 = vpop.f32.mrb[0].mxu0
  %v3507 = vadd.f32 %v3394, %v3506
  %v3508 = vpop.f32.mrb[0].mxu0
  %3509 = vmatprep.mubr.f32.mxu0 0.0
  %3510 = vmatmul.mubr.f32.gmra.mrb[0].mxu0 %v3181
  %v3511 = vpop.f32.mrb[0].mxu0
  %v3512 = vadd.f32 %v3394, %v3511
  %v3513 = vpop.f32.mrb[0].mxu0
  %3514 = vmatprep.mubr.f32.mxu0 0.0
  %3515 = vmatmul.mubr.f32.gmra.mrb[0].mxu0 %v3184
  %v3516 = vpop.f32.mrb[0].mxu0
  %v3517 = vadd.f32 %v3394, %v3516
  %v3518 = vpop.f32.mrb[0].mxu0
  %3519 = vmatprep.mubr.f32.mxu0 0.0
  %3520 = vmatmul.mubr.f32.gmra.mrb[0].mxu0 %v3187
  %v3521 = vpop.f32.mrb[0].mxu0
  %v3522 = vadd.f32 %v3394, %v3521
  %v3523 = vpop.f32.mrb[0].mxu0
  %3524 = vmatprep.mubr.f32.mxu0 0.0
  %3525 = vmatmul.mubr.f32.gmra.mrb[0].mxu0 %v3190
  %v3526 = vpop.f32.mrb[0].mxu0
  %v3527 = vadd.f32 %v3394, %v3526
  %v3528 = vpop.f32.mrb[0].mxu0
  %3529 = vmatprep.mubr.f32.mxu0 0.0
  %3530 = vmatmul.mubr.f32.gmra.mrb[0].mxu0 %v3193
  %v3531 = vpop.f32.mrb[0].mxu0
  %v3532 = vadd.f32 %v3394, %v3531
  %v3533 = vpop.f32.mrb[0].mxu0
  %3534 = vmatprep.mubr.f32.mxu0 0.0
  %3535 = vmatmul.mubr.f32.gmra.mrb[0].mxu0 %v3196
  %v3536 = vpop.f32.mrb[0].mxu0
  %v3537 = vadd.f32 %v3394, %v3536
  %v3538 = vpop.f32.mrb[0].mxu0
  %3539 = vdwg.mxu0
  %v3540 = vmul.f32 %v2231, %v3360
  %v3541 = vmul.f32 %v2232, %v3362
  %v3542 = vmul.f32 %v2233, %v3364
  %v3543 = vmul.f32 %v2234, %v3366
  %v3544 = vmul.f32 %v2235, %v3368
  %v3545 = vmul.f32 %v2236, %v3370
  %v3546 = vmul.f32 %v2237, %v3372
  %v3547 = vmul.f32 %v2238, %v3374
  %v3548 = vmul.f32 %v2239, %v3376
  %v3549 = vmul.f32 %v2240, %v3378
  %v3550 = vmul.f32 %v2241, %v3380
  %v3551 = vmul.f32 %v2242, %v3382
  %v3552 = vmul.f32 %v2243, %v3384
  %v3553 = vmul.f32 %v2244, %v3386
  %v3554 = vmul.f32 %v2245, %v3388
  %v3555 = vmul.f32 %v2246, %v3390
  %v3556 = vadd.f32 %v3540, %v3462
  %v3557 = vadd.f32 %v3541, %v3467
  %v3558 = vadd.f32 %v3542, %v3472
  %v3559 = vadd.f32 %v3543, %v3477
  %v3560 = vadd.f32 %v3544, %v3482
  %v3561 = vadd.f32 %v3545, %v3487
  %v3562 = vadd.f32 %v3546, %v3492
  %v3563 = vadd.f32 %v3547, %v3497
  %v3564 = vadd.f32 %v3548, %v3502
  %v3565 = vadd.f32 %v3549, %v3507
  %v3566 = vadd.f32 %v3550, %v3512
  %v3567 = vadd.f32 %v3551, %v3517
  %v3568 = vadd.f32 %v3552, %v3522
  %v3569 = vadd.f32 %v3553, %v3527
  %v3570 = vadd.f32 %v3554, %v3532
  %v3571 = vadd.f32 %v3555, %v3537
  %s3572 = scalar_lea.vmem %s11, 48
  %v3573 = vld [vmem:[%s3572] sm:$0xff]
  %v3574 = vld [vmem:[%s3572 + $0x8] sm:$0xff]
  %v3575 = vld [vmem:[%s3572 + $0x10] sm:$0x1]
  %v3576 = vlaneseq
  %v3577 = vshrl.u32 %v3576, 7
  %v3578 = vsub.s32 0, %v3577
  %v3579 = vrot.slane %v3575, %v3578
  %v3581 = vsel %vm2209, %v3556, 0
  %v3584 = vsel %vm2209, %v3557, 0
  %v3587 = vsel %vm2209, %v3558, 0
  %v3590 = vsel %vm2209, %v3559, 0
  %v3593 = vsel %vm2209, %v3560, 0
  %v3596 = vsel %vm2209, %v3561, 0
  %v3599 = vsel %vm2209, %v3562, 0
  %v3602 = vsel %vm2209, %v3563, 0
  %v3605 = vsel %vm2209, %v3564, 0
  %v3608 = vsel %vm2209, %v3565, 0
  %v3611 = vsel %vm2209, %v3566, 0
  %v3614 = vsel %vm2209, %v3567, 0
  %v3617 = vsel %vm2209, %v3568, 0
  %v3620 = vsel %vm2209, %v3569, 0
  %v3623 = vsel %vm2209, %v3570, 0
  %v3626 = vsel %vm2209, %v3571, 0
  %3628 = vmatprep.subr.mxu0 0.0
  %3629 = vmatpush1.msra.mxu0 %v3573
  %3630 = vmatprep.subr.mxu0 0.0
  %3631 = vmatpush1.msra.mxu0 %v3574
  %3632 = vmatprep.subr.mxu0 0.0
  %3633 = vmatpush1.msra.mxu0 0.0
  %3634 = vmatprep.subr.mxu0 0.0
  %3635 = vmatpush1.msra.mxu0 0.0
  %3636 = vmatprep.subr.mxu0 0.0
  %3637 = vmatpush1.msra.mxu0 0.0
  %3638 = vmatprep.subr.mxu0 0.0
  %3639 = vmatpush1.msra.mxu0 0.0
  %3640 = vmatprep.subr.mxu0 0.0
  %3641 = vmatpush1.msra.mxu0 0.0
  %3642 = vmatprep.subr.mxu0 0.0
  %3643 = vmatpush1.msra.mxu0 0.0
  %3644 = vmatprep.subr.mxu0 0.0
  %3645 = vmatpush1.msra.mxu0 0.0
  %3646 = vmatprep.subr.mxu0 0.0
  %3647 = vmatpush1.msra.mxu0 0.0
  %3648 = vmatprep.subr.mxu0 0.0
  %3649 = vmatpush1.msra.mxu0 0.0
  %3650 = vmatprep.subr.mxu0 0.0
  %3651 = vmatpush1.msra.mxu0 0.0
  %3652 = vmatprep.subr.mxu0 0.0
  %3653 = vmatpush1.msra.mxu0 0.0
  %3654 = vmatprep.subr.mxu0 0.0
  %3655 = vmatpush1.msra.mxu0 0.0
  %3656 = vmatprep.subr.mxu0 0.0
  %3657 = vmatpush1.msra.mxu0 0.0
  %3658 = vmatprep.subr.mxu0 0.0
  %3659 = vmatpush1.msra.mxu0 0.0
  %3660 = vmatprep.subr.mxu0 0.0
  %3661 = vmatpush1.msra.mxu0 0.0
  %3662 = vmatprep.subr.mxu0 0.0
  %3663 = vmatpush1.msra.mxu0 0.0
  %3664 = vmatprep.subr.mxu0 0.0
  %3665 = vmatpush1.msra.mxu0 0.0
  %3666 = vmatprep.subr.mxu0 0.0
  %3667 = vmatpush1.msra.mxu0 0.0
  %3668 = vmatprep.subr.mxu0 0.0
  %3669 = vmatpush1.msra.mxu0 0.0
  %3670 = vmatprep.subr.mxu0 0.0
  %3671 = vmatpush1.msra.mxu0 0.0
  %3672 = vmatprep.subr.mxu0 0.0
  %3673 = vmatpush1.msra.mxu0 0.0
  %3674 = vmatprep.subr.mxu0 0.0
  %3675 = vmatpush1.msra.mxu0 0.0
  %3676 = vmatprep.subr.mxu0 0.0
  %3677 = vmatpush1.msra.mxu0 0.0
  %3678 = vmatprep.subr.mxu0 0.0
  %3679 = vmatpush1.msra.mxu0 0.0
  %3680 = vmatprep.subr.mxu0 0.0
  %3681 = vmatpush1.msra.mxu0 0.0
  %3682 = vmatprep.subr.mxu0 0.0
  %3683 = vmatpush1.msra.mxu0 0.0
  %3684 = vmatprep.subr.mxu0 0.0
  %3685 = vmatpush1.msra.mxu0 0.0
  %3686 = vmatprep.subr.mxu0 0.0
  %3687 = vmatpush1.msra.mxu0 0.0
  %3688 = vmatprep.subr.mxu0 0.0
  %3689 = vmatpush1.msra.mxu0 0.0
  %3690 = vmatprep.subr.mxu0 0.0
  %3691 = vmatpush1.msra.mxu0 0.0
  %3692 = vmatprep.mubr.f32.mxu0 0.0
  %3693 = vmatmul.mubr.f32.gmra.mrb[0].mxu0 %v3581
  %v3694 = vpop.f32.mrb[0].mxu0
  %v3695 = vadd.f32 %v3579, %v3694
  %v3696 = vpop.f32.mrb[0].mxu0
  %3697 = vmatprep.mubr.f32.mxu0 0.0
  %3698 = vmatmul.mubr.f32.gmra.mrb[0].mxu0 %v3584
  %v3699 = vpop.f32.mrb[0].mxu0
  %v3700 = vadd.f32 %v3579, %v3699
  %v3701 = vpop.f32.mrb[0].mxu0
  %3702 = vmatprep.mubr.f32.mxu0 0.0
  %3703 = vmatmul.mubr.f32.gmra.mrb[0].mxu0 %v3587
  %v3704 = vpop.f32.mrb[0].mxu0
  %v3705 = vadd.f32 %v3579, %v3704
  %v3706 = vpop.f32.mrb[0].mxu0
  %3707 = vmatprep.mubr.f32.mxu0 0.0
  %3708 = vmatmul.mubr.f32.gmra.mrb[0].mxu0 %v3590
  %v3709 = vpop.f32.mrb[0].mxu0
  %v3710 = vadd.f32 %v3579, %v3709
  %v3711 = vpop.f32.mrb[0].mxu0
  %3712 = vmatprep.mubr.f32.mxu0 0.0
  %3713 = vmatmul.mubr.f32.gmra.mrb[0].mxu0 %v3593
  %v3714 = vpop.f32.mrb[0].mxu0
  %v3715 = vadd.f32 %v3579, %v3714
  %v3716 = vpop.f32.mrb[0].mxu0
  %3717 = vmatprep.mubr.f32.mxu0 0.0
  %3718 = vmatmul.mubr.f32.gmra.mrb[0].mxu0 %v3596
  %v3719 = vpop.f32.mrb[0].mxu0
  %v3720 = vadd.f32 %v3579, %v3719
  %v3721 = vpop.f32.mrb[0].mxu0
  %3722 = vmatprep.mubr.f32.mxu0 0.0
  %3723 = vmatmul.mubr.f32.gmra.mrb[0].mxu0 %v3599
  %v3724 = vpop.f32.mrb[0].mxu0
  %v3725 = vadd.f32 %v3579, %v3724
  %v3726 = vpop.f32.mrb[0].mxu0
  %3727 = vmatprep.mubr.f32.mxu0 0.0
  %3728 = vmatmul.mubr.f32.gmra.mrb[0].mxu0 %v3602
  %v3729 = vpop.f32.mrb[0].mxu0
  %v3730 = vadd.f32 %v3579, %v3729
  %v3731 = vpop.f32.mrb[0].mxu0
  %3732 = vmatprep.mubr.f32.mxu0 0.0
  %3733 = vmatmul.mubr.f32.gmra.mrb[0].mxu0 %v3605
  %v3734 = vpop.f32.mrb[0].mxu0
  %v3735 = vadd.f32 %v3579, %v3734
  %v3736 = vpop.f32.mrb[0].mxu0
  %3737 = vmatprep.mubr.f32.mxu0 0.0
  %3738 = vmatmul.mubr.f32.gmra.mrb[0].mxu0 %v3608
  %v3739 = vpop.f32.mrb[0].mxu0
  %v3740 = vadd.f32 %v3579, %v3739
  %v3741 = vpop.f32.mrb[0].mxu0
  %3742 = vmatprep.mubr.f32.mxu0 0.0
  %3743 = vmatmul.mubr.f32.gmra.mrb[0].mxu0 %v3611
  %v3744 = vpop.f32.mrb[0].mxu0
  %v3745 = vadd.f32 %v3579, %v3744
  %v3746 = vpop.f32.mrb[0].mxu0
  %3747 = vmatprep.mubr.f32.mxu0 0.0
  %3748 = vmatmul.mubr.f32.gmra.mrb[0].mxu0 %v3614
  %v3749 = vpop.f32.mrb[0].mxu0
  %v3750 = vadd.f32 %v3579, %v3749
  %v3751 = vpop.f32.mrb[0].mxu0
  %3752 = vmatprep.mubr.f32.mxu0 0.0
  %3753 = vmatmul.mubr.f32.gmra.mrb[0].mxu0 %v3617
  %v3754 = vpop.f32.mrb[0].mxu0
  %v3755 = vadd.f32 %v3579, %v3754
  %v3756 = vpop.f32.mrb[0].mxu0
  %3757 = vmatprep.mubr.f32.mxu0 0.0
  %3758 = vmatmul.mubr.f32.gmra.mrb[0].mxu0 %v3620
  %v3759 = vpop.f32.mrb[0].mxu0
  %v3760 = vadd.f32 %v3579, %v3759
  %v3761 = vpop.f32.mrb[0].mxu0
  %3762 = vmatprep.mubr.f32.mxu0 0.0
  %3763 = vmatmul.mubr.f32.gmra.mrb[0].mxu0 %v3623
  %v3764 = vpop.f32.mrb[0].mxu0
  %v3765 = vadd.f32 %v3579, %v3764
  %v3766 = vpop.f32.mrb[0].mxu0
  %3767 = vmatprep.mubr.f32.mxu0 0.0
  %3768 = vmatmul.mubr.f32.gmra.mrb[0].mxu0 %v3626
  %v3769 = vpop.f32.mrb[0].mxu0
  %v3770 = vadd.f32 %v3579, %v3769
  %v3771 = vpop.f32.mrb[0].mxu0
  %3772 = vdwg.mxu0
  %v3773 = vmax.f32 %v3695, 0.0
  %v3774 = vmax.f32 %v3700, 0.0
  %v3775 = vmax.f32 %v3705, 0.0
  %v3776 = vmax.f32 %v3710, 0.0
  %v3777 = vmax.f32 %v3715, 0.0
  %v3778 = vmax.f32 %v3720, 0.0
  %v3779 = vmax.f32 %v3725, 0.0
  %v3780 = vmax.f32 %v3730, 0.0
  %v3781 = vmax.f32 %v3735, 0.0
  %v3782 = vmax.f32 %v3740, 0.0
  %v3783 = vmax.f32 %v3745, 0.0
  %v3784 = vmax.f32 %v3750, 0.0
  %v3785 = vmax.f32 %v3755, 0.0
  %v3786 = vmax.f32 %v3760, 0.0
  %v3787 = vmax.f32 %v3765, 0.0
  %v3788 = vmax.f32 %v3770, 0.0
  %s3789 = scalar_lea.vmem %s12, 80
  %v3790 = vld [vmem:[%s3789] sm:$0xff]
  %v3791 = vld [vmem:[%s3789 + $0x8] sm:$0xff]
  %v3792 = vld [vmem:[%s3789 + $0x10] sm:$0xff]
  %v3793 = vld [vmem:[%s3789 + $0x18] sm:$0xff]
  %v3794 = vld [vmem:[%s3789 + $0x20] sm:$0x1]
  %s3795 = scalar_lea.vmem %s12, 240
  %v3796 = vld [vmem:[%s3795] sm:$0xff]
  %v3797 = vld [vmem:[%s3795 + $0x8] sm:$0xff]
  %v3798 = vld [vmem:[%s3795 + $0x10] sm:$0xff]
  %v3799 = vld [vmem:[%s3795 + $0x18] sm:$0xff]
  %v3800 = vld [vmem:[%s3795 + $0x20] sm:$0x1]
  %v3801 = vlaneseq
  %v3802 = vshrl.u32 %v3801, 7
  %v3803 = vsub.s32 0, %v3802
  %v3804 = vrot.slane %v3794, %v3803
  %v3806 = vsel %vm1835, %v3773, 0
  %v3809 = vsel %vm1835, %v3774, 0
  %v3812 = vsel %vm1835, %v3775, 0
  %v3815 = vsel %vm1835, %v3776, 0
  %v3818 = vsel %vm1835, %v3777, 0
  %v3821 = vsel %vm1835, %v3778, 0
  %v3824 = vsel %vm1835, %v3779, 0
  %v3827 = vsel %vm1835, %v3780, 0
  %v3830 = vsel %vm1835, %v3781, 0
  %v3833 = vsel %vm1835, %v3782, 0
  %v3836 = vsel %vm1835, %v3783, 0
  %v3839 = vsel %vm1835, %v3784, 0
  %v3842 = vsel %vm1835, %v3785, 0
  %v3845 = vsel %vm1835, %v3786, 0
  %v3848 = vsel %vm1835, %v3787, 0
  %v3851 = vsel %vm1835, %v3788, 0
  %3853 = vmatprep.subr.mxu0 0.0
  %3854 = vmatpush1.msra.mxu0 %v3790
  %3855 = vmatprep.subr.mxu0 0.0
  %3856 = vmatpush1.msra.mxu0 %v3791
  %3857 = vmatprep.subr.mxu0 0.0
  %3858 = vmatpush1.msra.mxu0 %v3792
  %3859 = vmatprep.subr.mxu0 0.0
  %3860 = vmatpush1.msra.mxu0 %v3793
  %3861 = vmatprep.subr.mxu0 0.0
  %3862 = vmatpush1.msra.mxu0 0.0
  %3863 = vmatprep.subr.mxu0 0.0
  %3864 = vmatpush1.msra.mxu0 0.0
  %3865 = vmatprep.subr.mxu0 0.0
  %3866 = vmatpush1.msra.mxu0 0.0
  %3867 = vmatprep.subr.mxu0 0.0
  %3868 = vmatpush1.msra.mxu0 0.0
  %3869 = vmatprep.subr.mxu0 0.0
  %3870 = vmatpush1.msra.mxu0 0.0
  %3871 = vmatprep.subr.mxu0 0.0
  %3872 = vmatpush1.msra.mxu0 0.0
  %3873 = vmatprep.subr.mxu0 0.0
  %3874 = vmatpush1.msra.mxu0 0.0
  %3875 = vmatprep.subr.mxu0 0.0
  %3876 = vmatpush1.msra.mxu0 0.0
  %3877 = vmatprep.subr.mxu0 0.0
  %3878 = vmatpush1.msra.mxu0 0.0
  %3879 = vmatprep.subr.mxu0 0.0
  %3880 = vmatpush1.msra.mxu0 0.0
  %3881 = vmatprep.subr.mxu0 0.0
  %3882 = vmatpush1.msra.mxu0 0.0
  %3883 = vmatprep.subr.mxu0 0.0
  %3884 = vmatpush1.msra.mxu0 0.0
  %3885 = vmatprep.subr.mxu0 0.0
  %3886 = vmatpush1.msra.mxu0 0.0
  %3887 = vmatprep.subr.mxu0 0.0
  %3888 = vmatpush1.msra.mxu0 0.0
  %3889 = vmatprep.subr.mxu0 0.0
  %3890 = vmatpush1.msra.mxu0 0.0
  %3891 = vmatprep.subr.mxu0 0.0
  %3892 = vmatpush1.msra.mxu0 0.0
  %3893 = vmatprep.subr.mxu0 0.0
  %3894 = vmatpush1.msra.mxu0 0.0
  %3895 = vmatprep.subr.mxu0 0.0
  %3896 = vmatpush1.msra.mxu0 0.0
  %3897 = vmatprep.subr.mxu0 0.0
  %3898 = vmatpush1.msra.mxu0 0.0
  %3899 = vmatprep.subr.mxu0 0.0
  %3900 = vmatpush1.msra.mxu0 0.0
  %3901 = vmatprep.subr.mxu0 0.0
  %3902 = vmatpush1.msra.mxu0 0.0
  %3903 = vmatprep.subr.mxu0 0.0
  %3904 = vmatpush1.msra.mxu0 0.0
  %3905 = vmatprep.subr.mxu0 0.0
  %3906 = vmatpush1.msra.mxu0 0.0
  %3907 = vmatprep.subr.mxu0 0.0
  %3908 = vmatpush1.msra.mxu0 0.0
  %3909 = vmatprep.subr.mxu0 0.0
  %3910 = vmatpush1.msra.mxu0 0.0
  %3911 = vmatprep.subr.mxu0 0.0
  %3912 = vmatpush1.msra.mxu0 0.0
  %3913 = vmatprep.subr.mxu0 0.0
  %3914 = vmatpush1.msra.mxu0 0.0
  %3915 = vmatprep.subr.mxu0 0.0
  %3916 = vmatpush1.msra.mxu0 0.0
  %3917 = vmatprep.mubr.f32.mxu0 0.0
  %3918 = vmatmul.mubr.f32.gmra.mrb[0].mxu0 %v3806
  %v3919 = vpop.f32.mrb[0].mxu0
  %v3920 = vadd.f32 %v3804, %v3919
  %v3921 = vpop.f32.mrb[0].mxu0
  %3922 = vmatprep.mubr.f32.mxu0 0.0
  %3923 = vmatmul.mubr.f32.gmra.mrb[0].mxu0 %v3809
  %v3924 = vpop.f32.mrb[0].mxu0
  %v3925 = vadd.f32 %v3804, %v3924
  %v3926 = vpop.f32.mrb[0].mxu0
  %3927 = vmatprep.mubr.f32.mxu0 0.0
  %3928 = vmatmul.mubr.f32.gmra.mrb[0].mxu0 %v3812
  %v3929 = vpop.f32.mrb[0].mxu0
  %v3930 = vadd.f32 %v3804, %v3929
  %v3931 = vpop.f32.mrb[0].mxu0
  %3932 = vmatprep.mubr.f32.mxu0 0.0
  %3933 = vmatmul.mubr.f32.gmra.mrb[0].mxu0 %v3815
  %v3934 = vpop.f32.mrb[0].mxu0
  %v3935 = vadd.f32 %v3804, %v3934
  %v3936 = vpop.f32.mrb[0].mxu0
  %3937 = vmatprep.mubr.f32.mxu0 0.0
  %3938 = vmatmul.mubr.f32.gmra.mrb[0].mxu0 %v3818
  %v3939 = vpop.f32.mrb[0].mxu0
  %v3940 = vadd.f32 %v3804, %v3939
  %v3941 = vpop.f32.mrb[0].mxu0
  %3942 = vmatprep.mubr.f32.mxu0 0.0
  %3943 = vmatmul.mubr.f32.gmra.mrb[0].mxu0 %v3821
  %v3944 = vpop.f32.mrb[0].mxu0
  %v3945 = vadd.f32 %v3804, %v3944
  %v3946 = vpop.f32.mrb[0].mxu0
  %3947 = vmatprep.mubr.f32.mxu0 0.0
  %3948 = vmatmul.mubr.f32.gmra.mrb[0].mxu0 %v3824
  %v3949 = vpop.f32.mrb[0].mxu0
  %v3950 = vadd.f32 %v3804, %v3949
  %v3951 = vpop.f32.mrb[0].mxu0
  %3952 = vmatprep.mubr.f32.mxu0 0.0
  %3953 = vmatmul.mubr.f32.gmra.mrb[0].mxu0 %v3827
  %v3954 = vpop.f32.mrb[0].mxu0
  %v3955 = vadd.f32 %v3804, %v3954
  %v3956 = vpop.f32.mrb[0].mxu0
  %3957 = vmatprep.mubr.f32.mxu0 0.0
  %3958 = vmatmul.mubr.f32.gmra.mrb[0].mxu0 %v3830
  %v3959 = vpop.f32.mrb[0].mxu0
  %v3960 = vadd.f32 %v3804, %v3959
  %v3961 = vpop.f32.mrb[0].mxu0
  %3962 = vmatprep.mubr.f32.mxu0 0.0
  %3963 = vmatmul.mubr.f32.gmra.mrb[0].mxu0 %v3833
  %v3964 = vpop.f32.mrb[0].mxu0
  %v3965 = vadd.f32 %v3804, %v3964
  %v3966 = vpop.f32.mrb[0].mxu0
  %3967 = vmatprep.mubr.f32.mxu0 0.0
  %3968 = vmatmul.mubr.f32.gmra.mrb[0].mxu0 %v3836
  %v3969 = vpop.f32.mrb[0].mxu0
  %v3970 = vadd.f32 %v3804, %v3969
  %v3971 = vpop.f32.mrb[0].mxu0
  %3972 = vmatprep.mubr.f32.mxu0 0.0
  %3973 = vmatmul.mubr.f32.gmra.mrb[0].mxu0 %v3839
  %v3974 = vpop.f32.mrb[0].mxu0
  %v3975 = vadd.f32 %v3804, %v3974
  %v3976 = vpop.f32.mrb[0].mxu0
  %3977 = vmatprep.mubr.f32.mxu0 0.0
  %3978 = vmatmul.mubr.f32.gmra.mrb[0].mxu0 %v3842
  %v3979 = vpop.f32.mrb[0].mxu0
  %v3980 = vadd.f32 %v3804, %v3979
  %v3981 = vpop.f32.mrb[0].mxu0
  %3982 = vmatprep.mubr.f32.mxu0 0.0
  %3983 = vmatmul.mubr.f32.gmra.mrb[0].mxu0 %v3845
  %v3984 = vpop.f32.mrb[0].mxu0
  %v3985 = vadd.f32 %v3804, %v3984
  %v3986 = vpop.f32.mrb[0].mxu0
  %3987 = vmatprep.mubr.f32.mxu0 0.0
  %3988 = vmatmul.mubr.f32.gmra.mrb[0].mxu0 %v3848
  %v3989 = vpop.f32.mrb[0].mxu0
  %v3990 = vadd.f32 %v3804, %v3989
  %v3991 = vpop.f32.mrb[0].mxu0
  %3992 = vmatprep.mubr.f32.mxu0 0.0
  %3993 = vmatmul.mubr.f32.gmra.mrb[0].mxu0 %v3851
  %v3994 = vpop.f32.mrb[0].mxu0
  %v3995 = vadd.f32 %v3804, %v3994
  %v3996 = vpop.f32.mrb[0].mxu0
  %3997 = vdwg.mxu0
  %v3998 = vtanh.pop %v3920
  %v3999 = vtanh.pop %v3925
  %v4000 = vtanh.pop %v3930
  %v4001 = vtanh.pop %v3935
  %v4002 = vtanh.pop %v3940
  %v4003 = vtanh.pop %v3945
  %v4004 = vtanh.pop %v3950
  %v4005 = vtanh.pop %v3955
  %v4006 = vtanh.pop %v3960
  %v4007 = vtanh.pop %v3965
  %v4008 = vtanh.pop %v3970
  %v4009 = vtanh.pop %v3975
  %v4010 = vtanh.pop %v3980
  %v4011 = vtanh.pop %v3985
  %v4012 = vtanh.pop %v3990
  %v4013 = vtanh.pop %v3995
  %v4014 = vmul.f32 %v3998, 1.442695
  %v4015 = vpow.pop %v4014
  %v4016 = vmul.f32 %v3999, 1.442695
  %v4017 = vpow.pop %v4016
  %v4018 = vmul.f32 %v4000, 1.442695
  %v4019 = vpow.pop %v4018
  %v4020 = vmul.f32 %v4001, 1.442695
  %v4021 = vpow.pop %v4020
  %v4022 = vmul.f32 %v4002, 1.442695
  %v4023 = vpow.pop %v4022
  %v4024 = vmul.f32 %v4003, 1.442695
  %v4025 = vpow.pop %v4024
  %v4026 = vmul.f32 %v4004, 1.442695
  %v4027 = vpow.pop %v4026
  %v4028 = vmul.f32 %v4005, 1.442695
  %v4029 = vpow.pop %v4028
  %v4030 = vmul.f32 %v4006, 1.442695
  %v4031 = vpow.pop %v4030
  %v4032 = vmul.f32 %v4007, 1.442695
  %v4033 = vpow.pop %v4032
  %v4034 = vmul.f32 %v4008, 1.442695
  %v4035 = vpow.pop %v4034
  %v4036 = vmul.f32 %v4009, 1.442695
  %v4037 = vpow.pop %v4036
  %v4038 = vmul.f32 %v4010, 1.442695
  %v4039 = vpow.pop %v4038
  %v4040 = vmul.f32 %v4011, 1.442695
  %v4041 = vpow.pop %v4040
  %v4042 = vmul.f32 %v4012, 1.442695
  %v4043 = vpow.pop %v4042
  %v4044 = vmul.f32 %v4013, 1.442695
  %v4045 = vpow.pop %v4044
  %v4046 = vlaneseq
  %v4047 = vshrl.u32 %v4046, 7
  %v4048 = vsub.s32 0, %v4047
  %v4049 = vrot.slane %v3800, %v4048
  %4050 = vmatprep.subr.mxu0 0.0
  %4051 = vmatpush1.msra.mxu0 %v3796
  %4052 = vmatprep.subr.mxu0 0.0
  %4053 = vmatpush1.msra.mxu0 %v3797
  %4054 = vmatprep.subr.mxu0 0.0
  %4055 = vmatpush1.msra.mxu0 %v3798
  %4056 = vmatprep.subr.mxu0 0.0
  %4057 = vmatpush1.msra.mxu0 %v3799
  %4058 = vmatprep.subr.mxu0 0.0
  %4059 = vmatpush1.msra.mxu0 0.0
  %4060 = vmatprep.subr.mxu0 0.0
  %4061 = vmatpush1.msra.mxu0 0.0
  %4062 = vmatprep.subr.mxu0 0.0
  %4063 = vmatpush1.msra.mxu0 0.0
  %4064 = vmatprep.subr.mxu0 0.0
  %4065 = vmatpush1.msra.mxu0 0.0
  %4066 = vmatprep.subr.mxu0 0.0
  %4067 = vmatpush1.msra.mxu0 0.0
  %4068 = vmatprep.subr.mxu0 0.0
  %4069 = vmatpush1.msra.mxu0 0.0
  %4070 = vmatprep.subr.mxu0 0.0
  %4071 = vmatpush1.msra.mxu0 0.0
  %4072 = vmatprep.subr.mxu0 0.0
  %4073 = vmatpush1.msra.mxu0 0.0
  %4074 = vmatprep.subr.mxu0 0.0
  %4075 = vmatpush1.msra.mxu0 0.0
  %4076 = vmatprep.subr.mxu0 0.0
  %4077 = vmatpush1.msra.mxu0 0.0
  %4078 = vmatprep.subr.mxu0 0.0
  %4079 = vmatpush1.msra.mxu0 0.0
  %4080 = vmatprep.subr.mxu0 0.0
  %4081 = vmatpush1.msra.mxu0 0.0
  %4082 = vmatprep.subr.mxu0 0.0
  %4083 = vmatpush1.msra.mxu0 0.0
  %4084 = vmatprep.subr.mxu0 0.0
  %4085 = vmatpush1.msra.mxu0 0.0
  %4086 = vmatprep.subr.mxu0 0.0
  %4087 = vmatpush1.msra.mxu0 0.0
  %4088 = vmatprep.subr.mxu0 0.0
  %4089 = vmatpush1.msra.mxu0 0.0
  %4090 = vmatprep.subr.mxu0 0.0
  %4091 = vmatpush1.msra.mxu0 0.0
  %4092 = vmatprep.subr.mxu0 0.0
  %4093 = vmatpush1.msra.mxu0 0.0
  %4094 = vmatprep.subr.mxu0 0.0
  %4095 = vmatpush1.msra.mxu0 0.0
  %4096 = vmatprep.subr.mxu0 0.0
  %4097 = vmatpush1.msra.mxu0 0.0
  %4098 = vmatprep.subr.mxu0 0.0
  %4099 = vmatpush1.msra.mxu0 0.0
  %4100 = vmatprep.subr.mxu0 0.0
  %4101 = vmatpush1.msra.mxu0 0.0
  %4102 = vmatprep.subr.mxu0 0.0
  %4103 = vmatpush1.msra.mxu0 0.0
  %4104 = vmatprep.subr.mxu0 0.0
  %4105 = vmatpush1.msra.mxu0 0.0
  %4106 = vmatprep.subr.mxu0 0.0
  %4107 = vmatpush1.msra.mxu0 0.0
  %4108 = vmatprep.subr.mxu0 0.0
  %4109 = vmatpush1.msra.mxu0 0.0
  %4110 = vmatprep.subr.mxu0 0.0
  %4111 = vmatpush1.msra.mxu0 0.0
  %4112 = vmatprep.subr.mxu0 0.0
  %4113 = vmatpush1.msra.mxu0 0.0
  %4114 = vmatprep.mubr.f32.mxu0 0.0
  %4115 = vmatmul.mubr.f32.gmra.mrb[0].mxu0 %v3806
  %v4116 = vpop.f32.mrb[0].mxu0
  %v4117 = vadd.f32 %v4049, %v4116
  %v4118 = vpop.f32.mrb[0].mxu0
  %4119 = vmatprep.mubr.f32.mxu0 0.0
  %4120 = vmatmul.mubr.f32.gmra.mrb[0].mxu0 %v3809
  %v4121 = vpop.f32.mrb[0].mxu0
  %v4122 = vadd.f32 %v4049, %v4121
  %v4123 = vpop.f32.mrb[0].mxu0
  %4124 = vmatprep.mubr.f32.mxu0 0.0
  %4125 = vmatmul.mubr.f32.gmra.mrb[0].mxu0 %v3812
  %v4126 = vpop.f32.mrb[0].mxu0
  %v4127 = vadd.f32 %v4049, %v4126
  %v4128 = vpop.f32.mrb[0].mxu0
  %4129 = vmatprep.mubr.f32.mxu0 0.0
  %4130 = vmatmul.mubr.f32.gmra.mrb[0].mxu0 %v3815
  %v4131 = vpop.f32.mrb[0].mxu0
  %v4132 = vadd.f32 %v4049, %v4131
  %v4133 = vpop.f32.mrb[0].mxu0
  %4134 = vmatprep.mubr.f32.mxu0 0.0
  %4135 = vmatmul.mubr.f32.gmra.mrb[0].mxu0 %v3818
  %v4136 = vpop.f32.mrb[0].mxu0
  %v4137 = vadd.f32 %v4049, %v4136
  %v4138 = vpop.f32.mrb[0].mxu0
  %4139 = vmatprep.mubr.f32.mxu0 0.0
  %4140 = vmatmul.mubr.f32.gmra.mrb[0].mxu0 %v3821
  %v4141 = vpop.f32.mrb[0].mxu0
  %v4142 = vadd.f32 %v4049, %v4141
  %v4143 = vpop.f32.mrb[0].mxu0
  %4144 = vmatprep.mubr.f32.mxu0 0.0
  %4145 = vmatmul.mubr.f32.gmra.mrb[0].mxu0 %v3824
  %v4146 = vpop.f32.mrb[0].mxu0
  %v4147 = vadd.f32 %v4049, %v4146
  %v4148 = vpop.f32.mrb[0].mxu0
  %4149 = vmatprep.mubr.f32.mxu0 0.0
  %4150 = vmatmul.mubr.f32.gmra.mrb[0].mxu0 %v3827
  %v4151 = vpop.f32.mrb[0].mxu0
  %v4152 = vadd.f32 %v4049, %v4151
  %v4153 = vpop.f32.mrb[0].mxu0
  %4154 = vmatprep.mubr.f32.mxu0 0.0
  %4155 = vmatmul.mubr.f32.gmra.mrb[0].mxu0 %v3830
  %v4156 = vpop.f32.mrb[0].mxu0
  %v4157 = vadd.f32 %v4049, %v4156
  %v4158 = vpop.f32.mrb[0].mxu0
  %4159 = vmatprep.mubr.f32.mxu0 0.0
  %4160 = vmatmul.mubr.f32.gmra.mrb[0].mxu0 %v3833
  %v4161 = vpop.f32.mrb[0].mxu0
  %v4162 = vadd.f32 %v4049, %v4161
  %v4163 = vpop.f32.mrb[0].mxu0
  %4164 = vmatprep.mubr.f32.mxu0 0.0
  %4165 = vmatmul.mubr.f32.gmra.mrb[0].mxu0 %v3836
  %v4166 = vpop.f32.mrb[0].mxu0
  %v4167 = vadd.f32 %v4049, %v4166
  %v4168 = vpop.f32.mrb[0].mxu0
  %4169 = vmatprep.mubr.f32.mxu0 0.0
  %4170 = vmatmul.mubr.f32.gmra.mrb[0].mxu0 %v3839
  %v4171 = vpop.f32.mrb[0].mxu0
  %v4172 = vadd.f32 %v4049, %v4171
  %v4173 = vpop.f32.mrb[0].mxu0
  %4174 = vmatprep.mubr.f32.mxu0 0.0
  %4175 = vmatmul.mubr.f32.gmra.mrb[0].mxu0 %v3842
  %v4176 = vpop.f32.mrb[0].mxu0
  %v4177 = vadd.f32 %v4049, %v4176
  %v4178 = vpop.f32.mrb[0].mxu0
  %4179 = vmatprep.mubr.f32.mxu0 0.0
  %4180 = vmatmul.mubr.f32.gmra.mrb[0].mxu0 %v3845
  %v4181 = vpop.f32.mrb[0].mxu0
  %v4182 = vadd.f32 %v4049, %v4181
  %v4183 = vpop.f32.mrb[0].mxu0
  %4184 = vmatprep.mubr.f32.mxu0 0.0
  %4185 = vmatmul.mubr.f32.gmra.mrb[0].mxu0 %v3848
  %v4186 = vpop.f32.mrb[0].mxu0
  %v4187 = vadd.f32 %v4049, %v4186
  %v4188 = vpop.f32.mrb[0].mxu0
  %4189 = vmatprep.mubr.f32.mxu0 0.0
  %4190 = vmatmul.mubr.f32.gmra.mrb[0].mxu0 %v3851
  %v4191 = vpop.f32.mrb[0].mxu0
  %v4192 = vadd.f32 %v4049, %v4191
  %v4193 = vpop.f32.mrb[0].mxu0
  %4194 = vdwg.mxu0
  %v4195 = vmul.f32 %v2901, %v4015
  %v4196 = vmul.f32 %v2902, %v4017
  %v4197 = vmul.f32 %v2903, %v4019
  %v4198 = vmul.f32 %v2904, %v4021
  %v4199 = vmul.f32 %v2905, %v4023
  %v4200 = vmul.f32 %v2906, %v4025
  %v4201 = vmul.f32 %v2907, %v4027
  %v4202 = vmul.f32 %v2908, %v4029
  %v4203 = vmul.f32 %v2909, %v4031
  %v4204 = vmul.f32 %v2910, %v4033
  %v4205 = vmul.f32 %v2911, %v4035
  %v4206 = vmul.f32 %v2912, %v4037
  %v4207 = vmul.f32 %v2913, %v4039
  %v4208 = vmul.f32 %v2914, %v4041
  %v4209 = vmul.f32 %v2915, %v4043
  %v4210 = vmul.f32 %v2916, %v4045
  %v4211 = vadd.f32 %v4195, %v4117
  %v4212 = vadd.f32 %v4196, %v4122
  %v4213 = vadd.f32 %v4197, %v4127
  %v4214 = vadd.f32 %v4198, %v4132
  %v4215 = vadd.f32 %v4199, %v4137
  %v4216 = vadd.f32 %v4200, %v4142
  %v4217 = vadd.f32 %v4201, %v4147
  %v4218 = vadd.f32 %v4202, %v4152
  %v4219 = vadd.f32 %v4203, %v4157
  %v4220 = vadd.f32 %v4204, %v4162
  %v4221 = vadd.f32 %v4205, %v4167
  %v4222 = vadd.f32 %v4206, %v4172
  %v4223 = vadd.f32 %v4207, %v4177
  %v4224 = vadd.f32 %v4208, %v4182
  %v4225 = vadd.f32 %v4209, %v4187
  %v4226 = vadd.f32 %v4210, %v4192
  %s4227 = scalar_lea.vmem %s11, 72
  %v4228 = vld [vmem:[%s4227] sm:$0xff]
  %v4229 = vld [vmem:[%s4227 + $0x8] sm:$0xff]
  %v4230 = vld [vmem:[%s4227 + $0x10] sm:$0x1]
  %v4231 = vlaneseq
  %v4232 = vshrl.u32 %v4231, 7
  %v4233 = vsub.s32 0, %v4232
  %v4234 = vrot.slane %v4230, %v4233
  %v4236 = vsel %vm2209, %v4211, 0
  %v4239 = vsel %vm2209, %v4212, 0
  %v4242 = vsel %vm2209, %v4213, 0
  %v4245 = vsel %vm2209, %v4214, 0
  %v4248 = vsel %vm2209, %v4215, 0
  %v4251 = vsel %vm2209, %v4216, 0
  %v4254 = vsel %vm2209, %v4217, 0
  %v4257 = vsel %vm2209, %v4218, 0
  %v4260 = vsel %vm2209, %v4219, 0
  %v4263 = vsel %vm2209, %v4220, 0
  %v4266 = vsel %vm2209, %v4221, 0
  %v4269 = vsel %vm2209, %v4222, 0
  %v4272 = vsel %vm2209, %v4223, 0
  %v4275 = vsel %vm2209, %v4224, 0
  %v4278 = vsel %vm2209, %v4225, 0
  %v4281 = vsel %vm2209, %v4226, 0
  %4283 = vmatprep.subr.mxu0 0.0
  %4284 = vmatpush1.msra.mxu0 %v4228
  %4285 = vmatprep.subr.mxu0 0.0
  %4286 = vmatpush1.msra.mxu0 %v4229
  %4287 = vmatprep.subr.mxu0 0.0
  %4288 = vmatpush1.msra.mxu0 0.0
  %4289 = vmatprep.subr.mxu0 0.0
  %4290 = vmatpush1.msra.mxu0 0.0
  %4291 = vmatprep.subr.mxu0 0.0
  %4292 = vmatpush1.msra.mxu0 0.0
  %4293 = vmatprep.subr.mxu0 0.0
  %4294 = vmatpush1.msra.mxu0 0.0
  %4295 = vmatprep.subr.mxu0 0.0
  %4296 = vmatpush1.msra.mxu0 0.0
  %4297 = vmatprep.subr.mxu0 0.0
  %4298 = vmatpush1.msra.mxu0 0.0
  %4299 = vmatprep.subr.mxu0 0.0
  %4300 = vmatpush1.msra.mxu0 0.0
  %4301 = vmatprep.subr.mxu0 0.0
  %4302 = vmatpush1.msra.mxu0 0.0
  %4303 = vmatprep.subr.mxu0 0.0
  %4304 = vmatpush1.msra.mxu0 0.0
  %4305 = vmatprep.subr.mxu0 0.0
  %4306 = vmatpush1.msra.mxu0 0.0
  %4307 = vmatprep.subr.mxu0 0.0
  %4308 = vmatpush1.msra.mxu0 0.0
  %4309 = vmatprep.subr.mxu0 0.0
  %4310 = vmatpush1.msra.mxu0 0.0
  %4311 = vmatprep.subr.mxu0 0.0
  %4312 = vmatpush1.msra.mxu0 0.0
  %4313 = vmatprep.subr.mxu0 0.0
  %4314 = vmatpush1.msra.mxu0 0.0
  %4315 = vmatprep.subr.mxu0 0.0
  %4316 = vmatpush1.msra.mxu0 0.0
  %4317 = vmatprep.subr.mxu0 0.0
  %4318 = vmatpush1.msra.mxu0 0.0
  %4319 = vmatprep.subr.mxu0 0.0
  %4320 = vmatpush1.msra.mxu0 0.0
  %4321 = vmatprep.subr.mxu0 0.0
  %4322 = vmatpush1.msra.mxu0 0.0
  %4323 = vmatprep.subr.mxu0 0.0
  %4324 = vmatpush1.msra.mxu0 0.0
  %4325 = vmatprep.subr.mxu0 0.0
  %4326 = vmatpush1.msra.mxu0 0.0
  %4327 = vmatprep.subr.mxu0 0.0
  %4328 = vmatpush1.msra.mxu0 0.0
  %4329 = vmatprep.subr.mxu0 0.0
  %4330 = vmatpush1.msra.mxu0 0.0
  %4331 = vmatprep.subr.mxu0 0.0
  %4332 = vmatpush1.msra.mxu0 0.0
  %4333 = vmatprep.subr.mxu0 0.0
  %4334 = vmatpush1.msra.mxu0 0.0
  %4335 = vmatprep.subr.mxu0 0.0
  %4336 = vmatpush1.msra.mxu0 0.0
  %4337 = vmatprep.subr.mxu0 0.0
  %4338 = vmatpush1.msra.mxu0 0.0
  %4339 = vmatprep.subr.mxu0 0.0
  %4340 = vmatpush1.msra.mxu0 0.0
  %4341 = vmatprep.subr.mxu0 0.0
  %4342 = vmatpush1.msra.mxu0 0.0
  %4343 = vmatprep.subr.mxu0 0.0
  %4344 = vmatpush1.msra.mxu0 0.0
  %4345 = vmatprep.subr.mxu0 0.0
  %4346 = vmatpush1.msra.mxu0 0.0
  %4347 = vmatprep.mubr.f32.mxu0 0.0
  %4348 = vmatmul.mubr.f32.gmra.mrb[0].mxu0 %v4236
  %v4349 = vpop.f32.mrb[0].mxu0
  %v4350 = vadd.f32 %v4234, %v4349
  %v4351 = vpop.f32.mrb[0].mxu0
  %4352 = vmatprep.mubr.f32.mxu0 0.0
  %4353 = vmatmul.mubr.f32.gmra.mrb[0].mxu0 %v4239
  %v4354 = vpop.f32.mrb[0].mxu0
  %v4355 = vadd.f32 %v4234, %v4354
  %v4356 = vpop.f32.mrb[0].mxu0
  %4357 = vmatprep.mubr.f32.mxu0 0.0
  %4358 = vmatmul.mubr.f32.gmra.mrb[0].mxu0 %v4242
  %v4359 = vpop.f32.mrb[0].mxu0
  %v4360 = vadd.f32 %v4234, %v4359
  %v4361 = vpop.f32.mrb[0].mxu0
  %4362 = vmatprep.mubr.f32.mxu0 0.0
  %4363 = vmatmul.mubr.f32.gmra.mrb[0].mxu0 %v4245
  %v4364 = vpop.f32.mrb[0].mxu0
  %v4365 = vadd.f32 %v4234, %v4364
  %v4366 = vpop.f32.mrb[0].mxu0
  %4367 = vmatprep.mubr.f32.mxu0 0.0
  %4368 = vmatmul.mubr.f32.gmra.mrb[0].mxu0 %v4248
  %v4369 = vpop.f32.mrb[0].mxu0
  %v4370 = vadd.f32 %v4234, %v4369
  %v4371 = vpop.f32.mrb[0].mxu0
  %4372 = vmatprep.mubr.f32.mxu0 0.0
  %4373 = vmatmul.mubr.f32.gmra.mrb[0].mxu0 %v4251
  %v4374 = vpop.f32.mrb[0].mxu0
  %v4375 = vadd.f32 %v4234, %v4374
  %v4376 = vpop.f32.mrb[0].mxu0
  %4377 = vmatprep.mubr.f32.mxu0 0.0
  %4378 = vmatmul.mubr.f32.gmra.mrb[0].mxu0 %v4254
  %v4379 = vpop.f32.mrb[0].mxu0
  %v4380 = vadd.f32 %v4234, %v4379
  %v4381 = vpop.f32.mrb[0].mxu0
  %4382 = vmatprep.mubr.f32.mxu0 0.0
  %4383 = vmatmul.mubr.f32.gmra.mrb[0].mxu0 %v4257
  %v4384 = vpop.f32.mrb[0].mxu0
  %v4385 = vadd.f32 %v4234, %v4384
  %v4386 = vpop.f32.mrb[0].mxu0
  %4387 = vmatprep.mubr.f32.mxu0 0.0
  %4388 = vmatmul.mubr.f32.gmra.mrb[0].mxu0 %v4260
  %v4389 = vpop.f32.mrb[0].mxu0
  %v4390 = vadd.f32 %v4234, %v4389
  %v4391 = vpop.f32.mrb[0].mxu0
  %4392 = vmatprep.mubr.f32.mxu0 0.0
  %4393 = vmatmul.mubr.f32.gmra.mrb[0].mxu0 %v4263
  %v4394 = vpop.f32.mrb[0].mxu0
  %v4395 = vadd.f32 %v4234, %v4394
  %v4396 = vpop.f32.mrb[0].mxu0
  %4397 = vmatprep.mubr.f32.mxu0 0.0
  %4398 = vmatmul.mubr.f32.gmra.mrb[0].mxu0 %v4266
  %v4399 = vpop.f32.mrb[0].mxu0
  %v4400 = vadd.f32 %v4234, %v4399
  %v4401 = vpop.f32.mrb[0].mxu0
  %4402 = vmatprep.mubr.f32.mxu0 0.0
  %4403 = vmatmul.mubr.f32.gmra.mrb[0].mxu0 %v4269
  %v4404 = vpop.f32.mrb[0].mxu0
  %v4405 = vadd.f32 %v4234, %v4404
  %v4406 = vpop.f32.mrb[0].mxu0
  %4407 = vmatprep.mubr.f32.mxu0 0.0
  %4408 = vmatmul.mubr.f32.gmra.mrb[0].mxu0 %v4272
  %v4409 = vpop.f32.mrb[0].mxu0
  %v4410 = vadd.f32 %v4234, %v4409
  %v4411 = vpop.f32.mrb[0].mxu0
  %4412 = vmatprep.mubr.f32.mxu0 0.0
  %4413 = vmatmul.mubr.f32.gmra.mrb[0].mxu0 %v4275
  %v4414 = vpop.f32.mrb[0].mxu0
  %v4415 = vadd.f32 %v4234, %v4414
  %v4416 = vpop.f32.mrb[0].mxu0
  %4417 = vmatprep.mubr.f32.mxu0 0.0
  %4418 = vmatmul.mubr.f32.gmra.mrb[0].mxu0 %v4278
  %v4419 = vpop.f32.mrb[0].mxu0
  %v4420 = vadd.f32 %v4234, %v4419
  %v4421 = vpop.f32.mrb[0].mxu0
  %4422 = vmatprep.mubr.f32.mxu0 0.0
  %4423 = vmatmul.mubr.f32.gmra.mrb[0].mxu0 %v4281
  %v4424 = vpop.f32.mrb[0].mxu0
  %v4425 = vadd.f32 %v4234, %v4424
  %v4426 = vpop.f32.mrb[0].mxu0
  %4427 = vdwg.mxu0
  %v4428 = vmax.f32 %v4350, 0.0
  %v4429 = vmax.f32 %v4355, 0.0
  %v4430 = vmax.f32 %v4360, 0.0
  %v4431 = vmax.f32 %v4365, 0.0
  %v4432 = vmax.f32 %v4370, 0.0
  %v4433 = vmax.f32 %v4375, 0.0
  %v4434 = vmax.f32 %v4380, 0.0
  %v4435 = vmax.f32 %v4385, 0.0
  %v4436 = vmax.f32 %v4390, 0.0
  %v4437 = vmax.f32 %v4395, 0.0
  %v4438 = vmax.f32 %v4400, 0.0
  %v4439 = vmax.f32 %v4405, 0.0
  %v4440 = vmax.f32 %v4410, 0.0
  %v4441 = vmax.f32 %v4415, 0.0
  %v4442 = vmax.f32 %v4420, 0.0
  %v4443 = vmax.f32 %v4425, 0.0
  %s4444 = scalar_lea.vmem %s12, 120
  %v4445 = vld [vmem:[%s4444] sm:$0xff]
  %v4446 = vld [vmem:[%s4444 + $0x8] sm:$0xff]
  %v4447 = vld [vmem:[%s4444 + $0x10] sm:$0xff]
  %v4448 = vld [vmem:[%s4444 + $0x18] sm:$0xff]
  %v4449 = vld [vmem:[%s4444 + $0x20] sm:$0x1]
  %s4450 = scalar_lea.vmem %s12, 280
  %v4451 = vld [vmem:[%s4450] sm:$0xff]
  %v4452 = vld [vmem:[%s4450 + $0x8] sm:$0xff]
  %v4453 = vld [vmem:[%s4450 + $0x10] sm:$0xff]
  %v4454 = vld [vmem:[%s4450 + $0x18] sm:$0xff]
  %v4455 = vld [vmem:[%s4450 + $0x20] sm:$0x1]
  %v4456 = vlaneseq
  %v4457 = vshrl.u32 %v4456, 7
  %v4458 = vsub.s32 0, %v4457
  %v4459 = vrot.slane %v4449, %v4458
  %v4461 = vsel %vm1835, %v4428, 0
  %v4464 = vsel %vm1835, %v4429, 0
  %v4467 = vsel %vm1835, %v4430, 0
  %v4470 = vsel %vm1835, %v4431, 0
  %v4473 = vsel %vm1835, %v4432, 0
  %v4476 = vsel %vm1835, %v4433, 0
  %v4479 = vsel %vm1835, %v4434, 0
  %v4482 = vsel %vm1835, %v4435, 0
  %v4485 = vsel %vm1835, %v4436, 0
  %v4488 = vsel %vm1835, %v4437, 0
  %v4491 = vsel %vm1835, %v4438, 0
  %v4494 = vsel %vm1835, %v4439, 0
  %v4497 = vsel %vm1835, %v4440, 0
  %v4500 = vsel %vm1835, %v4441, 0
  %v4503 = vsel %vm1835, %v4442, 0
  %v4506 = vsel %vm1835, %v4443, 0
  %4508 = vmatprep.subr.mxu0 0.0
  %4509 = vmatpush1.msra.mxu0 %v4445
  %4510 = vmatprep.subr.mxu0 0.0
  %4511 = vmatpush1.msra.mxu0 %v4446
  %4512 = vmatprep.subr.mxu0 0.0
  %4513 = vmatpush1.msra.mxu0 %v4447
  %4514 = vmatprep.subr.mxu0 0.0
  %4515 = vmatpush1.msra.mxu0 %v4448
  %4516 = vmatprep.subr.mxu0 0.0
  %4517 = vmatpush1.msra.mxu0 0.0
  %4518 = vmatprep.subr.mxu0 0.0
  %4519 = vmatpush1.msra.mxu0 0.0
  %4520 = vmatprep.subr.mxu0 0.0
  %4521 = vmatpush1.msra.mxu0 0.0
  %4522 = vmatprep.subr.mxu0 0.0
  %4523 = vmatpush1.msra.mxu0 0.0
  %4524 = vmatprep.subr.mxu0 0.0
  %4525 = vmatpush1.msra.mxu0 0.0
  %4526 = vmatprep.subr.mxu0 0.0
  %4527 = vmatpush1.msra.mxu0 0.0
  %4528 = vmatprep.subr.mxu0 0.0
  %4529 = vmatpush1.msra.mxu0 0.0
  %4530 = vmatprep.subr.mxu0 0.0
  %4531 = vmatpush1.msra.mxu0 0.0
  %4532 = vmatprep.subr.mxu0 0.0
  %4533 = vmatpush1.msra.mxu0 0.0
  %4534 = vmatprep.subr.mxu0 0.0
  %4535 = vmatpush1.msra.mxu0 0.0
  %4536 = vmatprep.subr.mxu0 0.0
  %4537 = vmatpush1.msra.mxu0 0.0
  %4538 = vmatprep.subr.mxu0 0.0
  %4539 = vmatpush1.msra.mxu0 0.0
  %4540 = vmatprep.subr.mxu0 0.0
  %4541 = vmatpush1.msra.mxu0 0.0
  %4542 = vmatprep.subr.mxu0 0.0
  %4543 = vmatpush1.msra.mxu0 0.0
  %4544 = vmatprep.subr.mxu0 0.0
  %4545 = vmatpush1.msra.mxu0 0.0
  %4546 = vmatprep.subr.mxu0 0.0
  %4547 = vmatpush1.msra.mxu0 0.0
  %4548 = vmatprep.subr.mxu0 0.0
  %4549 = vmatpush1.msra.mxu0 0.0
  %4550 = vmatprep.subr.mxu0 0.0
  %4551 = vmatpush1.msra.mxu0 0.0
  %4552 = vmatprep.subr.mxu0 0.0
  %4553 = vmatpush1.msra.mxu0 0.0
  %4554 = vmatprep.subr.mxu0 0.0
  %4555 = vmatpush1.msra.mxu0 0.0
  %4556 = vmatprep.subr.mxu0 0.0
  %4557 = vmatpush1.msra.mxu0 0.0
  %4558 = vmatprep.subr.mxu0 0.0
  %4559 = vmatpush1.msra.mxu0 0.0
  %4560 = vmatprep.subr.mxu0 0.0
  %4561 = vmatpush1.msra.mxu0 0.0
  %4562 = vmatprep.subr.mxu0 0.0
  %4563 = vmatpush1.msra.mxu0 0.0
  %4564 = vmatprep.subr.mxu0 0.0
  %4565 = vmatpush1.msra.mxu0 0.0
  %4566 = vmatprep.subr.mxu0 0.0
  %4567 = vmatpush1.msra.mxu0 0.0
  %4568 = vmatprep.subr.mxu0 0.0
  %4569 = vmatpush1.msra.mxu0 0.0
  %4570 = vmatprep.subr.mxu0 0.0
  %4571 = vmatpush1.msra.mxu0 0.0
  %4572 = vmatprep.mubr.f32.mxu0 0.0
  %4573 = vmatmul.mubr.f32.gmra.mrb[0].mxu0 %v4461
  %v4574 = vpop.f32.mrb[0].mxu0
  %v4575 = vadd.f32 %v4459, %v4574
  %v4576 = vpop.f32.mrb[0].mxu0
  %4577 = vmatprep.mubr.f32.mxu0 0.0
  %4578 = vmatmul.mubr.f32.gmra.mrb[0].mxu0 %v4464
  %v4579 = vpop.f32.mrb[0].mxu0
  %v4580 = vadd.f32 %v4459, %v4579
  %v4581 = vpop.f32.mrb[0].mxu0
  %4582 = vmatprep.mubr.f32.mxu0 0.0
  %4583 = vmatmul.mubr.f32.gmra.mrb[0].mxu0 %v4467
  %v4584 = vpop.f32.mrb[0].mxu0
  %v4585 = vadd.f32 %v4459, %v4584
  %v4586 = vpop.f32.mrb[0].mxu0
  %4587 = vmatprep.mubr.f32.mxu0 0.0
  %4588 = vmatmul.mubr.f32.gmra.mrb[0].mxu0 %v4470
  %v4589 = vpop.f32.mrb[0].mxu0
  %v4590 = vadd.f32 %v4459, %v4589
  %v4591 = vpop.f32.mrb[0].mxu0
  %4592 = vmatprep.mubr.f32.mxu0 0.0
  %4593 = vmatmul.mubr.f32.gmra.mrb[0].mxu0 %v4473
  %v4594 = vpop.f32.mrb[0].mxu0
  %v4595 = vadd.f32 %v4459, %v4594
  %v4596 = vpop.f32.mrb[0].mxu0
  %4597 = vmatprep.mubr.f32.mxu0 0.0
  %4598 = vmatmul.mubr.f32.gmra.mrb[0].mxu0 %v4476
  %v4599 = vpop.f32.mrb[0].mxu0
  %v4600 = vadd.f32 %v4459, %v4599
  %v4601 = vpop.f32.mrb[0].mxu0
  %4602 = vmatprep.mubr.f32.mxu0 0.0
  %4603 = vmatmul.mubr.f32.gmra.mrb[0].mxu0 %v4479
  %v4604 = vpop.f32.mrb[0].mxu0
  %v4605 = vadd.f32 %v4459, %v4604
  %v4606 = vpop.f32.mrb[0].mxu0
  %4607 = vmatprep.mubr.f32.mxu0 0.0
  %4608 = vmatmul.mubr.f32.gmra.mrb[0].mxu0 %v4482
  %v4609 = vpop.f32.mrb[0].mxu0
  %v4610 = vadd.f32 %v4459, %v4609
  %v4611 = vpop.f32.mrb[0].mxu0
  %4612 = vmatprep.mubr.f32.mxu0 0.0
  %4613 = vmatmul.mubr.f32.gmra.mrb[0].mxu0 %v4485
  %v4614 = vpop.f32.mrb[0].mxu0
  %v4615 = vadd.f32 %v4459, %v4614
  %v4616 = vpop.f32.mrb[0].mxu0
  %4617 = vmatprep.mubr.f32.mxu0 0.0
  %4618 = vmatmul.mubr.f32.gmra.mrb[0].mxu0 %v4488
  %v4619 = vpop.f32.mrb[0].mxu0
  %v4620 = vadd.f32 %v4459, %v4619
  %v4621 = vpop.f32.mrb[0].mxu0
  %4622 = vmatprep.mubr.f32.mxu0 0.0
  %4623 = vmatmul.mubr.f32.gmra.mrb[0].mxu0 %v4491
  %v4624 = vpop.f32.mrb[0].mxu0
  %v4625 = vadd.f32 %v4459, %v4624
  %v4626 = vpop.f32.mrb[0].mxu0
  %4627 = vmatprep.mubr.f32.mxu0 0.0
  %4628 = vmatmul.mubr.f32.gmra.mrb[0].mxu0 %v4494
  %v4629 = vpop.f32.mrb[0].mxu0
  %v4630 = vadd.f32 %v4459, %v4629
  %v4631 = vpop.f32.mrb[0].mxu0
  %4632 = vmatprep.mubr.f32.mxu0 0.0
  %4633 = vmatmul.mubr.f32.gmra.mrb[0].mxu0 %v4497
  %v4634 = vpop.f32.mrb[0].mxu0
  %v4635 = vadd.f32 %v4459, %v4634
  %v4636 = vpop.f32.mrb[0].mxu0
  %4637 = vmatprep.mubr.f32.mxu0 0.0
  %4638 = vmatmul.mubr.f32.gmra.mrb[0].mxu0 %v4500
  %v4639 = vpop.f32.mrb[0].mxu0
  %v4640 = vadd.f32 %v4459, %v4639
  %v4641 = vpop.f32.mrb[0].mxu0
  %4642 = vmatprep.mubr.f32.mxu0 0.0
  %4643 = vmatmul.mubr.f32.gmra.mrb[0].mxu0 %v4503
  %v4644 = vpop.f32.mrb[0].mxu0
  %v4645 = vadd.f32 %v4459, %v4644
  %v4646 = vpop.f32.mrb[0].mxu0
  %4647 = vmatprep.mubr.f32.mxu0 0.0
  %4648 = vmatmul.mubr.f32.gmra.mrb[0].mxu0 %v4506
  %v4649 = vpop.f32.mrb[0].mxu0
  %v4650 = vadd.f32 %v4459, %v4649
  %v4651 = vpop.f32.mrb[0].mxu0
  %4652 = vdwg.mxu0
  %v4653 = vtanh.pop %v4575
  %v4654 = vtanh.pop %v4580
  %v4655 = vtanh.pop %v4585
  %v4656 = vtanh.pop %v4590
  %v4657 = vtanh.pop %v4595
  %v4658 = vtanh.pop %v4600
  %v4659 = vtanh.pop %v4605
  %v4660 = vtanh.pop %v4610
  %v4661 = vtanh.pop %v4615
  %v4662 = vtanh.pop %v4620
  %v4663 = vtanh.pop %v4625
  %v4664 = vtanh.pop %v4630
  %v4665 = vtanh.pop %v4635
  %v4666 = vtanh.pop %v4640
  %v4667 = vtanh.pop %v4645
  %v4668 = vtanh.pop %v4650
  %v4669 = vmul.f32 %v4653, 1.442695
  %v4670 = vpow.pop %v4669
  %v4671 = vmul.f32 %v4654, 1.442695
  %v4672 = vpow.pop %v4671
  %v4673 = vmul.f32 %v4655, 1.442695
  %v4674 = vpow.pop %v4673
  %v4675 = vmul.f32 %v4656, 1.442695
  %v4676 = vpow.pop %v4675
  %v4677 = vmul.f32 %v4657, 1.442695
  %v4678 = vpow.pop %v4677
  %v4679 = vmul.f32 %v4658, 1.442695
  %v4680 = vpow.pop %v4679
  %v4681 = vmul.f32 %v4659, 1.442695
  %v4682 = vpow.pop %v4681
  %v4683 = vmul.f32 %v4660, 1.442695
  %v4684 = vpow.pop %v4683
  %v4685 = vmul.f32 %v4661, 1.442695
  %v4686 = vpow.pop %v4685
  %v4687 = vmul.f32 %v4662, 1.442695
  %v4688 = vpow.pop %v4687
  %v4689 = vmul.f32 %v4663, 1.442695
  %v4690 = vpow.pop %v4689
  %v4691 = vmul.f32 %v4664, 1.442695
  %v4692 = vpow.pop %v4691
  %v4693 = vmul.f32 %v4665, 1.442695
  %v4694 = vpow.pop %v4693
  %v4695 = vmul.f32 %v4666, 1.442695
  %v4696 = vpow.pop %v4695
  %v4697 = vmul.f32 %v4667, 1.442695
  %v4698 = vpow.pop %v4697
  %v4699 = vmul.f32 %v4668, 1.442695
  %v4700 = vpow.pop %v4699
  %v4701 = vlaneseq
  %v4702 = vshrl.u32 %v4701, 7
  %v4703 = vsub.s32 0, %v4702
  %v4704 = vrot.slane %v4455, %v4703
  %4705 = vmatprep.subr.mxu0 0.0
  %4706 = vmatpush1.msra.mxu0 %v4451
  %4707 = vmatprep.subr.mxu0 0.0
  %4708 = vmatpush1.msra.mxu0 %v4452
  %4709 = vmatprep.subr.mxu0 0.0
  %4710 = vmatpush1.msra.mxu0 %v4453
  %4711 = vmatprep.subr.mxu0 0.0
  %4712 = vmatpush1.msra.mxu0 %v4454
  %4713 = vmatprep.subr.mxu0 0.0
  %4714 = vmatpush1.msra.mxu0 0.0
  %4715 = vmatprep.subr.mxu0 0.0
  %4716 = vmatpush1.msra.mxu0 0.0
  %4717 = vmatprep.subr.mxu0 0.0
  %4718 = vmatpush1.msra.mxu0 0.0
  %4719 = vmatprep.subr.mxu0 0.0
  %4720 = vmatpush1.msra.mxu0 0.0
  %4721 = vmatprep.subr.mxu0 0.0
  %4722 = vmatpush1.msra.mxu0 0.0
  %4723 = vmatprep.subr.mxu0 0.0
  %4724 = vmatpush1.msra.mxu0 0.0
  %4725 = vmatprep.subr.mxu0 0.0
  %4726 = vmatpush1.msra.mxu0 0.0
  %4727 = vmatprep.subr.mxu0 0.0
  %4728 = vmatpush1.msra.mxu0 0.0
  %4729 = vmatprep.subr.mxu0 0.0
  %4730 = vmatpush1.msra.mxu0 0.0
  %4731 = vmatprep.subr.mxu0 0.0
  %4732 = vmatpush1.msra.mxu0 0.0
  %4733 = vmatprep.subr.mxu0 0.0
  %4734 = vmatpush1.msra.mxu0 0.0
  %4735 = vmatprep.subr.mxu0 0.0
  %4736 = vmatpush1.msra.mxu0 0.0
  %4737 = vmatprep.subr.mxu0 0.0
  %4738 = vmatpush1.msra.mxu0 0.0
  %4739 = vmatprep.subr.mxu0 0.0
  %4740 = vmatpush1.msra.mxu0 0.0
  %4741 = vmatprep.subr.mxu0 0.0
  %4742 = vmatpush1.msra.mxu0 0.0
  %4743 = vmatprep.subr.mxu0 0.0
  %4744 = vmatpush1.msra.mxu0 0.0
  %4745 = vmatprep.subr.mxu0 0.0
  %4746 = vmatpush1.msra.mxu0 0.0
  %4747 = vmatprep.subr.mxu0 0.0
  %4748 = vmatpush1.msra.mxu0 0.0
  %4749 = vmatprep.subr.mxu0 0.0
  %4750 = vmatpush1.msra.mxu0 0.0
  %4751 = vmatprep.subr.mxu0 0.0
  %4752 = vmatpush1.msra.mxu0 0.0
  %4753 = vmatprep.subr.mxu0 0.0
  %4754 = vmatpush1.msra.mxu0 0.0
  %4755 = vmatprep.subr.mxu0 0.0
  %4756 = vmatpush1.msra.mxu0 0.0
  %4757 = vmatprep.subr.mxu0 0.0
  %4758 = vmatpush1.msra.mxu0 0.0
  %4759 = vmatprep.subr.mxu0 0.0
  %4760 = vmatpush1.msra.mxu0 0.0
  %4761 = vmatprep.subr.mxu0 0.0
  %4762 = vmatpush1.msra.mxu0 0.0
  %4763 = vmatprep.subr.mxu0 0.0
  %4764 = vmatpush1.msra.mxu0 0.0
  %4765 = vmatprep.subr.mxu0 0.0
  %4766 = vmatpush1.msra.mxu0 0.0
  %4767 = vmatprep.subr.mxu0 0.0
  %4768 = vmatpush1.msra.mxu0 0.0
  %4769 = vmatprep.mubr.f32.mxu0 0.0
  %4770 = vmatmul.mubr.f32.gmra.mrb[0].mxu0 %v4461
  %v4771 = vpop.f32.mrb[0].mxu0
  %v4772 = vadd.f32 %v4704, %v4771
  %v4773 = vpop.f32.mrb[0].mxu0
  %4774 = vmatprep.mubr.f32.mxu0 0.0
  %4775 = vmatmul.mubr.f32.gmra.mrb[0].mxu0 %v4464
  %v4776 = vpop.f32.mrb[0].mxu0
  %v4777 = vadd.f32 %v4704, %v4776
  %v4778 = vpop.f32.mrb[0].mxu0
  %4779 = vmatprep.mubr.f32.mxu0 0.0
  %4780 = vmatmul.mubr.f32.gmra.mrb[0].mxu0 %v4467
  %v4781 = vpop.f32.mrb[0].mxu0
  %v4782 = vadd.f32 %v4704, %v4781
  %v4783 = vpop.f32.mrb[0].mxu0
  %4784 = vmatprep.mubr.f32.mxu0 0.0
  %4785 = vmatmul.mubr.f32.gmra.mrb[0].mxu0 %v4470
  %v4786 = vpop.f32.mrb[0].mxu0
  %v4787 = vadd.f32 %v4704, %v4786
  %v4788 = vpop.f32.mrb[0].mxu0
  %4789 = vmatprep.mubr.f32.mxu0 0.0
  %4790 = vmatmul.mubr.f32.gmra.mrb[0].mxu0 %v4473
  %v4791 = vpop.f32.mrb[0].mxu0
  %v4792 = vadd.f32 %v4704, %v4791
  %v4793 = vpop.f32.mrb[0].mxu0
  %4794 = vmatprep.mubr.f32.mxu0 0.0
  %4795 = vmatmul.mubr.f32.gmra.mrb[0].mxu0 %v4476
  %v4796 = vpop.f32.mrb[0].mxu0
  %v4797 = vadd.f32 %v4704, %v4796
  %v4798 = vpop.f32.mrb[0].mxu0
  %4799 = vmatprep.mubr.f32.mxu0 0.0
  %4800 = vmatmul.mubr.f32.gmra.mrb[0].mxu0 %v4479
  %v4801 = vpop.f32.mrb[0].mxu0
  %v4802 = vadd.f32 %v4704, %v4801
  %v4803 = vpop.f32.mrb[0].mxu0
  %4804 = vmatprep.mubr.f32.mxu0 0.0
  %4805 = vmatmul.mubr.f32.gmra.mrb[0].mxu0 %v4482
  %v4806 = vpop.f32.mrb[0].mxu0
  %v4807 = vadd.f32 %v4704, %v4806
  %v4808 = vpop.f32.mrb[0].mxu0
  %4809 = vmatprep.mubr.f32.mxu0 0.0
  %4810 = vmatmul.mubr.f32.gmra.mrb[0].mxu0 %v4485
  %v4811 = vpop.f32.mrb[0].mxu0
  %v4812 = vadd.f32 %v4704, %v4811
  %v4813 = vpop.f32.mrb[0].mxu0
  %4814 = vmatprep.mubr.f32.mxu0 0.0
  %4815 = vmatmul.mubr.f32.gmra.mrb[0].mxu0 %v4488
  %v4816 = vpop.f32.mrb[0].mxu0
  %v4817 = vadd.f32 %v4704, %v4816
  %v4818 = vpop.f32.mrb[0].mxu0
  %4819 = vmatprep.mubr.f32.mxu0 0.0
  %4820 = vmatmul.mubr.f32.gmra.mrb[0].mxu0 %v4491
  %v4821 = vpop.f32.mrb[0].mxu0
  %v4822 = vadd.f32 %v4704, %v4821
  %v4823 = vpop.f32.mrb[0].mxu0
  %4824 = vmatprep.mubr.f32.mxu0 0.0
  %4825 = vmatmul.mubr.f32.gmra.mrb[0].mxu0 %v4494
  %v4826 = vpop.f32.mrb[0].mxu0
  %v4827 = vadd.f32 %v4704, %v4826
  %v4828 = vpop.f32.mrb[0].mxu0
  %4829 = vmatprep.mubr.f32.mxu0 0.0
  %4830 = vmatmul.mubr.f32.gmra.mrb[0].mxu0 %v4497
  %v4831 = vpop.f32.mrb[0].mxu0
  %v4832 = vadd.f32 %v4704, %v4831
  %v4833 = vpop.f32.mrb[0].mxu0
  %4834 = vmatprep.mubr.f32.mxu0 0.0
  %4835 = vmatmul.mubr.f32.gmra.mrb[0].mxu0 %v4500
  %v4836 = vpop.f32.mrb[0].mxu0
  %v4837 = vadd.f32 %v4704, %v4836
  %v4838 = vpop.f32.mrb[0].mxu0
  %4839 = vmatprep.mubr.f32.mxu0 0.0
  %4840 = vmatmul.mubr.f32.gmra.mrb[0].mxu0 %v4503
  %v4841 = vpop.f32.mrb[0].mxu0
  %v4842 = vadd.f32 %v4704, %v4841
  %v4843 = vpop.f32.mrb[0].mxu0
  %4844 = vmatprep.mubr.f32.mxu0 0.0
  %4845 = vmatmul.mubr.f32.gmra.mrb[0].mxu0 %v4506
  %v4846 = vpop.f32.mrb[0].mxu0
  %v4847 = vadd.f32 %v4704, %v4846
  %v4848 = vpop.f32.mrb[0].mxu0
  %4849 = vdwg.mxu0
  %v4850 = vmul.f32 %v3556, %v4670
  %v4851 = vmul.f32 %v3557, %v4672
  %v4852 = vmul.f32 %v3558, %v4674
  %v4853 = vmul.f32 %v3559, %v4676
  %v4854 = vmul.f32 %v3560, %v4678
  %v4855 = vmul.f32 %v3561, %v4680
  %v4856 = vmul.f32 %v3562, %v4682
  %v4857 = vmul.f32 %v3563, %v4684
  %v4858 = vmul.f32 %v3564, %v4686
  %v4859 = vmul.f32 %v3565, %v4688
  %v4860 = vmul.f32 %v3566, %v4690
  %v4861 = vmul.f32 %v3567, %v4692
  %v4862 = vmul.f32 %v3568, %v4694
  %v4863 = vmul.f32 %v3569, %v4696
  %v4864 = vmul.f32 %v3570, %v4698
  %v4865 = vmul.f32 %v3571, %v4700
  %v4866 = vadd.f32 %v4850, %v4772
  %v4867 = vadd.f32 %v4851, %v4777
  %v4868 = vadd.f32 %v4852, %v4782
  %v4869 = vadd.f32 %v4853, %v4787
  %v4870 = vadd.f32 %v4854, %v4792
  %v4871 = vadd.f32 %v4855, %v4797
  %v4872 = vadd.f32 %v4856, %v4802
  %v4873 = vadd.f32 %v4857, %v4807
  %v4874 = vadd.f32 %v4858, %v4812
  %v4875 = vadd.f32 %v4859, %v4817
  %v4876 = vadd.f32 %v4860, %v4822
  %v4877 = vadd.f32 %v4861, %v4827
  %v4878 = vadd.f32 %v4862, %v4832
  %v4879 = vadd.f32 %v4863, %v4837
  %v4880 = vadd.f32 %v4864, %v4842
  %v4881 = vadd.f32 %v4865, %v4847
  %4882 = vrot.lane.b32.xlu0 %v4211, 16
  %v4883 = vpop.permute.xlu0 %4882
  %4884 = vrot.lane.b32.xlu0 %v4212, 16
  %v4885 = vpop.permute.xlu0 %4884
  %4886 = vrot.lane.b32.xlu0 %v4213, 16
  %v4887 = vpop.permute.xlu0 %4886
  %4888 = vrot.lane.b32.xlu0 %v4214, 16
  %v4889 = vpop.permute.xlu0 %4888
  %4890 = vrot.lane.b32.xlu0 %v4215, 16
  %v4891 = vpop.permute.xlu0 %4890
  %4892 = vrot.lane.b32.xlu0 %v4216, 16
  %v4893 = vpop.permute.xlu0 %4892
  %4894 = vrot.lane.b32.xlu0 %v4217, 16
  %v4895 = vpop.permute.xlu0 %4894
  %4896 = vrot.lane.b32.xlu0 %v4218, 16
  %v4897 = vpop.permute.xlu0 %4896
  %4898 = vrot.lane.b32.xlu0 %v4219, 16
  %v4899 = vpop.permute.xlu0 %4898
  %4900 = vrot.lane.b32.xlu0 %v4220, 16
  %v4901 = vpop.permute.xlu0 %4900
  %4902 = vrot.lane.b32.xlu0 %v4221, 16
  %v4903 = vpop.permute.xlu0 %4902
  %4904 = vrot.lane.b32.xlu0 %v4222, 16
  %v4905 = vpop.permute.xlu0 %4904
  %4906 = vrot.lane.b32.xlu0 %v4223, 16
  %v4907 = vpop.permute.xlu0 %4906
  %4908 = vrot.lane.b32.xlu0 %v4224, 16
  %v4909 = vpop.permute.xlu0 %4908
  %4910 = vrot.lane.b32.xlu0 %v4225, 16
  %v4911 = vpop.permute.xlu0 %4910
  %4912 = vrot.lane.b32.xlu0 %v4226, 16
  %v4913 = vpop.permute.xlu0 %4912
  %v4930 = vsel %vm2209, %v4866, %v4883
  %v4931 = vsel %vm2209, %v4867, %v4885
  %v4932 = vsel %vm2209, %v4868, %v4887
  %v4933 = vsel %vm2209, %v4869, %v4889
  %v4934 = vsel %vm2209, %v4870, %v4891
  %v4935 = vsel %vm2209, %v4871, %v4893
  %v4936 = vsel %vm2209, %v4872, %v4895
  %v4937 = vsel %vm2209, %v4873, %v4897
  %v4938 = vsel %vm2209, %v4874, %v4899
  %v4939 = vsel %vm2209, %v4875, %v4901
  %v4940 = vsel %vm2209, %v4876, %v4903
  %v4941 = vsel %vm2209, %v4877, %v4905
  %v4942 = vsel %vm2209, %v4878, %v4907
  %v4943 = vsel %vm2209, %v4879, %v4909
  %v4944 = vsel %vm2209, %v4880, %v4911
  %v4945 = vsel %vm2209, %v4881, %v4913
  %v4946 = vmul.f32 %v4930, %v4930
  %v4947 = vmul.f32 %v4931, %v4931
  %v4948 = vmul.f32 %v4932, %v4932
  %v4949 = vmul.f32 %v4933, %v4933
  %v4950 = vmul.f32 %v4934, %v4934
  %v4951 = vmul.f32 %v4935, %v4935
  %v4952 = vmul.f32 %v4936, %v4936
  %v4953 = vmul.f32 %v4937, %v4937
  %v4954 = vmul.f32 %v4938, %v4938
  %v4955 = vmul.f32 %v4939, %v4939
  %v4956 = vmul.f32 %v4940, %v4940
  %v4957 = vmul.f32 %v4941, %v4941
  %v4958 = vmul.f32 %v4942, %v4942
  %v4959 = vmul.f32 %v4943, %v4943
  %v4960 = vmul.f32 %v4944, %v4944
  %v4961 = vmul.f32 %v4945, %v4945
  %4978 = vrot.lane.b32.xlu0 %v4946, 32
  %v4979 = vpop.permute.xlu0 %4978
  %4980 = vrot.lane.b32.xlu0 %v4947, 32
  %v4981 = vpop.permute.xlu0 %4980
  %4982 = vrot.lane.b32.xlu0 %v4948, 32
  %v4983 = vpop.permute.xlu0 %4982
  %4984 = vrot.lane.b32.xlu0 %v4949, 32
  %v4985 = vpop.permute.xlu0 %4984
  %4986 = vrot.lane.b32.xlu0 %v4950, 32
  %v4987 = vpop.permute.xlu0 %4986
  %4988 = vrot.lane.b32.xlu0 %v4951, 32
  %v4989 = vpop.permute.xlu0 %4988
  %4990 = vrot.lane.b32.xlu0 %v4952, 32
  %v4991 = vpop.permute.xlu0 %4990
  %4992 = vrot.lane.b32.xlu0 %v4953, 32
  %v4993 = vpop.permute.xlu0 %4992
  %4994 = vrot.lane.b32.xlu0 %v4954, 32
  %v4995 = vpop.permute.xlu0 %4994
  %4996 = vrot.lane.b32.xlu0 %v4955, 32
  %v4997 = vpop.permute.xlu0 %4996
  %4998 = vrot.lane.b32.xlu0 %v4956, 32
  %v4999 = vpop.permute.xlu0 %4998
  %5000 = vrot.lane.b32.xlu0 %v4957, 32
  %v5001 = vpop.permute.xlu0 %5000
  %5002 = vrot.lane.b32.xlu0 %v4958, 32
  %v5003 = vpop.permute.xlu0 %5002
  %5004 = vrot.lane.b32.xlu0 %v4959, 32
  %v5005 = vpop.permute.xlu0 %5004
  %5006 = vrot.lane.b32.xlu0 %v4960, 32
  %v5007 = vpop.permute.xlu0 %5006
  %5008 = vrot.lane.b32.xlu0 %v4961, 32
  %v5009 = vpop.permute.xlu0 %5008
  %v5026 = vsel %vm1835, %v4930, %v4979
  %v5027 = vsel %vm1835, %v4931, %v4981
  %v5028 = vsel %vm1835, %v4932, %v4983
  %v5029 = vsel %vm1835, %v4933, %v4985
  %v5030 = vsel %vm1835, %v4934, %v4987
  %v5031 = vsel %vm1835, %v4935, %v4989
  %v5032 = vsel %vm1835, %v4936, %v4991
  %v5033 = vsel %vm1835, %v4937, %v4993
  %v5034 = vsel %vm1835, %v4938, %v4995
  %v5035 = vsel %vm1835, %v4939, %v4997
  %v5036 = vsel %vm1835, %v4940, %v4999
  %v5037 = vsel %vm1835, %v4941, %v5001
  %v5038 = vsel %vm1835, %v4942, %v5003
  %v5039 = vsel %vm1835, %v4943, %v5005
  %v5040 = vsel %vm1835, %v4944, %v5007
  %v5041 = vsel %vm1835, %v4945, %v5009
  %v5042 = vld [vmem:[%s4] sm:$0xff]
  %5043 = vmatprep.subr.mxu0 0.0
  %5044 = vmatpush1.msra.mxu0 %v5026
  %5045 = vmatprep.subr.mxu0 0.0
  %5046 = vmatpush1.msra.mxu0 %v5027
  %5047 = vmatprep.subr.mxu0 0.0
  %5048 = vmatpush1.msra.mxu0 %v5028
  %5049 = vmatprep.subr.mxu0 0.0
  %5050 = vmatpush1.msra.mxu0 %v5029
  %5051 = vmatprep.subr.mxu0 0.0
  %5052 = vmatpush1.msra.mxu0 %v5030
  %5053 = vmatprep.subr.mxu0 0.0
  %5054 = vmatpush1.msra.mxu0 %v5031
  %5055 = vmatprep.subr.mxu0 0.0
  %5056 = vmatpush1.msra.mxu0 %v5032
  %5057 = vmatprep.subr.mxu0 0.0
  %5058 = vmatpush1.msra.mxu0 %v5033
  %5059 = vmatprep.subr.mxu0 0.0
  %5060 = vmatpush1.msra.mxu0 %v5034
  %5061 = vmatprep.subr.mxu0 0.0
  %5062 = vmatpush1.msra.mxu0 %v5035
  %5063 = vmatprep.subr.mxu0 0.0
  %5064 = vmatpush1.msra.mxu0 %v5036
  %5065 = vmatprep.subr.mxu0 0.0
  %5066 = vmatpush1.msra.mxu0 %v5037
  %5067 = vmatprep.subr.mxu0 0.0
  %5068 = vmatpush1.msra.mxu0 %v5038
  %5069 = vmatprep.subr.mxu0 0.0
  %5070 = vmatpush1.msra.mxu0 %v5039
  %5071 = vmatprep.subr.mxu0 0.0
  %5072 = vmatpush1.msra.mxu0 %v5040
  %5073 = vmatprep.subr.mxu0 0.0
  %5074 = vmatpush1.msra.mxu0 %v5041
  %5075 = vmatprep.subr.mxu0 0.0
  %5076 = vmatpush1.msra.mxu0 0.0
  %5077 = vmatprep.subr.mxu0 0.0
  %5078 = vmatpush1.msra.mxu0 0.0
  %5079 = vmatprep.subr.mxu0 0.0
  %5080 = vmatpush1.msra.mxu0 0.0
  %5081 = vmatprep.subr.mxu0 0.0
  %5082 = vmatpush1.msra.mxu0 0.0
  %5083 = vmatprep.subr.mxu0 0.0
  %5084 = vmatpush1.msra.mxu0 0.0
  %5085 = vmatprep.subr.mxu0 0.0
  %5086 = vmatpush1.msra.mxu0 0.0
  %5087 = vmatprep.subr.mxu0 0.0
  %5088 = vmatpush1.msra.mxu0 0.0
  %5089 = vmatprep.subr.mxu0 0.0
  %5090 = vmatpush1.msra.mxu0 0.0
  %5091 = vmatprep.subr.mxu0 0.0
  %5092 = vmatpush1.msra.mxu0 0.0
  %5093 = vmatprep.subr.mxu0 0.0
  %5094 = vmatpush1.msra.mxu0 0.0
  %5095 = vmatprep.subr.mxu0 0.0
  %5096 = vmatpush1.msra.mxu0 0.0
  %5097 = vmatprep.subr.mxu0 0.0
  %5098 = vmatpush1.msra.mxu0 0.0
  %5099 = vmatprep.subr.mxu0 0.0
  %5100 = vmatpush1.msra.mxu0 0.0
  %5101 = vmatprep.subr.mxu0 0.0
  %5102 = vmatpush1.msra.mxu0 0.0
  %5103 = vmatprep.subr.mxu0 0.0
  %5104 = vmatpush1.msra.mxu0 0.0
  %5105 = vmatprep.subr.mxu0 0.0
  %5106 = vmatpush1.msra.mxu0 0.0
  %5107 = vmatprep.mubr.f32.mxu0 0.0
  %5108 = vmatmul.mubr.f32.gmra.mrb[0].mxu0 %v5042
  %v5109 = vpop.f32.mrb[0].mxu0
  %v5110 = vadd.f32 0.0, %v5109
  %v5111 = vpop.f32.mrb[0].mxu0
  %5112 = vdwg.mxu0
  %v5113 = vmul.f32 %v5110, 0.1
  %v5114 = vmul.f32 %v5113, 10.0
  %v5115 = vmul.f32 %v5114, %v5113
  %5117 = vrot.lane.b32.xlu0 %v5115, 32
  %v5118 = vpop.permute.xlu0 %5117
  %v5120 = vsub.f32 %v5110, %v5118
  %v5121 = vmax.f32 %v5120, 0.0
  %v5122 = vmul.f32 %v5121, 0.11111111
  %v5123 = vrsqrt.pop %v5122
  %v5124 = vmul.f32 %v5122, %v5123
  %vm5125 = vcmp.eq.f32.partialorder %v5122, inf
  %v5126 = vsel %vm5125, %v5122, %v5124
  %vm5127 = vcmp.eq.f32.partialorder %v5122, 0.0
  %v5128 = vand.u32 %v5122, 2147483648
  %v5129 = vsel %vm5127, %v5128, %v5126
  %5130 = vst [vmem:[%s13] sm:$0xff] 0.0
  %5131 = vst.msk [vmem:[%s13] sm:$0xff] %vm1835, %v5113
  %vm5132 = vcmask 523520
  %5133 = vst.msk [vmem:[%s13] sm:$0xff] %vm5132, %v5129
  %vm5134 = vcmask 7168
  %v5135 = vsel %vm5134, %v1906, %v2229
  %vm5136 = vcmask 15360
  %v5137 = vsel %vm5136, %v5135, %v2230
  %5139 = vrot.lane.b32.xlu0 %v5137, 64
  %v5140 = vpop.permute.xlu0 %5139
  %vm5142 = vcmask 548352
  %5143 = vst.msk [vmem:[%s13] sm:$0xff] %vm5142, %v5140
  // Predicated region
  $region54: #{ben_forward.1} parent=0 // pred_check
    _
  $region55: #{ben_forward.1} parent=0 // pred_check_branch
    %5145 = sbr.rel (0) target = $region57
  $region56: #{ben_forward.1} parent=0 // pred_region
    _
  $region57: #{ben_forward.1} parent=0 // pred_fallthru
    _
  // Predicated region
  $region58: #{ben_forward.1} parent=0 // pred_check
    _
  $region59: #{ben_forward.1} parent=0 // pred_check_branch
    %5147 = sbr.rel (0) target = $region61
  $region60: #{ben_forward.1} parent=0 // pred_region
    _
  $region61: #{ben_forward.1} parent=0 // pred_fallthru
    _

</llo_original>
